<compile_context>
chip_gen: v5e
topology: v5e:2x2
jax: 0.10.0
libtpu: 0.0.40
codegen_flags: <defaults>
</compile_context>

<pallas_src>
import functools

import jax
import jax.numpy as jnp
import numpy as np
from jax.experimental import pallas as pl
from jax.experimental.pallas import tpu as pltpu

_CONV_LAYERS = (
    dict(cout=32, kh=8, kw=8, stride=4),
    dict(cout=64, kh=4, kw=4, stride=2),
    dict(cout=64, kh=3, kw=3, stride=1),
)

# Whole-forward footprint (weights + one image + output) is a few MiB; 32 MiB
# is generous headroom on every generation (v5e/v6e 128 MiB, v7x 64 MiB VMEM).
_VMEM_LIMIT_BYTES = 32 * 1024 * 1024


def _conv_geoms(h, w):
    """Static per-conv-layer geometry for a given input spatial size."""
    geoms = []
    for cfg in _CONV_LAYERS:
        ho = (h - cfg["kh"]) // cfg["stride"] + 1
        wo = (w - cfg["kw"]) // cfg["stride"] + 1
        geoms.append(dict(cfg, h_in=h, w_in=w, ho=ho, wo=wo))
        h, w = ho, wo
    return geoms, h, w


# ----------------------------------------------------------------------------
# One-time weight preparation (banded conv weights, bf16 cast, lane padding)
# ----------------------------------------------------------------------------
def _band_conv_weight(w_oihw, w_in, stride):
    """Fold the width window of conv-kernel-row i into one dense matmul.

    w_oihw: (Cout, Cin, kh, kw) float32 numpy array (PyTorch layout).
    Returns (kh, w_in*Cin, Wo*Cout) with
      band[i, (wo*stride + j)*Cin + c, wo*Cout + co] = w_oihw[co, c, i, j]
    so that for an activation slab A2d (rows = image rows, lane = w*Cin + c):
      out2d[ho, wo*Cout + co] = sum_i (A2d[ho*stride + i, :] @ band[i])[...]
    """
    cout, cin, kh, kw = w_oihw.shape
    wo_n = (w_in - kw) // stride + 1
    band = np.zeros((kh, w_in * cin, wo_n * cout), np.float32)
    for i in range(kh):
        for wo in range(wo_n):
            for j in range(kw):
                col = wo * stride + j
                band[i, col * cin:(col + 1) * cin,
                     wo * cout:(wo + 1) * cout] = w_oihw[:, :, i, j].T
    return band


def init_dqn_params(key, input_shape, n_actions):
    """PyTorch-layout parameters (same init scheme / shapes as nn.Module)."""
    c_in, h, w = input_shape
    ks = jax.random.split(key, 10)

    def u(k, shape, fan_in):
        bound = 1.0 / jnp.sqrt(float(fan_in))
        return jax.random.uniform(k, shape, jnp.float32, -bound, bound)

    p = {}
    p["w1"] = u(ks[0], (32, c_in, 8, 8), c_in * 8 * 8)
    p["b1"] = u(ks[1], (32,), c_in * 8 * 8)
    p["w2"] = u(ks[2], (64, 32, 4, 4), 32 * 4 * 4)
    p["b2"] = u(ks[3], (64,), 32 * 4 * 4)
    p["w3"] = u(ks[4], (64, 64, 3, 3), 64 * 3 * 3)
    p["b3"] = u(ks[5], (64,), 64 * 3 * 3)

    _, h3, w3 = _conv_geoms(h, w)
    conv_out = 64 * h3 * w3
    p["fc1_w"] = u(ks[6], (conv_out, 512), conv_out)
    p["fc1_b"] = u(ks[7], (512,), conv_out)
    p["fc2_w"] = u(ks[8], (512, n_actions), 512)
    p["fc2_b"] = u(ks[9], (n_actions,), 512)
    return p


def prepare_device_params(params, input_shape):
    """One-time banding / permutation / bf16 cast of all weights."""
    c_in, h, w = input_shape
    geoms, h3, w3 = _conv_geoms(h, w)

    dev = {"conv_w": [], "conv_b": []}
    for li, g in enumerate(geoms):
        w_np = np.asarray(params[f"w{li + 1}"], np.float32)
        b_np = np.asarray(params[f"b{li + 1}"], np.float32)
        dev["conv_w"].append(
            jnp.asarray(_band_conv_weight(w_np, g["w_in"], g["stride"]),
                        jnp.bfloat16))
        # bias broadcast along the width-major output lanes: lane = wo*Cout+co
        dev["conv_b"].append(
            jnp.asarray(np.tile(b_np, g["wo"])[None, :], jnp.float32))

    # fc1 expressed as a "full feature map" conv (kernel (h3,w3), stride 1).
    # PyTorch fc1 rows are NCHW-flatten ordered (c, h, w); re-band to (h, w, c).
    fc1_np = np.asarray(params["fc1_w"], np.float32)          # (64*h3*w3, 512)
    fc1_oihw = fc1_np.reshape(64, h3, w3, 512).transpose(3, 0, 1, 2)
    dev["fc1_w"] = jnp.asarray(_band_conv_weight(fc1_oihw, w3, 1), jnp.bfloat16)
    dev["fc1_b"] = jnp.asarray(
        np.asarray(params["fc1_b"], np.float32)[None, :], jnp.float32)

    n_actions = params["fc2_w"].shape[1]
    np2 = max(128, ((n_actions + 127) // 128) * 128)
    fc2_w = np.zeros((512, np2), np.float32)
    fc2_w[:, :n_actions] = np.asarray(params["fc2_w"], np.float32)
    fc2_b = np.zeros((1, np2), np.float32)
    fc2_b[0, :n_actions] = np.asarray(params["fc2_b"], np.float32)
    dev["fc2_w"] = jnp.asarray(fc2_w, jnp.bfloat16)
    dev["fc2_b"] = jnp.asarray(fc2_b, jnp.float32)
    return dev


# ----------------------------------------------------------------------------
# Fused forward kernel (one image per grid step; weights VMEM-resident)
# ----------------------------------------------------------------------------
def _band_conv_layer(a, w_ref, b_ref, *, kh, stride, h_out):
    """relu( sum_i (S_i @ a) @ w_ref[i] + b ) over a 2-D (H, W*C) slab.

    S_i is the 0/1 selector picking input rows {i, i+stride, ...}; realised as
    a tiny MXU matmul so no strided / sublane slicing is needed in-kernel.
    All matmul operands are bf16; accumulation, bias and ReLU are f32.
    """
    h_in = a.shape[0]
    a_bf = a.astype(jnp.bfloat16)
    acc = None
    for i in range(kh):
        if kh == 1 and stride == 1 and h_out == h_in:
            gathered = a_bf        # degenerate 1-row map (e.g. fc1 on a 1x1 map)
        else:
            r = jax.lax.broadcasted_iota(jnp.int32, (h_out, h_in), 0)
            c = jax.lax.broadcasted_iota(jnp.int32, (h_out, h_in), 1)
            sel = jnp.where(c == r * stride + i, 1.0, 0.0).astype(jnp.bfloat16)
            gathered = jnp.dot(
                sel, a_bf, preferred_element_type=jnp.float32
            ).astype(jnp.bfloat16)          # exact: one nonzero per row
        part = jnp.dot(gathered, w_ref[i], preferred_element_type=jnp.float32)
        acc = part if acc is None else acc + part
    return jnp.maximum(acc + b_ref[...], 0.0)


def _dqn_fused_kernel(x_ref, w1_ref, b1_ref, w2_ref, b2_ref, w3_ref, b3_ref,
                      wf1_ref, bf1_ref, wf2_ref, bf2_ref, o_ref, *,
                      layer_geoms):
    a = x_ref[0]                                   # (H0, W0*C0) bf16, one image
    w_refs = (w1_ref, w2_ref, w3_ref, wf1_ref)
    b_refs = (b1_ref, b2_ref, b3_ref, bf1_ref)
    for (kh, stride, h_out), w_ref, b_ref in zip(layer_geoms, w_refs, b_refs):
        a = _band_conv_layer(a, w_ref, b_ref, kh=kh, stride=stride,
                             h_out=h_out)
    # a: (1, 512) f32 after fc1 + ReLU.  fc2 epilogue (bias, no ReLU).
    q = jnp.dot(a.astype(jnp.bfloat16), wf2_ref[...],
                preferred_element_type=jnp.float32)
    o_ref[0] = q + bf2_ref[...]


def dqn_forward(dev_params, x, *, n_actions):
    """x: (N, C, H, W) float32 -> (N, n_actions) float32."""
    n, c, h, w = x.shape
    geoms, h3, _ = _conv_geoms(h, w)
    layer_geoms = tuple((g["kh"], g["stride"], g["ho"]) for g in geoms)
    layer_geoms += ((h3, 1, 1),)                   # fc1 as a full-map "conv"

    # Only forward-path glue: NCHW -> (N, H, W*C) bf16 slab of the tiny input.
    a0 = jnp.transpose(x, (0, 2, 3, 1)).reshape(n, h, w * c).astype(jnp.bfloat16)

    w1, w2, w3 = dev_params["conv_w"]
    b1, b2, b3 = dev_params["conv_b"]
    wf1, bf1 = dev_params["fc1_w"], dev_params["fc1_b"]
    wf2, bf2 = dev_params["fc2_w"], dev_params["fc2_b"]
    np2 = wf2.shape[1]

    kernel = functools.partial(_dqn_fused_kernel, layer_geoms=layer_geoms)
    out = pl.pallas_call(
        kernel,
        out_shape=jax.ShapeDtypeStruct((n, 1, np2), jnp.float32),
        grid=(n,),
        in_specs=[
            pl.BlockSpec((1, h, w * c), lambda b: (b, 0, 0)),  # one image / step
            # grid-invariant, VMEM-resident weights / biases:
            pl.BlockSpec(w1.shape, lambda b: (0, 0, 0)),
            pl.BlockSpec(b1.shape, lambda b: (0, 0)),
            pl.BlockSpec(w2.shape, lambda b: (0, 0, 0)),
            pl.BlockSpec(b2.shape, lambda b: (0, 0)),
            pl.BlockSpec(w3.shape, lambda b: (0, 0, 0)),
            pl.BlockSpec(b3.shape, lambda b: (0, 0)),
            pl.BlockSpec(wf1.shape, lambda b: (0, 0, 0)),
            pl.BlockSpec(bf1.shape, lambda b: (0, 0)),
            pl.BlockSpec(wf2.shape, lambda b: (0, 0)),
            pl.BlockSpec(bf2.shape, lambda b: (0, 0)),
        ],
        out_specs=pl.BlockSpec((1, 1, np2), lambda b: (b, 0, 0)),
        compiler_params=pltpu.CompilerParams(
            dimension_semantics=("parallel",),      # batch across TCs on v7x
            vmem_limit_bytes=_VMEM_LIMIT_BYTES,
        ),
    )(a0, w1, b1, w2, b2, w3, b3, wf1, bf1, wf2, bf2)
    return out[:, 0, :n_actions]


# ----------------------------------------------------------------------------
# Pure-JAX fp32 reference (matches the PyTorch module exactly)
# ----------------------------------------------------------------------------
def dqn_forward_ref(params, x):
    def conv(x, w, b, stride):
        y = jax.lax.conv_general_dilated(
            x, w, window_strides=(stride, stride), padding="VALID",
            dimension_numbers=("NCHW", "OIHW", "NCHW"))
        return jnp.maximum(y + b[None, :, None, None], 0.0)

    h = conv(x, params["w1"], params["b1"], 4)
    h = conv(h, params["w2"], params["b2"], 2)
    h = conv(h, params["w3"], params["b3"], 1)
    flat = h.reshape(h.shape[0], -1)               # NCHW flatten, as .view()
    h = jnp.maximum(flat @ params["fc1_w"] + params["fc1_b"], 0.0)
    return h @ params["fc2_w"] + params["fc2_b"]


if __name__ == "__main__":
    key = jax.random.PRNGKey(0)
    k_param, k_input = jax.random.split(key)

    # Smallest spatial size the 8/4 -> 4/2 -> 3/1 conv stack supports is 36:
    # 36 -> 8 -> 3 -> 1, so conv_out = 64.
    input_shape = (4, 36, 36)
    n_actions = 6
    batch = 2

    params = init_dqn_params(k_param, input_shape, n_actions)
    dev_params = prepare_device_params(params, input_shape)
    x = jax.random.normal(k_input, (batch, *input_shape), jnp.float32)

    fwd = jax.jit(functools.partial(dqn_forward, n_actions=n_actions))
    q = jax.block_until_ready(fwd(dev_params, x))

    assert q.shape == (batch, n_actions), q.shape
    assert q.dtype == jnp.float32, q.dtype

    # bf16-tolerant correctness check against the fp32 reference.
    q_ref = dqn_forward_ref(params, x)
    err = float(jnp.max(jnp.abs(q - q_ref)))
    assert err < 5e-2, f"max abs error vs reference: {err}"
    print("KERNEL_OK")
</pallas_src>

<mosaic_0001>
module attributes {stable_mosaic.version = 11 : i64} {
  func.func @_dqn_fused_kernel(%arg0: i32, %arg1: memref<1x36x144xbf16, #tpu.memory_space<vmem>>, %arg2: memref<8x144x256xbf16, #tpu.memory_space<vmem>>, %arg3: memref<1x256xf32, #tpu.memory_space<vmem>>, %arg4: memref<4x256x192xbf16, #tpu.memory_space<vmem>>, %arg5: memref<1x192xf32, #tpu.memory_space<vmem>>, %arg6: memref<3x192x64xbf16, #tpu.memory_space<vmem>>, %arg7: memref<1x64xf32, #tpu.memory_space<vmem>>, %arg8: memref<1x64x512xbf16, #tpu.memory_space<vmem>>, %arg9: memref<1x512xf32, #tpu.memory_space<vmem>>, %arg10: memref<512x128xbf16, #tpu.memory_space<vmem>>, %arg11: memref<1x128xf32, #tpu.memory_space<vmem>>, %arg12: memref<1x1x128xf32, #tpu.memory_space<vmem>>) attributes {dimension_semantics = [#tpu.dimension_semantics<parallel>], iteration_bounds = array<i64: 2>, scalar_prefetch = 0 : i64, scratch_operands = 0 : i64, tpu.core_type = #tpu.core_type<tc>, window_params = [{transform_indices = @transform_0, window_bounds = array<i64: 1, 36, 144>}, {pipeline_mode = #tpu.pipeline_mode<synchronous>, transform_indices = @transform_1, window_bounds = array<i64: 8, 144, 256>}, {pipeline_mode = #tpu.pipeline_mode<synchronous>, transform_indices = @transform_2, window_bounds = array<i64: 1, 256>}, {pipeline_mode = #tpu.pipeline_mode<synchronous>, transform_indices = @transform_3, window_bounds = array<i64: 4, 256, 192>}, {pipeline_mode = #tpu.pipeline_mode<synchronous>, transform_indices = @transform_4, window_bounds = array<i64: 1, 192>}, {pipeline_mode = #tpu.pipeline_mode<synchronous>, transform_indices = @transform_5, window_bounds = array<i64: 3, 192, 64>}, {pipeline_mode = #tpu.pipeline_mode<synchronous>, transform_indices = @transform_6, window_bounds = array<i64: 1, 64>}, {pipeline_mode = #tpu.pipeline_mode<synchronous>, transform_indices = @transform_7, window_bounds = array<i64: 1, 64, 512>}, {pipeline_mode = #tpu.pipeline_mode<synchronous>, transform_indices = @transform_8, window_bounds = array<i64: 1, 512>}, {pipeline_mode = #tpu.pipeline_mode<synchronous>, transform_indices = @transform_9, window_bounds = array<i64: 512, 128>}, {pipeline_mode = #tpu.pipeline_mode<synchronous>, transform_indices = @transform_10, window_bounds = array<i64: 1, 128>}, {transform_indices = @transform_11, window_bounds = array<i64: 1, 1, 128>}]} {
    %c0 = arith.constant 0 : index
    %c0_0 = arith.constant 0 : index
    %c0_1 = arith.constant 0 : index
    %0 = vector.load %arg1[%c0, %c0_0, %c0_1] : memref<1x36x144xbf16, #tpu.memory_space<vmem>>, vector<1x36x144xbf16>
    %1 = vector.shape_cast %0 : vector<1x36x144xbf16> to vector<36x144xbf16>
    %2 = tpu.iota {dimensions = array<i32: 0>} : vector<8x36xi32>
    %3 = tpu.iota {dimensions = array<i32: 1>} : vector<8x36xi32>
    %c4_i32 = arith.constant 4 : i32
    %4 = vector.broadcast %c4_i32 : i32 to vector<8x36xi32>
    %5 = arith.muli %2, %4 : vector<8x36xi32>
    %c0_i32 = arith.constant 0 : i32
    %6 = vector.broadcast %c0_i32 : i32 to vector<8x36xi32>
    %7 = arith.addi %5, %6 : vector<8x36xi32>
    %8 = arith.cmpi eq, %3, %7 : vector<8x36xi32>
    %cst = arith.constant 1.000000e+00 : f32
    %cst_2 = arith.constant 0.000000e+00 : f32
    %9 = vector.broadcast %cst : f32 to vector<8x36xf32>
    %10 = vector.broadcast %cst_2 : f32 to vector<8x36xf32>
    %11 = arith.select %8, %9, %10 : vector<8x36xi1>, vector<8x36xf32>
    %12 = arith.truncf %11 : vector<8x36xf32> to vector<8x36xbf16>
    %cst_3 = arith.constant dense<0.000000e+00> : vector<8x144xf32>
    %13 = tpu.matmul %12, %1, %cst_3 {dimension_numbers = #tpu.dot_dimension_numbers<[1], [0], [0], [1], [0, 0, 1, 1], [], []>} : vector<8x36xbf16>, vector<36x144xbf16>, vector<8x144xf32> -> vector<8x144xf32>
    %14 = arith.truncf %13 : vector<8x144xf32> to vector<8x144xbf16>
    %c0_4 = arith.constant 0 : index
    %c0_5 = arith.constant 0 : index
    %c0_6 = arith.constant 0 : index
    %15 = vector.load %arg2[%c0_4, %c0_5, %c0_6] : memref<8x144x256xbf16, #tpu.memory_space<vmem>>, vector<1x144x256xbf16>
    %16 = vector.shape_cast %15 : vector<1x144x256xbf16> to vector<144x256xbf16>
    %cst_7 = arith.constant dense<0.000000e+00> : vector<8x256xf32>
    %17 = tpu.matmul %14, %16, %cst_7 {dimension_numbers = #tpu.dot_dimension_numbers<[1], [0], [0], [1], [0, 0, 1, 1], [], []>} : vector<8x144xbf16>, vector<144x256xbf16>, vector<8x256xf32> -> vector<8x256xf32>
    %18 = tpu.iota {dimensions = array<i32: 0>} : vector<8x36xi32>
    %19 = tpu.iota {dimensions = array<i32: 1>} : vector<8x36xi32>
    %c4_i32_8 = arith.constant 4 : i32
    %20 = vector.broadcast %c4_i32_8 : i32 to vector<8x36xi32>
    %21 = arith.muli %18, %20 : vector<8x36xi32>
    %c1_i32 = arith.constant 1 : i32
    %22 = vector.broadcast %c1_i32 : i32 to vector<8x36xi32>
    %23 = arith.addi %21, %22 : vector<8x36xi32>
    %24 = arith.cmpi eq, %19, %23 : vector<8x36xi32>
    %cst_9 = arith.constant 1.000000e+00 : f32
    %cst_10 = arith.constant 0.000000e+00 : f32
    %25 = vector.broadcast %cst_9 : f32 to vector<8x36xf32>
    %26 = vector.broadcast %cst_10 : f32 to vector<8x36xf32>
    %27 = arith.select %24, %25, %26 : vector<8x36xi1>, vector<8x36xf32>
    %28 = arith.truncf %27 : vector<8x36xf32> to vector<8x36xbf16>
    %cst_11 = arith.constant dense<0.000000e+00> : vector<8x144xf32>
    %29 = tpu.matmul %28, %1, %cst_11 {dimension_numbers = #tpu.dot_dimension_numbers<[1], [0], [0], [1], [0, 0, 1, 1], [], []>} : vector<8x36xbf16>, vector<36x144xbf16>, vector<8x144xf32> -> vector<8x144xf32>
    %30 = arith.truncf %29 : vector<8x144xf32> to vector<8x144xbf16>
    %c1 = arith.constant 1 : index
    %c0_12 = arith.constant 0 : index
    %c0_13 = arith.constant 0 : index
    %31 = vector.load %arg2[%c1, %c0_12, %c0_13] : memref<8x144x256xbf16, #tpu.memory_space<vmem>>, vector<1x144x256xbf16>
    %32 = vector.shape_cast %31 : vector<1x144x256xbf16> to vector<144x256xbf16>
    %cst_14 = arith.constant dense<0.000000e+00> : vector<8x256xf32>
    %33 = tpu.matmul %30, %32, %cst_14 {dimension_numbers = #tpu.dot_dimension_numbers<[1], [0], [0], [1], [0, 0, 1, 1], [], []>} : vector<8x144xbf16>, vector<144x256xbf16>, vector<8x256xf32> -> vector<8x256xf32>
    %34 = arith.addf %17, %33 : vector<8x256xf32>
    %35 = tpu.iota {dimensions = array<i32: 0>} : vector<8x36xi32>
    %36 = tpu.iota {dimensions = array<i32: 1>} : vector<8x36xi32>
    %c4_i32_15 = arith.constant 4 : i32
    %37 = vector.broadcast %c4_i32_15 : i32 to vector<8x36xi32>
    %38 = arith.muli %35, %37 : vector<8x36xi32>
    %c2_i32 = arith.constant 2 : i32
    %39 = vector.broadcast %c2_i32 : i32 to vector<8x36xi32>
    %40 = arith.addi %38, %39 : vector<8x36xi32>
    %41 = arith.cmpi eq, %36, %40 : vector<8x36xi32>
    %cst_16 = arith.constant 1.000000e+00 : f32
    %cst_17 = arith.constant 0.000000e+00 : f32
    %42 = vector.broadcast %cst_16 : f32 to vector<8x36xf32>
    %43 = vector.broadcast %cst_17 : f32 to vector<8x36xf32>
    %44 = arith.select %41, %42, %43 : vector<8x36xi1>, vector<8x36xf32>
    %45 = arith.truncf %44 : vector<8x36xf32> to vector<8x36xbf16>
    %cst_18 = arith.constant dense<0.000000e+00> : vector<8x144xf32>
    %46 = tpu.matmul %45, %1, %cst_18 {dimension_numbers = #tpu.dot_dimension_numbers<[1], [0], [0], [1], [0, 0, 1, 1], [], []>} : vector<8x36xbf16>, vector<36x144xbf16>, vector<8x144xf32> -> vector<8x144xf32>
    %47 = arith.truncf %46 : vector<8x144xf32> to vector<8x144xbf16>
    %c2 = arith.constant 2 : index
    %c0_19 = arith.constant 0 : index
    %c0_20 = arith.constant 0 : index
    %48 = vector.load %arg2[%c2, %c0_19, %c0_20] : memref<8x144x256xbf16, #tpu.memory_space<vmem>>, vector<1x144x256xbf16>
    %49 = vector.shape_cast %48 : vector<1x144x256xbf16> to vector<144x256xbf16>
    %cst_21 = arith.constant dense<0.000000e+00> : vector<8x256xf32>
    %50 = tpu.matmul %47, %49, %cst_21 {dimension_numbers = #tpu.dot_dimension_numbers<[1], [0], [0], [1], [0, 0, 1, 1], [], []>} : vector<8x144xbf16>, vector<144x256xbf16>, vector<8x256xf32> -> vector<8x256xf32>
    %51 = arith.addf %34, %50 : vector<8x256xf32>
    %52 = tpu.iota {dimensions = array<i32: 0>} : vector<8x36xi32>
    %53 = tpu.iota {dimensions = array<i32: 1>} : vector<8x36xi32>
    %c4_i32_22 = arith.constant 4 : i32
    %54 = vector.broadcast %c4_i32_22 : i32 to vector<8x36xi32>
    %55 = arith.muli %52, %54 : vector<8x36xi32>
    %c3_i32 = arith.constant 3 : i32
    %56 = vector.broadcast %c3_i32 : i32 to vector<8x36xi32>
    %57 = arith.addi %55, %56 : vector<8x36xi32>
    %58 = arith.cmpi eq, %53, %57 : vector<8x36xi32>
    %cst_23 = arith.constant 1.000000e+00 : f32
    %cst_24 = arith.constant 0.000000e+00 : f32
    %59 = vector.broadcast %cst_23 : f32 to vector<8x36xf32>
    %60 = vector.broadcast %cst_24 : f32 to vector<8x36xf32>
    %61 = arith.select %58, %59, %60 : vector<8x36xi1>, vector<8x36xf32>
    %62 = arith.truncf %61 : vector<8x36xf32> to vector<8x36xbf16>
    %cst_25 = arith.constant dense<0.000000e+00> : vector<8x144xf32>
    %63 = tpu.matmul %62, %1, %cst_25 {dimension_numbers = #tpu.dot_dimension_numbers<[1], [0], [0], [1], [0, 0, 1, 1], [], []>} : vector<8x36xbf16>, vector<36x144xbf16>, vector<8x144xf32> -> vector<8x144xf32>
    %64 = arith.truncf %63 : vector<8x144xf32> to vector<8x144xbf16>
    %c3 = arith.constant 3 : index
    %c0_26 = arith.constant 0 : index
    %c0_27 = arith.constant 0 : index
    %65 = vector.load %arg2[%c3, %c0_26, %c0_27] : memref<8x144x256xbf16, #tpu.memory_space<vmem>>, vector<1x144x256xbf16>
    %66 = vector.shape_cast %65 : vector<1x144x256xbf16> to vector<144x256xbf16>
    %cst_28 = arith.constant dense<0.000000e+00> : vector<8x256xf32>
    %67 = tpu.matmul %64, %66, %cst_28 {dimension_numbers = #tpu.dot_dimension_numbers<[1], [0], [0], [1], [0, 0, 1, 1], [], []>} : vector<8x144xbf16>, vector<144x256xbf16>, vector<8x256xf32> -> vector<8x256xf32>
    %68 = arith.addf %51, %67 : vector<8x256xf32>
    %69 = tpu.iota {dimensions = array<i32: 0>} : vector<8x36xi32>
    %70 = tpu.iota {dimensions = array<i32: 1>} : vector<8x36xi32>
    %c4_i32_29 = arith.constant 4 : i32
    %71 = vector.broadcast %c4_i32_29 : i32 to vector<8x36xi32>
    %72 = arith.muli %69, %71 : vector<8x36xi32>
    %c4_i32_30 = arith.constant 4 : i32
    %73 = vector.broadcast %c4_i32_30 : i32 to vector<8x36xi32>
    %74 = arith.addi %72, %73 : vector<8x36xi32>
    %75 = arith.cmpi eq, %70, %74 : vector<8x36xi32>
    %cst_31 = arith.constant 1.000000e+00 : f32
    %cst_32 = arith.constant 0.000000e+00 : f32
    %76 = vector.broadcast %cst_31 : f32 to vector<8x36xf32>
    %77 = vector.broadcast %cst_32 : f32 to vector<8x36xf32>
    %78 = arith.select %75, %76, %77 : vector<8x36xi1>, vector<8x36xf32>
    %79 = arith.truncf %78 : vector<8x36xf32> to vector<8x36xbf16>
    %cst_33 = arith.constant dense<0.000000e+00> : vector<8x144xf32>
    %80 = tpu.matmul %79, %1, %cst_33 {dimension_numbers = #tpu.dot_dimension_numbers<[1], [0], [0], [1], [0, 0, 1, 1], [], []>} : vector<8x36xbf16>, vector<36x144xbf16>, vector<8x144xf32> -> vector<8x144xf32>
    %81 = arith.truncf %80 : vector<8x144xf32> to vector<8x144xbf16>
    %c4 = arith.constant 4 : index
    %c0_34 = arith.constant 0 : index
    %c0_35 = arith.constant 0 : index
    %82 = vector.load %arg2[%c4, %c0_34, %c0_35] : memref<8x144x256xbf16, #tpu.memory_space<vmem>>, vector<1x144x256xbf16>
    %83 = vector.shape_cast %82 : vector<1x144x256xbf16> to vector<144x256xbf16>
    %cst_36 = arith.constant dense<0.000000e+00> : vector<8x256xf32>
    %84 = tpu.matmul %81, %83, %cst_36 {dimension_numbers = #tpu.dot_dimension_numbers<[1], [0], [0], [1], [0, 0, 1, 1], [], []>} : vector<8x144xbf16>, vector<144x256xbf16>, vector<8x256xf32> -> vector<8x256xf32>
    %85 = arith.addf %68, %84 : vector<8x256xf32>
    %86 = tpu.iota {dimensions = array<i32: 0>} : vector<8x36xi32>
    %87 = tpu.iota {dimensions = array<i32: 1>} : vector<8x36xi32>
    %c4_i32_37 = arith.constant 4 : i32
    %88 = vector.broadcast %c4_i32_37 : i32 to vector<8x36xi32>
    %89 = arith.muli %86, %88 : vector<8x36xi32>
    %c5_i32 = arith.constant 5 : i32
    %90 = vector.broadcast %c5_i32 : i32 to vector<8x36xi32>
    %91 = arith.addi %89, %90 : vector<8x36xi32>
    %92 = arith.cmpi eq, %87, %91 : vector<8x36xi32>
    %cst_38 = arith.constant 1.000000e+00 : f32
    %cst_39 = arith.constant 0.000000e+00 : f32
    %93 = vector.broadcast %cst_38 : f32 to vector<8x36xf32>
    %94 = vector.broadcast %cst_39 : f32 to vector<8x36xf32>
    %95 = arith.select %92, %93, %94 : vector<8x36xi1>, vector<8x36xf32>
    %96 = arith.truncf %95 : vector<8x36xf32> to vector<8x36xbf16>
    %cst_40 = arith.constant dense<0.000000e+00> : vector<8x144xf32>
    %97 = tpu.matmul %96, %1, %cst_40 {dimension_numbers = #tpu.dot_dimension_numbers<[1], [0], [0], [1], [0, 0, 1, 1], [], []>} : vector<8x36xbf16>, vector<36x144xbf16>, vector<8x144xf32> -> vector<8x144xf32>
    %98 = arith.truncf %97 : vector<8x144xf32> to vector<8x144xbf16>
    %c5 = arith.constant 5 : index
    %c0_41 = arith.constant 0 : index
    %c0_42 = arith.constant 0 : index
    %99 = vector.load %arg2[%c5, %c0_41, %c0_42] : memref<8x144x256xbf16, #tpu.memory_space<vmem>>, vector<1x144x256xbf16>
    %100 = vector.shape_cast %99 : vector<1x144x256xbf16> to vector<144x256xbf16>
    %cst_43 = arith.constant dense<0.000000e+00> : vector<8x256xf32>
    %101 = tpu.matmul %98, %100, %cst_43 {dimension_numbers = #tpu.dot_dimension_numbers<[1], [0], [0], [1], [0, 0, 1, 1], [], []>} : vector<8x144xbf16>, vector<144x256xbf16>, vector<8x256xf32> -> vector<8x256xf32>
    %102 = arith.addf %85, %101 : vector<8x256xf32>
    %103 = tpu.iota {dimensions = array<i32: 0>} : vector<8x36xi32>
    %104 = tpu.iota {dimensions = array<i32: 1>} : vector<8x36xi32>
    %c4_i32_44 = arith.constant 4 : i32
    %105 = vector.broadcast %c4_i32_44 : i32 to vector<8x36xi32>
    %106 = arith.muli %103, %105 : vector<8x36xi32>
    %c6_i32 = arith.constant 6 : i32
    %107 = vector.broadcast %c6_i32 : i32 to vector<8x36xi32>
    %108 = arith.addi %106, %107 : vector<8x36xi32>
    %109 = arith.cmpi eq, %104, %108 : vector<8x36xi32>
    %cst_45 = arith.constant 1.000000e+00 : f32
    %cst_46 = arith.constant 0.000000e+00 : f32
    %110 = vector.broadcast %cst_45 : f32 to vector<8x36xf32>
    %111 = vector.broadcast %cst_46 : f32 to vector<8x36xf32>
    %112 = arith.select %109, %110, %111 : vector<8x36xi1>, vector<8x36xf32>
    %113 = arith.truncf %112 : vector<8x36xf32> to vector<8x36xbf16>
    %cst_47 = arith.constant dense<0.000000e+00> : vector<8x144xf32>
    %114 = tpu.matmul %113, %1, %cst_47 {dimension_numbers = #tpu.dot_dimension_numbers<[1], [0], [0], [1], [0, 0, 1, 1], [], []>} : vector<8x36xbf16>, vector<36x144xbf16>, vector<8x144xf32> -> vector<8x144xf32>
    %115 = arith.truncf %114 : vector<8x144xf32> to vector<8x144xbf16>
    %c6 = arith.constant 6 : index
    %c0_48 = arith.constant 0 : index
    %c0_49 = arith.constant 0 : index
    %116 = vector.load %arg2[%c6, %c0_48, %c0_49] : memref<8x144x256xbf16, #tpu.memory_space<vmem>>, vector<1x144x256xbf16>
    %117 = vector.shape_cast %116 : vector<1x144x256xbf16> to vector<144x256xbf16>
    %cst_50 = arith.constant dense<0.000000e+00> : vector<8x256xf32>
    %118 = tpu.matmul %115, %117, %cst_50 {dimension_numbers = #tpu.dot_dimension_numbers<[1], [0], [0], [1], [0, 0, 1, 1], [], []>} : vector<8x144xbf16>, vector<144x256xbf16>, vector<8x256xf32> -> vector<8x256xf32>
    %119 = arith.addf %102, %118 : vector<8x256xf32>
    %120 = tpu.iota {dimensions = array<i32: 0>} : vector<8x36xi32>
    %121 = tpu.iota {dimensions = array<i32: 1>} : vector<8x36xi32>
    %c4_i32_51 = arith.constant 4 : i32
    %122 = vector.broadcast %c4_i32_51 : i32 to vector<8x36xi32>
    %123 = arith.muli %120, %122 : vector<8x36xi32>
    %c7_i32 = arith.constant 7 : i32
    %124 = vector.broadcast %c7_i32 : i32 to vector<8x36xi32>
    %125 = arith.addi %123, %124 : vector<8x36xi32>
    %126 = arith.cmpi eq, %121, %125 : vector<8x36xi32>
    %cst_52 = arith.constant 1.000000e+00 : f32
    %cst_53 = arith.constant 0.000000e+00 : f32
    %127 = vector.broadcast %cst_52 : f32 to vector<8x36xf32>
    %128 = vector.broadcast %cst_53 : f32 to vector<8x36xf32>
    %129 = arith.select %126, %127, %128 : vector<8x36xi1>, vector<8x36xf32>
    %130 = arith.truncf %129 : vector<8x36xf32> to vector<8x36xbf16>
    %cst_54 = arith.constant dense<0.000000e+00> : vector<8x144xf32>
    %131 = tpu.matmul %130, %1, %cst_54 {dimension_numbers = #tpu.dot_dimension_numbers<[1], [0], [0], [1], [0, 0, 1, 1], [], []>} : vector<8x36xbf16>, vector<36x144xbf16>, vector<8x144xf32> -> vector<8x144xf32>
    %132 = arith.truncf %131 : vector<8x144xf32> to vector<8x144xbf16>
    %c7 = arith.constant 7 : index
    %c0_55 = arith.constant 0 : index
    %c0_56 = arith.constant 0 : index
    %133 = vector.load %arg2[%c7, %c0_55, %c0_56] : memref<8x144x256xbf16, #tpu.memory_space<vmem>>, vector<1x144x256xbf16>
    %134 = vector.shape_cast %133 : vector<1x144x256xbf16> to vector<144x256xbf16>
    %cst_57 = arith.constant dense<0.000000e+00> : vector<8x256xf32>
    %135 = tpu.matmul %132, %134, %cst_57 {dimension_numbers = #tpu.dot_dimension_numbers<[1], [0], [0], [1], [0, 0, 1, 1], [], []>} : vector<8x144xbf16>, vector<144x256xbf16>, vector<8x256xf32> -> vector<8x256xf32>
    %136 = arith.addf %119, %135 : vector<8x256xf32>
    %c0_58 = arith.constant 0 : index
    %c0_59 = arith.constant 0 : index
    %137 = vector.load %arg3[%c0_58, %c0_59] : memref<1x256xf32, #tpu.memory_space<vmem>>, vector<1x256xf32>
    %138 = vector.broadcast %137 : vector<1x256xf32> to vector<8x256xf32>
    %139 = arith.addf %136, %138 : vector<8x256xf32>
    %cst_60 = arith.constant 0.000000e+00 : f32
    %140 = vector.broadcast %cst_60 : f32 to vector<8x256xf32>
    %141 = arith.maximumf %139, %140 : vector<8x256xf32>
    %142 = arith.truncf %141 : vector<8x256xf32> to vector<8x256xbf16>
    %143 = tpu.iota {dimensions = array<i32: 0>} : vector<3x8xi32>
    %144 = tpu.iota {dimensions = array<i32: 1>} : vector<3x8xi32>
    %c2_i32_61 = arith.constant 2 : i32
    %145 = vector.broadcast %c2_i32_61 : i32 to vector<3x8xi32>
    %146 = arith.muli %143, %145 : vector<3x8xi32>
    %c0_i32_62 = arith.constant 0 : i32
    %147 = vector.broadcast %c0_i32_62 : i32 to vector<3x8xi32>
    %148 = arith.addi %146, %147 : vector<3x8xi32>
    %149 = arith.cmpi eq, %144, %148 : vector<3x8xi32>
    %cst_63 = arith.constant 1.000000e+00 : f32
    %cst_64 = arith.constant 0.000000e+00 : f32
    %150 = vector.broadcast %cst_63 : f32 to vector<3x8xf32>
    %151 = vector.broadcast %cst_64 : f32 to vector<3x8xf32>
    %152 = arith.select %149, %150, %151 : vector<3x8xi1>, vector<3x8xf32>
    %153 = arith.truncf %152 : vector<3x8xf32> to vector<3x8xbf16>
    %cst_65 = arith.constant dense<0.000000e+00> : vector<3x256xf32>
    %154 = tpu.matmul %153, %142, %cst_65 {dimension_numbers = #tpu.dot_dimension_numbers<[1], [0], [0], [1], [0, 0, 1, 1], [], []>} : vector<3x8xbf16>, vector<8x256xbf16>, vector<3x256xf32> -> vector<3x256xf32>
    %155 = arith.truncf %154 : vector<3x256xf32> to vector<3x256xbf16>
    %c0_66 = arith.constant 0 : index
    %c0_67 = arith.constant 0 : index
    %c0_68 = arith.constant 0 : index
    %156 = vector.load %arg4[%c0_66, %c0_67, %c0_68] : memref<4x256x192xbf16, #tpu.memory_space<vmem>>, vector<1x256x192xbf16>
    %157 = vector.shape_cast %156 : vector<1x256x192xbf16> to vector<256x192xbf16>
    %cst_69 = arith.constant dense<0.000000e+00> : vector<3x192xf32>
    %158 = tpu.matmul %155, %157, %cst_69 {dimension_numbers = #tpu.dot_dimension_numbers<[1], [0], [0], [1], [0, 0, 1, 1], [], []>} : vector<3x256xbf16>, vector<256x192xbf16>, vector<3x192xf32> -> vector<3x192xf32>
    %159 = tpu.iota {dimensions = array<i32: 0>} : vector<3x8xi32>
    %160 = tpu.iota {dimensions = array<i32: 1>} : vector<3x8xi32>
    %c2_i32_70 = arith.constant 2 : i32
    %161 = vector.broadcast %c2_i32_70 : i32 to vector<3x8xi32>
    %162 = arith.muli %159, %161 : vector<3x8xi32>
    %c1_i32_71 = arith.constant 1 : i32
    %163 = vector.broadcast %c1_i32_71 : i32 to vector<3x8xi32>
    %164 = arith.addi %162, %163 : vector<3x8xi32>
    %165 = arith.cmpi eq, %160, %164 : vector<3x8xi32>
    %cst_72 = arith.constant 1.000000e+00 : f32
    %cst_73 = arith.constant 0.000000e+00 : f32
    %166 = vector.broadcast %cst_72 : f32 to vector<3x8xf32>
    %167 = vector.broadcast %cst_73 : f32 to vector<3x8xf32>
    %168 = arith.select %165, %166, %167 : vector<3x8xi1>, vector<3x8xf32>
    %169 = arith.truncf %168 : vector<3x8xf32> to vector<3x8xbf16>
    %cst_74 = arith.constant dense<0.000000e+00> : vector<3x256xf32>
    %170 = tpu.matmul %169, %142, %cst_74 {dimension_numbers = #tpu.dot_dimension_numbers<[1], [0], [0], [1], [0, 0, 1, 1], [], []>} : vector<3x8xbf16>, vector<8x256xbf16>, vector<3x256xf32> -> vector<3x256xf32>
    %171 = arith.truncf %170 : vector<3x256xf32> to vector<3x256xbf16>
    %c1_75 = arith.constant 1 : index
    %c0_76 = arith.constant 0 : index
    %c0_77 = arith.constant 0 : index
    %172 = vector.load %arg4[%c1_75, %c0_76, %c0_77] : memref<4x256x192xbf16, #tpu.memory_space<vmem>>, vector<1x256x192xbf16>
    %173 = vector.shape_cast %172 : vector<1x256x192xbf16> to vector<256x192xbf16>
    %cst_78 = arith.constant dense<0.000000e+00> : vector<3x192xf32>
    %174 = tpu.matmul %171, %173, %cst_78 {dimension_numbers = #tpu.dot_dimension_numbers<[1], [0], [0], [1], [0, 0, 1, 1], [], []>} : vector<3x256xbf16>, vector<256x192xbf16>, vector<3x192xf32> -> vector<3x192xf32>
    %175 = arith.addf %158, %174 : vector<3x192xf32>
    %176 = tpu.iota {dimensions = array<i32: 0>} : vector<3x8xi32>
    %177 = tpu.iota {dimensions = array<i32: 1>} : vector<3x8xi32>
    %c2_i32_79 = arith.constant 2 : i32
    %178 = vector.broadcast %c2_i32_79 : i32 to vector<3x8xi32>
    %179 = arith.muli %176, %178 : vector<3x8xi32>
    %c2_i32_80 = arith.constant 2 : i32
    %180 = vector.broadcast %c2_i32_80 : i32 to vector<3x8xi32>
    %181 = arith.addi %179, %180 : vector<3x8xi32>
    %182 = arith.cmpi eq, %177, %181 : vector<3x8xi32>
    %cst_81 = arith.constant 1.000000e+00 : f32
    %cst_82 = arith.constant 0.000000e+00 : f32
    %183 = vector.broadcast %cst_81 : f32 to vector<3x8xf32>
    %184 = vector.broadcast %cst_82 : f32 to vector<3x8xf32>
    %185 = arith.select %182, %183, %184 : vector<3x8xi1>, vector<3x8xf32>
    %186 = arith.truncf %185 : vector<3x8xf32> to vector<3x8xbf16>
    %cst_83 = arith.constant dense<0.000000e+00> : vector<3x256xf32>
    %187 = tpu.matmul %186, %142, %cst_83 {dimension_numbers = #tpu.dot_dimension_numbers<[1], [0], [0], [1], [0, 0, 1, 1], [], []>} : vector<3x8xbf16>, vector<8x256xbf16>, vector<3x256xf32> -> vector<3x256xf32>
    %188 = arith.truncf %187 : vector<3x256xf32> to vector<3x256xbf16>
    %c2_84 = arith.constant 2 : index
    %c0_85 = arith.constant 0 : index
    %c0_86 = arith.constant 0 : index
    %189 = vector.load %arg4[%c2_84, %c0_85, %c0_86] : memref<4x256x192xbf16, #tpu.memory_space<vmem>>, vector<1x256x192xbf16>
    %190 = vector.shape_cast %189 : vector<1x256x192xbf16> to vector<256x192xbf16>
    %cst_87 = arith.constant dense<0.000000e+00> : vector<3x192xf32>
    %191 = tpu.matmul %188, %190, %cst_87 {dimension_numbers = #tpu.dot_dimension_numbers<[1], [0], [0], [1], [0, 0, 1, 1], [], []>} : vector<3x256xbf16>, vector<256x192xbf16>, vector<3x192xf32> -> vector<3x192xf32>
    %192 = arith.addf %175, %191 : vector<3x192xf32>
    %193 = tpu.iota {dimensions = array<i32: 0>} : vector<3x8xi32>
    %194 = tpu.iota {dimensions = array<i32: 1>} : vector<3x8xi32>
    %c2_i32_88 = arith.constant 2 : i32
    %195 = vector.broadcast %c2_i32_88 : i32 to vector<3x8xi32>
    %196 = arith.muli %193, %195 : vector<3x8xi32>
    %c3_i32_89 = arith.constant 3 : i32
    %197 = vector.broadcast %c3_i32_89 : i32 to vector<3x8xi32>
    %198 = arith.addi %196, %197 : vector<3x8xi32>
    %199 = arith.cmpi eq, %194, %198 : vector<3x8xi32>
    %cst_90 = arith.constant 1.000000e+00 : f32
    %cst_91 = arith.constant 0.000000e+00 : f32
    %200 = vector.broadcast %cst_90 : f32 to vector<3x8xf32>
    %201 = vector.broadcast %cst_91 : f32 to vector<3x8xf32>
    %202 = arith.select %199, %200, %201 : vector<3x8xi1>, vector<3x8xf32>
    %203 = arith.truncf %202 : vector<3x8xf32> to vector<3x8xbf16>
    %cst_92 = arith.constant dense<0.000000e+00> : vector<3x256xf32>
    %204 = tpu.matmul %203, %142, %cst_92 {dimension_numbers = #tpu.dot_dimension_numbers<[1], [0], [0], [1], [0, 0, 1, 1], [], []>} : vector<3x8xbf16>, vector<8x256xbf16>, vector<3x256xf32> -> vector<3x256xf32>
    %205 = arith.truncf %204 : vector<3x256xf32> to vector<3x256xbf16>
    %c3_93 = arith.constant 3 : index
    %c0_94 = arith.constant 0 : index
    %c0_95 = arith.constant 0 : index
    %206 = vector.load %arg4[%c3_93, %c0_94, %c0_95] : memref<4x256x192xbf16, #tpu.memory_space<vmem>>, vector<1x256x192xbf16>
    %207 = vector.shape_cast %206 : vector<1x256x192xbf16> to vector<256x192xbf16>
    %cst_96 = arith.constant dense<0.000000e+00> : vector<3x192xf32>
    %208 = tpu.matmul %205, %207, %cst_96 {dimension_numbers = #tpu.dot_dimension_numbers<[1], [0], [0], [1], [0, 0, 1, 1], [], []>} : vector<3x256xbf16>, vector<256x192xbf16>, vector<3x192xf32> -> vector<3x192xf32>
    %209 = arith.addf %192, %208 : vector<3x192xf32>
    %c0_97 = arith.constant 0 : index
    %c0_98 = arith.constant 0 : index
    %210 = vector.load %arg5[%c0_97, %c0_98] : memref<1x192xf32, #tpu.memory_space<vmem>>, vector<1x192xf32>
    %211 = vector.broadcast %210 : vector<1x192xf32> to vector<3x192xf32>
    %212 = arith.addf %209, %211 : vector<3x192xf32>
    %cst_99 = arith.constant 0.000000e+00 : f32
    %213 = vector.broadcast %cst_99 : f32 to vector<3x192xf32>
    %214 = arith.maximumf %212, %213 : vector<3x192xf32>
    %215 = arith.truncf %214 : vector<3x192xf32> to vector<3x192xbf16>
    %216 = tpu.iota {dimensions = array<i32: 0>} : vector<1x3xi32>
    %217 = tpu.iota {dimensions = array<i32: 1>} : vector<1x3xi32>
    %c1_i32_100 = arith.constant 1 : i32
    %218 = vector.broadcast %c1_i32_100 : i32 to vector<1x3xi32>
    %219 = arith.muli %216, %218 : vector<1x3xi32>
    %c0_i32_101 = arith.constant 0 : i32
    %220 = vector.broadcast %c0_i32_101 : i32 to vector<1x3xi32>
    %221 = arith.addi %219, %220 : vector<1x3xi32>
    %222 = arith.cmpi eq, %217, %221 : vector<1x3xi32>
    %cst_102 = arith.constant 1.000000e+00 : f32
    %cst_103 = arith.constant 0.000000e+00 : f32
    %223 = vector.broadcast %cst_102 : f32 to vector<1x3xf32>
    %224 = vector.broadcast %cst_103 : f32 to vector<1x3xf32>
    %225 = arith.select %222, %223, %224 : vector<1x3xi1>, vector<1x3xf32>
    %226 = arith.truncf %225 : vector<1x3xf32> to vector<1x3xbf16>
    %cst_104 = arith.constant dense<0.000000e+00> : vector<1x192xf32>
    %227 = tpu.matmul %226, %215, %cst_104 {dimension_numbers = #tpu.dot_dimension_numbers<[1], [0], [0], [1], [0, 0, 1, 1], [], []>} : vector<1x3xbf16>, vector<3x192xbf16>, vector<1x192xf32> -> vector<1x192xf32>
    %228 = arith.truncf %227 : vector<1x192xf32> to vector<1x192xbf16>
    %c0_105 = arith.constant 0 : index
    %c0_106 = arith.constant 0 : index
    %c0_107 = arith.constant 0 : index
    %229 = vector.load %arg6[%c0_105, %c0_106, %c0_107] : memref<3x192x64xbf16, #tpu.memory_space<vmem>>, vector<1x192x64xbf16>
    %230 = vector.shape_cast %229 : vector<1x192x64xbf16> to vector<192x64xbf16>
    %cst_108 = arith.constant dense<0.000000e+00> : vector<1x64xf32>
    %231 = tpu.matmul %228, %230, %cst_108 {dimension_numbers = #tpu.dot_dimension_numbers<[1], [0], [0], [1], [0, 0, 1, 1], [], []>} : vector<1x192xbf16>, vector<192x64xbf16>, vector<1x64xf32> -> vector<1x64xf32>
    %232 = tpu.iota {dimensions = array<i32: 0>} : vector<1x3xi32>
    %233 = tpu.iota {dimensions = array<i32: 1>} : vector<1x3xi32>
    %c1_i32_109 = arith.constant 1 : i32
    %234 = vector.broadcast %c1_i32_109 : i32 to vector<1x3xi32>
    %235 = arith.muli %232, %234 : vector<1x3xi32>
    %c1_i32_110 = arith.constant 1 : i32
    %236 = vector.broadcast %c1_i32_110 : i32 to vector<1x3xi32>
    %237 = arith.addi %235, %236 : vector<1x3xi32>
    %238 = arith.cmpi eq, %233, %237 : vector<1x3xi32>
    %cst_111 = arith.constant 1.000000e+00 : f32
    %cst_112 = arith.constant 0.000000e+00 : f32
    %239 = vector.broadcast %cst_111 : f32 to vector<1x3xf32>
    %240 = vector.broadcast %cst_112 : f32 to vector<1x3xf32>
    %241 = arith.select %238, %239, %240 : vector<1x3xi1>, vector<1x3xf32>
    %242 = arith.truncf %241 : vector<1x3xf32> to vector<1x3xbf16>
    %cst_113 = arith.constant dense<0.000000e+00> : vector<1x192xf32>
    %243 = tpu.matmul %242, %215, %cst_113 {dimension_numbers = #tpu.dot_dimension_numbers<[1], [0], [0], [1], [0, 0, 1, 1], [], []>} : vector<1x3xbf16>, vector<3x192xbf16>, vector<1x192xf32> -> vector<1x192xf32>
    %244 = arith.truncf %243 : vector<1x192xf32> to vector<1x192xbf16>
    %c1_114 = arith.constant 1 : index
    %c0_115 = arith.constant 0 : index
    %c0_116 = arith.constant 0 : index
    %245 = vector.load %arg6[%c1_114, %c0_115, %c0_116] : memref<3x192x64xbf16, #tpu.memory_space<vmem>>, vector<1x192x64xbf16>
    %246 = vector.shape_cast %245 : vector<1x192x64xbf16> to vector<192x64xbf16>
    %cst_117 = arith.constant dense<0.000000e+00> : vector<1x64xf32>
    %247 = tpu.matmul %244, %246, %cst_117 {dimension_numbers = #tpu.dot_dimension_numbers<[1], [0], [0], [1], [0, 0, 1, 1], [], []>} : vector<1x192xbf16>, vector<192x64xbf16>, vector<1x64xf32> -> vector<1x64xf32>
    %248 = arith.addf %231, %247 : vector<1x64xf32>
    %249 = tpu.iota {dimensions = array<i32: 0>} : vector<1x3xi32>
    %250 = tpu.iota {dimensions = array<i32: 1>} : vector<1x3xi32>
    %c1_i32_118 = arith.constant 1 : i32
    %251 = vector.broadcast %c1_i32_118 : i32 to vector<1x3xi32>
    %252 = arith.muli %249, %251 : vector<1x3xi32>
    %c2_i32_119 = arith.constant 2 : i32
    %253 = vector.broadcast %c2_i32_119 : i32 to vector<1x3xi32>
    %254 = arith.addi %252, %253 : vector<1x3xi32>
    %255 = arith.cmpi eq, %250, %254 : vector<1x3xi32>
    %cst_120 = arith.constant 1.000000e+00 : f32
    %cst_121 = arith.constant 0.000000e+00 : f32
    %256 = vector.broadcast %cst_120 : f32 to vector<1x3xf32>
    %257 = vector.broadcast %cst_121 : f32 to vector<1x3xf32>
    %258 = arith.select %255, %256, %257 : vector<1x3xi1>, vector<1x3xf32>
    %259 = arith.truncf %258 : vector<1x3xf32> to vector<1x3xbf16>
    %cst_122 = arith.constant dense<0.000000e+00> : vector<1x192xf32>
    %260 = tpu.matmul %259, %215, %cst_122 {dimension_numbers = #tpu.dot_dimension_numbers<[1], [0], [0], [1], [0, 0, 1, 1], [], []>} : vector<1x3xbf16>, vector<3x192xbf16>, vector<1x192xf32> -> vector<1x192xf32>
    %261 = arith.truncf %260 : vector<1x192xf32> to vector<1x192xbf16>
    %c2_123 = arith.constant 2 : index
    %c0_124 = arith.constant 0 : index
    %c0_125 = arith.constant 0 : index
    %262 = vector.load %arg6[%c2_123, %c0_124, %c0_125] : memref<3x192x64xbf16, #tpu.memory_space<vmem>>, vector<1x192x64xbf16>
    %263 = vector.shape_cast %262 : vector<1x192x64xbf16> to vector<192x64xbf16>
    %cst_126 = arith.constant dense<0.000000e+00> : vector<1x64xf32>
    %264 = tpu.matmul %261, %263, %cst_126 {dimension_numbers = #tpu.dot_dimension_numbers<[1], [0], [0], [1], [0, 0, 1, 1], [], []>} : vector<1x192xbf16>, vector<192x64xbf16>, vector<1x64xf32> -> vector<1x64xf32>
    %265 = arith.addf %248, %264 : vector<1x64xf32>
    %c0_127 = arith.constant 0 : index
    %c0_128 = arith.constant 0 : index
    %266 = vector.load %arg7[%c0_127, %c0_128] : memref<1x64xf32, #tpu.memory_space<vmem>>, vector<1x64xf32>
    %267 = arith.addf %265, %266 : vector<1x64xf32>
    %cst_129 = arith.constant 0.000000e+00 : f32
    %268 = vector.broadcast %cst_129 : f32 to vector<1x64xf32>
    %269 = arith.maximumf %267, %268 : vector<1x64xf32>
    %270 = arith.truncf %269 : vector<1x64xf32> to vector<1x64xbf16>
    %c0_130 = arith.constant 0 : index
    %c0_131 = arith.constant 0 : index
    %c0_132 = arith.constant 0 : index
    %271 = vector.load %arg8[%c0_130, %c0_131, %c0_132] : memref<1x64x512xbf16, #tpu.memory_space<vmem>>, vector<1x64x512xbf16>
    %272 = vector.shape_cast %271 : vector<1x64x512xbf16> to vector<64x512xbf16>
    %cst_133 = arith.constant dense<0.000000e+00> : vector<1x512xf32>
    %273 = tpu.matmul %270, %272, %cst_133 {dimension_numbers = #tpu.dot_dimension_numbers<[1], [0], [0], [1], [0, 0, 1, 1], [], []>} : vector<1x64xbf16>, vector<64x512xbf16>, vector<1x512xf32> -> vector<1x512xf32>
    %c0_134 = arith.constant 0 : index
    %c0_135 = arith.constant 0 : index
    %274 = vector.load %arg9[%c0_134, %c0_135] : memref<1x512xf32, #tpu.memory_space<vmem>>, vector<1x512xf32>
    %275 = arith.addf %273, %274 : vector<1x512xf32>
    %cst_136 = arith.constant 0.000000e+00 : f32
    %276 = vector.broadcast %cst_136 : f32 to vector<1x512xf32>
    %277 = arith.maximumf %275, %276 : vector<1x512xf32>
    %278 = arith.truncf %277 : vector<1x512xf32> to vector<1x512xbf16>
    %c0_137 = arith.constant 0 : index
    %c0_138 = arith.constant 0 : index
    %279 = vector.load %arg10[%c0_137, %c0_138] : memref<512x128xbf16, #tpu.memory_space<vmem>>, vector<512x128xbf16>
    %cst_139 = arith.constant dense<0.000000e+00> : vector<1x128xf32>
    %280 = tpu.matmul %278, %279, %cst_139 {dimension_numbers = #tpu.dot_dimension_numbers<[1], [0], [0], [1], [0, 0, 1, 1], [], []>} : vector<1x512xbf16>, vector<512x128xbf16>, vector<1x128xf32> -> vector<1x128xf32>
    %c0_140 = arith.constant 0 : index
    %c0_141 = arith.constant 0 : index
    %281 = vector.load %arg11[%c0_140, %c0_141] : memref<1x128xf32, #tpu.memory_space<vmem>>, vector<1x128xf32>
    %282 = arith.addf %280, %281 : vector<1x128xf32>
    %c0_142 = arith.constant 0 : index
    %c0_143 = arith.constant 0 : index
    %c0_144 = arith.constant 0 : index
    %283 = vector.load %arg12[%c0_142, %c0_143, %c0_144] : memref<1x1x128xf32, #tpu.memory_space<vmem>>, vector<1x1x128xf32>
    %284 = vector.shape_cast %283 : vector<1x1x128xf32> to vector<1x128xf32>
    %285 = vector.shape_cast %282 : vector<1x128xf32> to vector<1x1x128xf32>
    tpu.vector_store %arg12[%c0_142, %c0_143, %c0_144], %285 {strides = array<i32>} : memref<1x1x128xf32, #tpu.memory_space<vmem>>, vector<1x1x128xf32>,
    return
  }
  func.func @transform_0(%arg0: i32) -> (i32, i32, i32) {
    %c0_i32 = arith.constant 0 : i32
    %c0_i32_0 = arith.constant 0 : i32
    %c0_i32_1 = arith.constant 0 : i32
    return %arg0, %c0_i32, %c0_i32_0 : i32, i32, i32
  }
  func.func @transform_1(%arg0: i32) -> (i32, i32, i32) {
    %c0_i32 = arith.constant 0 : i32
    %c0_i32_0 = arith.constant 0 : i32
    %c0_i32_1 = arith.constant 0 : i32
    %c0_i32_2 = arith.constant 0 : i32
    return %c0_i32, %c0_i32_0, %c0_i32_1 : i32, i32, i32
  }
  func.func @transform_2(%arg0: i32) -> (i32, i32) {
    %c0_i32 = arith.constant 0 : i32
    %c0_i32_0 = arith.constant 0 : i32
    %c0_i32_1 = arith.constant 0 : i32
    return %c0_i32, %c0_i32_0 : i32, i32
  }
  func.func @transform_3(%arg0: i32) -> (i32, i32, i32) {
    %c0_i32 = arith.constant 0 : i32
    %c0_i32_0 = arith.constant 0 : i32
    %c0_i32_1 = arith.constant 0 : i32
    %c0_i32_2 = arith.constant 0 : i32
    return %c0_i32, %c0_i32_0, %c0_i32_1 : i32, i32, i32
  }
  func.func @transform_4(%arg0: i32) -> (i32, i32) {
    %c0_i32 = arith.constant 0 : i32
    %c0_i32_0 = arith.constant 0 : i32
    %c0_i32_1 = arith.constant 0 : i32
    return %c0_i32, %c0_i32_0 : i32, i32
  }
  func.func @transform_5(%arg0: i32) -> (i32, i32, i32) {
    %c0_i32 = arith.constant 0 : i32
    %c0_i32_0 = arith.constant 0 : i32
    %c0_i32_1 = arith.constant 0 : i32
    %c0_i32_2 = arith.constant 0 : i32
    return %c0_i32, %c0_i32_0, %c0_i32_1 : i32, i32, i32
  }
  func.func @transform_6(%arg0: i32) -> (i32, i32) {
    %c0_i32 = arith.constant 0 : i32
    %c0_i32_0 = arith.constant 0 : i32
    %c0_i32_1 = arith.constant 0 : i32
    return %c0_i32, %c0_i32_0 : i32, i32
  }
  func.func @transform_7(%arg0: i32) -> (i32, i32, i32) {
    %c0_i32 = arith.constant 0 : i32
    %c0_i32_0 = arith.constant 0 : i32
    %c0_i32_1 = arith.constant 0 : i32
    %c0_i32_2 = arith.constant 0 : i32
    return %c0_i32, %c0_i32_0, %c0_i32_1 : i32, i32, i32
  }
  func.func @transform_8(%arg0: i32) -> (i32, i32) {
    %c0_i32 = arith.constant 0 : i32
    %c0_i32_0 = arith.constant 0 : i32
    %c0_i32_1 = arith.constant 0 : i32
    return %c0_i32, %c0_i32_0 : i32, i32
  }
  func.func @transform_9(%arg0: i32) -> (i32, i32) {
    %c0_i32 = arith.constant 0 : i32
    %c0_i32_0 = arith.constant 0 : i32
    %c0_i32_1 = arith.constant 0 : i32
    return %c0_i32, %c0_i32_0 : i32, i32
  }
  func.func @transform_10(%arg0: i32) -> (i32, i32) {
    %c0_i32 = arith.constant 0 : i32
    %c0_i32_0 = arith.constant 0 : i32
    %c0_i32_1 = arith.constant 0 : i32
    return %c0_i32, %c0_i32_0 : i32, i32
  }
  func.func @transform_11(%arg0: i32) -> (i32, i32, i32) {
    %c0_i32 = arith.constant 0 : i32
    %c0_i32_0 = arith.constant 0 : i32
    %c0_i32_1 = arith.constant 0 : i32
    return %arg0, %c0_i32, %c0_i32_0 : i32, i32, i32
  }
}

</mosaic_0001>

<llo_original>
// kernel: dqn_forward.1
$region0: #{dqn_forward.1}
  #allocation0 [shape = 'u32[]', space=smem, size = 0x4, offset = 0x4, fixed_abs, tag = 'smem constant byte address 0x4 - core index']
  #allocation1 [shape = 'u32[72,128]{1,0:T(1,128)}', space=vmem, size = 0x9000, scoped, tag = 'internal scratch']
  %s0 = inlined_call_operand.vmem [shape: bf16[2,36,144], index: 0, kind: input, shape index: {}]
  %s1 = inlined_call_operand.vmem [shape: bf16[8,144,256], index: 1, kind: input, shape index: {}]
  %s2 = inlined_call_operand.vmem [shape: f32[1,256], index: 2, kind: input, shape index: {}]
  %s3 = inlined_call_operand.vmem [shape: bf16[4,256,192], index: 3, kind: input, shape index: {}]
  %s4 = inlined_call_operand.vmem [shape: f32[1,192], index: 4, kind: input, shape index: {}]
  %s5 = inlined_call_operand.vmem [shape: bf16[3,192,64], index: 5, kind: input, shape index: {}]
  %s6 = inlined_call_operand.vmem [shape: f32[1,64], index: 6, kind: input, shape index: {}]
  %s7 = inlined_call_operand.vmem [shape: bf16[1,64,512], index: 7, kind: input, shape index: {}]
  %s8 = inlined_call_operand.vmem [shape: f32[1,512], index: 8, kind: input, shape index: {}]
  %s9 = inlined_call_operand.vmem [shape: bf16[512,128], index: 9, kind: input, shape index: {}]
  %s10 = inlined_call_operand.vmem [shape: f32[1,128], index: 10, kind: input, shape index: {}]
  %s11 = inlined_call_operand.hbm [shape: f32[2,1,128], index: 11, kind: output, shape index: {}]
  %s12 = sld [smem:[#allocation0]]
  $region77: #{dqn_forward.1} parent=0
    _
  %s14 = ssub.s32 1, %s12
  %s15 = scalar_select 0, %s14, %s12
  $region1: #{dqn_forward.1} parent=0
    #allocation2 [shape = 'u8[1024]{0}', space=vmem, size = 0x400, scoped, tag = 'output window, operand 0']
    #allocation3 [shape = 's32[2]{0}', space=sflag, size = 0x8, scoped, tag = 'scoped memory for dqn_forward.1']
    %16 = vsyncpa [#allocation3], 0
    %s17 = scalar_lea.sflag [#allocation3], 1
    %18 = vsyncpa %s17, 0
    loop: start=0, step=1, limit=4
    $region2: #{dqn_forward.1} parent=1 // loop_pre_header
      _
    $region3: #{dqn_forward.1} parent=1 // loop_header
      %s20 = sphi 0, %s24
      %p21 = scmp.ge.s32.totalorder %s20, 4
      %s30 = sphi 0, %s32
      %s33 = sphi 0, %s30
      %s34 = sphi 0, %s33
      %s50 = sphi 0, %s34
      %s54 = sphi 0, %s54
      %s56 = sphi 0, %s54
      %s57 = sphi 0, %s56
      %s71 = sphi 0, %s57
      %s75 = sphi 0, %s75
      %s77 = sphi 0, %s75
      %s78 = sphi 0, %s77
      %s92 = sphi 0, %s78
      %s96 = sphi 0, %s96
      %s98 = sphi 0, %s96
      %s99 = sphi 0, %s98
      %s113 = sphi 0, %s99
      %s117 = sphi 0, %s117
      %s119 = sphi 0, %s117
      %s120 = sphi 0, %s119
      %s134 = sphi 0, %s120
      %s138 = sphi 0, %s138
      %s140 = sphi 0, %s138
      %s141 = sphi 0, %s140
      %s155 = sphi 0, %s141
      %s159 = sphi 0, %s159
      %s161 = sphi 0, %s159
      %s162 = sphi 0, %s161
      %s176 = sphi 0, %s162
      %s180 = sphi 0, %s180
      %s182 = sphi 0, %s180
      %s183 = sphi 0, %s182
      %s197 = sphi 0, %s183
      %s201 = sphi 0, %s201
      %s203 = sphi 0, %s201
      %s204 = sphi 0, %s203
      %s218 = sphi 0, %s204
      %s222 = sphi 0, %s222
      %s224 = sphi 0, %s222
      %s225 = sphi 0, %s224
      %s239 = sphi 0, %s225
      %s243 = sphi 0, %s243
      %s245 = sphi 0, %s243
      %s246 = sphi 0, %s245
      %s260 = sphi 0, %s246
      %s266 = sphi 0, %s268
      %s269 = sphi 0, %s266
      %s270 = sphi 0, %s269
      %s286 = sphi 0, %s270
    $region4: #{dqn_forward.1} parent=1 // loop_header_branch
      %23 = sbr.rel (%p21) target = $region8
    $region5: #{dqn_forward.1} parent=1 // loop_body
      %s25 = ssub.s32 %s20, 1
      %s26 = ssub.s32 %s20, 2
      %s27 = sadd.s32 %s20, 1
      %s28 = ssub.s32 %s20, %s27
      %p29 = scmp.eq.s32.totalorder %s28, 0
      %s31 = sadd.s32 %s30, 1
      %s32 = scalar_select %p29, %s30, %s31
      %p35 = pneg %p29
      %p36 = scmp.eq.s32.totalorder %s20, 1
      %p37 = por %p35, %p36
      %p38 = scmp.ne.s32.totalorder %s30, %s33
      %p39 = scmp.eq.s32.totalorder %s20, 0
      %p40 = por %p38, %p39
      %p41 = scmp.ne.s32.totalorder %s30, %s33
      %p42 = scmp.eq.s32.totalorder %s25, 1
      %p43 = por %p41, %p42
      %p44 = scmp.ne.s32.totalorder %s33, %s34
      %p45 = scmp.eq.s32.totalorder %s25, 0
      %p46 = por %p44, %p45
      %p47 = scmp.ne.s32.totalorder %s33, %s34
      %p48 = scmp.eq.s32.totalorder %s26, 1
      %p49 = por %p47, %p48
      %p51 = scmp.ne.s32.totalorder %s34, %s50
      %p52 = scmp.eq.s32.totalorder %s26, 0
      %p53 = por %p51, %p52
      %s55 = sadd.s32 %s54, 1
      %p58 = scmp.eq.s32.totalorder %s20, 1
      %p59 = scmp.ne.s32.totalorder %s54, %s56
      %p60 = scmp.eq.s32.totalorder %s20, 0
      %p61 = por %p59, %p60
      %p62 = scmp.ne.s32.totalorder %s54, %s56
      %p63 = scmp.eq.s32.totalorder %s25, 1
      %p64 = por %p62, %p63
      %p65 = scmp.ne.s32.totalorder %s56, %s57
      %p66 = scmp.eq.s32.totalorder %s25, 0
      %p67 = por %p65, %p66
      %p68 = scmp.ne.s32.totalorder %s56, %s57
      %p69 = scmp.eq.s32.totalorder %s26, 1
      %p70 = por %p68, %p69
      %p72 = scmp.ne.s32.totalorder %s57, %s71
      %p73 = scmp.eq.s32.totalorder %s26, 0
      %p74 = por %p72, %p73
      %s76 = sadd.s32 %s75, 1
      %p79 = scmp.eq.s32.totalorder %s20, 1
      %p80 = scmp.ne.s32.totalorder %s75, %s77
      %p81 = scmp.eq.s32.totalorder %s20, 0
      %p82 = por %p80, %p81
      %p83 = scmp.ne.s32.totalorder %s75, %s77
      %p84 = scmp.eq.s32.totalorder %s25, 1
      %p85 = por %p83, %p84
      %p86 = scmp.ne.s32.totalorder %s77, %s78
      %p87 = scmp.eq.s32.totalorder %s25, 0
      %p88 = por %p86, %p87
      %p89 = scmp.ne.s32.totalorder %s77, %s78
      %p90 = scmp.eq.s32.totalorder %s26, 1
      %p91 = por %p89, %p90
      %p93 = scmp.ne.s32.totalorder %s78, %s92
      %p94 = scmp.eq.s32.totalorder %s26, 0
      %p95 = por %p93, %p94
      %s97 = sadd.s32 %s96, 1
      %p100 = scmp.eq.s32.totalorder %s20, 1
      %p101 = scmp.ne.s32.totalorder %s96, %s98
      %p102 = scmp.eq.s32.totalorder %s20, 0
      %p103 = por %p101, %p102
      %p104 = scmp.ne.s32.totalorder %s96, %s98
      %p105 = scmp.eq.s32.totalorder %s25, 1
      %p106 = por %p104, %p105
      %p107 = scmp.ne.s32.totalorder %s98, %s99
      %p108 = scmp.eq.s32.totalorder %s25, 0
      %p109 = por %p107, %p108
      %p110 = scmp.ne.s32.totalorder %s98, %s99
      %p111 = scmp.eq.s32.totalorder %s26, 1
      %p112 = por %p110, %p111
      %p114 = scmp.ne.s32.totalorder %s99, %s113
      %p115 = scmp.eq.s32.totalorder %s26, 0
      %p116 = por %p114, %p115
      %s118 = sadd.s32 %s117, 1
      %p121 = scmp.eq.s32.totalorder %s20, 1
      %p122 = scmp.ne.s32.totalorder %s117, %s119
      %p123 = scmp.eq.s32.totalorder %s20, 0
      %p124 = por %p122, %p123
      %p125 = scmp.ne.s32.totalorder %s117, %s119
      %p126 = scmp.eq.s32.totalorder %s25, 1
      %p127 = por %p125, %p126
      %p128 = scmp.ne.s32.totalorder %s119, %s120
      %p129 = scmp.eq.s32.totalorder %s25, 0
      %p130 = por %p128, %p129
      %p131 = scmp.ne.s32.totalorder %s119, %s120
      %p132 = scmp.eq.s32.totalorder %s26, 1
      %p133 = por %p131, %p132
      %p135 = scmp.ne.s32.totalorder %s120, %s134
      %p136 = scmp.eq.s32.totalorder %s26, 0
      %p137 = por %p135, %p136
      %s139 = sadd.s32 %s138, 1
      %p142 = scmp.eq.s32.totalorder %s20, 1
      %p143 = scmp.ne.s32.totalorder %s138, %s140
      %p144 = scmp.eq.s32.totalorder %s20, 0
      %p145 = por %p143, %p144
      %p146 = scmp.ne.s32.totalorder %s138, %s140
      %p147 = scmp.eq.s32.totalorder %s25, 1
      %p148 = por %p146, %p147
      %p149 = scmp.ne.s32.totalorder %s140, %s141
      %p150 = scmp.eq.s32.totalorder %s25, 0
      %p151 = por %p149, %p150
      %p152 = scmp.ne.s32.totalorder %s140, %s141
      %p153 = scmp.eq.s32.totalorder %s26, 1
      %p154 = por %p152, %p153
      %p156 = scmp.ne.s32.totalorder %s141, %s155
      %p157 = scmp.eq.s32.totalorder %s26, 0
      %p158 = por %p156, %p157
      %s160 = sadd.s32 %s159, 1
      %p163 = scmp.eq.s32.totalorder %s20, 1
      %p164 = scmp.ne.s32.totalorder %s159, %s161
      %p165 = scmp.eq.s32.totalorder %s20, 0
      %p166 = por %p164, %p165
      %p167 = scmp.ne.s32.totalorder %s159, %s161
      %p168 = scmp.eq.s32.totalorder %s25, 1
      %p169 = por %p167, %p168
      %p170 = scmp.ne.s32.totalorder %s161, %s162
      %p171 = scmp.eq.s32.totalorder %s25, 0
      %p172 = por %p170, %p171
      %p173 = scmp.ne.s32.totalorder %s161, %s162
      %p174 = scmp.eq.s32.totalorder %s26, 1
      %p175 = por %p173, %p174
      %p177 = scmp.ne.s32.totalorder %s162, %s176
      %p178 = scmp.eq.s32.totalorder %s26, 0
      %p179 = por %p177, %p178
      %s181 = sadd.s32 %s180, 1
      %p184 = scmp.eq.s32.totalorder %s20, 1
      %p185 = scmp.ne.s32.totalorder %s180, %s182
      %p186 = scmp.eq.s32.totalorder %s20, 0
      %p187 = por %p185, %p186
      %p188 = scmp.ne.s32.totalorder %s180, %s182
      %p189 = scmp.eq.s32.totalorder %s25, 1
      %p190 = por %p188, %p189
      %p191 = scmp.ne.s32.totalorder %s182, %s183
      %p192 = scmp.eq.s32.totalorder %s25, 0
      %p193 = por %p191, %p192
      %p194 = scmp.ne.s32.totalorder %s182, %s183
      %p195 = scmp.eq.s32.totalorder %s26, 1
      %p196 = por %p194, %p195
      %p198 = scmp.ne.s32.totalorder %s183, %s197
      %p199 = scmp.eq.s32.totalorder %s26, 0
      %p200 = por %p198, %p199
      %s202 = sadd.s32 %s201, 1
      %p205 = scmp.eq.s32.totalorder %s20, 1
      %p206 = scmp.ne.s32.totalorder %s201, %s203
      %p207 = scmp.eq.s32.totalorder %s20, 0
      %p208 = por %p206, %p207
      %p209 = scmp.ne.s32.totalorder %s201, %s203
      %p210 = scmp.eq.s32.totalorder %s25, 1
      %p211 = por %p209, %p210
      %p212 = scmp.ne.s32.totalorder %s203, %s204
      %p213 = scmp.eq.s32.totalorder %s25, 0
      %p214 = por %p212, %p213
      %p215 = scmp.ne.s32.totalorder %s203, %s204
      %p216 = scmp.eq.s32.totalorder %s26, 1
      %p217 = por %p215, %p216
      %p219 = scmp.ne.s32.totalorder %s204, %s218
      %p220 = scmp.eq.s32.totalorder %s26, 0
      %p221 = por %p219, %p220
      %s223 = sadd.s32 %s222, 1
      %p226 = scmp.eq.s32.totalorder %s20, 1
      %p227 = scmp.ne.s32.totalorder %s222, %s224
      %p228 = scmp.eq.s32.totalorder %s20, 0
      %p229 = por %p227, %p228
      %p230 = scmp.ne.s32.totalorder %s222, %s224
      %p231 = scmp.eq.s32.totalorder %s25, 1
      %p232 = por %p230, %p231
      %p233 = scmp.ne.s32.totalorder %s224, %s225
      %p234 = scmp.eq.s32.totalorder %s25, 0
      %p235 = por %p233, %p234
      %p236 = scmp.ne.s32.totalorder %s224, %s225
      %p237 = scmp.eq.s32.totalorder %s26, 1
      %p238 = por %p236, %p237
      %p240 = scmp.ne.s32.totalorder %s225, %s239
      %p241 = scmp.eq.s32.totalorder %s26, 0
      %p242 = por %p240, %p241
      %s244 = sadd.s32 %s243, 1
      %p247 = scmp.eq.s32.totalorder %s20, 1
      %p248 = scmp.ne.s32.totalorder %s243, %s245
      %p249 = scmp.eq.s32.totalorder %s20, 0
      %p250 = por %p248, %p249
      %p251 = scmp.ne.s32.totalorder %s243, %s245
      %p252 = scmp.eq.s32.totalorder %s25, 1
      %p253 = por %p251, %p252
      %p254 = scmp.ne.s32.totalorder %s245, %s246
      %p255 = scmp.eq.s32.totalorder %s25, 0
      %p256 = por %p254, %p255
      %p257 = scmp.ne.s32.totalorder %s245, %s246
      %p258 = scmp.eq.s32.totalorder %s26, 1
      %p259 = por %p257, %p258
      %p261 = scmp.ne.s32.totalorder %s246, %s260
      %p262 = scmp.eq.s32.totalorder %s26, 0
      %p263 = por %p261, %p262
      %s264 = ssub.s32 %s20, %s27
      %p265 = scmp.eq.s32.totalorder %s264, 0
      %s267 = sadd.s32 %s266, 1
      %s268 = scalar_select %p265, %s266, %s267
      %p271 = pneg %p265
      %p272 = scmp.eq.s32.totalorder %s20, 1
      %p273 = por %p271, %p272
      %p274 = scmp.ne.s32.totalorder %s266, %s269
      %p275 = scmp.eq.s32.totalorder %s20, 0
      %p276 = por %p274, %p275
      %p277 = scmp.ne.s32.totalorder %s266, %s269
      %p278 = scmp.eq.s32.totalorder %s25, 1
      %p279 = por %p277, %p278
      %p280 = scmp.ne.s32.totalorder %s269, %s270
      %p281 = scmp.eq.s32.totalorder %s25, 0
      %p282 = por %p280, %p281
      %p283 = scmp.ne.s32.totalorder %s269, %s270
      %p284 = scmp.eq.s32.totalorder %s26, 1
      %p285 = por %p283, %p284
      %p287 = scmp.ne.s32.totalorder %s270, %s286
      %p288 = scmp.eq.s32.totalorder %s26, 0
      %p289 = por %p287, %p288
      %p290 = scmp.le.s32.totalorder 1, %s20
      %p291 = scmp.lt.s32.totalorder %s20, 3
      %p292 = pnand %p290, %p291
      %p293 = pneg %p292
      // Predicated region
      $region9: #{dqn_forward.1} parent=5 // pred_check
        _
      $region10: #{dqn_forward.1} parent=5 // pred_check_branch
        %295 = sbr.rel (%p292) target = $region12
      $region11: #{dqn_forward.1} parent=5 // pred_region
        %s296 = ssub.s32 %s20, 1
        // Predicated region
        $region13: #{dqn_forward.1} parent=11 // pred_check
          %p297 = pneg %p67
        $region14: #{dqn_forward.1} parent=11 // pred_check_branch
          %299 = sbr.rel (%p297) target = $region16
        $region15: #{dqn_forward.1} parent=11 // pred_region
          _
        $region16: #{dqn_forward.1} parent=11 // pred_fallthru
          _
        // Predicated region
        $region17: #{dqn_forward.1} parent=11 // pred_check
          %p300 = pneg %p88
        $region18: #{dqn_forward.1} parent=11 // pred_check_branch
          %302 = sbr.rel (%p300) target = $region20
        $region19: #{dqn_forward.1} parent=11 // pred_region
          _
        $region20: #{dqn_forward.1} parent=11 // pred_fallthru
          _
        // Predicated region
        $region21: #{dqn_forward.1} parent=11 // pred_check
          %p303 = pneg %p109
        $region22: #{dqn_forward.1} parent=11 // pred_check_branch
          %305 = sbr.rel (%p303) target = $region24
        $region23: #{dqn_forward.1} parent=11 // pred_region
          _
        $region24: #{dqn_forward.1} parent=11 // pred_fallthru
          _
        // Predicated region
        $region25: #{dqn_forward.1} parent=11 // pred_check
          %p306 = pneg %p130
        $region26: #{dqn_forward.1} parent=11 // pred_check_branch
          %308 = sbr.rel (%p306) target = $region28
        $region27: #{dqn_forward.1} parent=11 // pred_region
          _
        $region28: #{dqn_forward.1} parent=11 // pred_fallthru
          _
        // Predicated region
        $region29: #{dqn_forward.1} parent=11 // pred_check
          %p309 = pneg %p151
        $region30: #{dqn_forward.1} parent=11 // pred_check_branch
          %311 = sbr.rel (%p309) target = $region32
        $region31: #{dqn_forward.1} parent=11 // pred_region
          _
        $region32: #{dqn_forward.1} parent=11 // pred_fallthru
          _
        // Predicated region
        $region33: #{dqn_forward.1} parent=11 // pred_check
          %p312 = pneg %p172
        $region34: #{dqn_forward.1} parent=11 // pred_check_branch
          %314 = sbr.rel (%p312) target = $region36
        $region35: #{dqn_forward.1} parent=11 // pred_region
          _
        $region36: #{dqn_forward.1} parent=11 // pred_fallthru
          _
        // Predicated region
        $region37: #{dqn_forward.1} parent=11 // pred_check
          %p315 = pneg %p193
        $region38: #{dqn_forward.1} parent=11 // pred_check_branch
          %317 = sbr.rel (%p315) target = $region40
        $region39: #{dqn_forward.1} parent=11 // pred_region
          _
        $region40: #{dqn_forward.1} parent=11 // pred_fallthru
          _
        // Predicated region
        $region41: #{dqn_forward.1} parent=11 // pred_check
          %p318 = pneg %p214
        $region42: #{dqn_forward.1} parent=11 // pred_check_branch
          %320 = sbr.rel (%p318) target = $region44
        $region43: #{dqn_forward.1} parent=11 // pred_region
          _
        $region44: #{dqn_forward.1} parent=11 // pred_fallthru
          _
        // Predicated region
        $region45: #{dqn_forward.1} parent=11 // pred_check
          %p321 = pneg %p235
        $region46: #{dqn_forward.1} parent=11 // pred_check_branch
          %323 = sbr.rel (%p321) target = $region48
        $region47: #{dqn_forward.1} parent=11 // pred_region
          _
        $region48: #{dqn_forward.1} parent=11 // pred_fallthru
          _
        // Predicated region
        $region49: #{dqn_forward.1} parent=11 // pred_check
          %p324 = pneg %p256
        $region50: #{dqn_forward.1} parent=11 // pred_check_branch
          %326 = sbr.rel (%p324) target = $region52
        $region51: #{dqn_forward.1} parent=11 // pred_region
          _
        $region52: #{dqn_forward.1} parent=11 // pred_fallthru
          _
      $region12: #{dqn_forward.1} parent=5 // pred_fallthru
        _
      %p327 = scmp.lt.s32.totalorder %s20, 2
      // Predicated region
      $region53: #{dqn_forward.1} parent=5 // pred_check
        %p328 = pneg %p327
      $region54: #{dqn_forward.1} parent=5 // pred_check_branch
        %330 = sbr.rel (%p328) target = $region56
      $region55: #{dqn_forward.1} parent=5 // pred_region
        // Predicated region
        $region57: #{dqn_forward.1} parent=55 // pred_check
          %p331 = pneg %p40
        $region58: #{dqn_forward.1} parent=55 // pred_check_branch
          %333 = sbr.rel (%p331) target = $region60
        $region59: #{dqn_forward.1} parent=55 // pred_region
          %p334 = scmp.lt.s32.totalorder %s20, 1
          %s335 = scalar_select %p334, %s20, 1
          %s336 = smul.addr %s335, 10
          %s337 = smul.addr %s336, 4
          %s338 = scalar_lea.vmem %s0, %s337
        $region60: #{dqn_forward.1} parent=55 // pred_fallthru
          _
      $region56: #{dqn_forward.1} parent=5 // pred_fallthru
        _
      %p339 = scmp.le.s32.totalorder 1, %s20
      %p340 = scmp.lt.s32.totalorder %s20, 3
      %p341 = pnand %p339, %p340
      %p342 = pneg %p341
      // Predicated region
      $region61: #{dqn_forward.1} parent=5 // pred_check
        _
      $region62: #{dqn_forward.1} parent=5 // pred_check_branch
        %344 = sbr.rel (%p341) target = $region64
      $region63: #{dqn_forward.1} parent=5 // pred_region
        %s345 = ssub.s32 %s20, 1
        %p346 = scmp.lt.s32.totalorder %s25, 1
        %s347 = scalar_select %p346, %s25, 1
        %s348 = smul.addr %s347, 10
        %s349 = smul.addr %s348, 4
        %s350 = scalar_lea.vmem %s0, %s349
        %p351 = pneg %p46
        %p352 = pneg %p43
        %p353 = pneg %p67
        %p354 = pneg %p64
        %p355 = pneg %p88
        %p356 = pneg %p85
        %p357 = pneg %p109
        %p358 = pneg %p106
        %p359 = pneg %p130
        %p360 = pneg %p127
        %p361 = pneg %p151
        %p362 = pneg %p148
        %p363 = pneg %p172
        %p364 = pneg %p169
        %p365 = pneg %p193
        %p366 = pneg %p190
        %p367 = pneg %p214
        %p368 = pneg %p211
        %p369 = pneg %p235
        %p370 = pneg %p232
        %p371 = pneg %p256
        %p372 = pneg %p253
        %p373 = pneg %p282
        %p374 = pneg %p279
        %s375 = sand.u32 %s269, 1
        %s376 = scalar_lea.sflag [#allocation3], %s375
        %s377 = sand.u32 %s269, 1
        %s378 = scalar_lea.vmem [#allocation2], %s377
        %p379 = scmp.lt.s32.totalorder %s25, 1
        %s380 = scalar_select %p379, %s25, 1
        %s381 = smul.addr %s380, 10
        %s382 = smul.addr %s381, 4
        %s383 = scalar_lea.vmem %s0, %s382
        %v385 = vld [vmem:[%s383] sm:$0xff]
        %v386 = vld [vmem:[%s383 + $0x8] sm:$0xff]
        %v387 = vld [vmem:[%s383 + $0x10] sm:$0xff]
        %v388 = vld [vmem:[%s383 + $0x18] sm:$0xff]
        %v389 = vld [vmem:[%s383 + $0x20] sm:$0x33]
        %v390 = vlaneseq
        %v391 = vshrl.u32 %v390, 7
        %v392 = vlaneseq
        %v393 = vand.u32 %v392, 127
        %v394 = vmul.u32 %v391, 4
        %vm395 = vcmp.eq.s32.totalorder %v393, %v394
        %v396 = vsel %vm395, 1.0, 0.0
        %v397 = vpack.c.bf16 %v396, %v396
        %v403 = vunpack.c.l.b16 %v385
        %v404 = vunpack.c.h.b16 %v385
        %v405 = vunpack.c.l.b16 %v386
        %v406 = vunpack.c.h.b16 %v386
        %v407 = vunpack.c.l.b16 %v387
        %v408 = vunpack.c.h.b16 %v387
        %v409 = vunpack.c.l.b16 %v388
        %v410 = vunpack.c.h.b16 %v388
        %v411 = vunpack.c.l.b16 %v389
        %v412 = vunpack.c.h.b16 %v389
        %v413 = vpack.c.b16 %v405, %v403
        %v414 = vpack.c.b16 %v406, %v404
        %v415 = vpack.c.b16 %v409, %v407
        %v416 = vpack.c.b16 %v410, %v408
        %v417 = vpack.c.b16 %v411, %v411
        %v418 = vpack.c.b16 %v412, %v412
        %vm423 = vcmask 293888
        %v425 = vsel %vm423, %v397, 0
        %vm427 = vcmask 1041408
        %v429 = vsel %vm427, %v417, 0
        %v432 = vsel %vm427, %v418, 0
        %434 = vmatpush.bf16.msra.mxu0 0
        %435 = vmatpush.bf16.msra.mxu0 0
        %436 = vmatpush.bf16.msra.mxu0 0
        %437 = vmatpush.bf16.msra.mxu0 0
        %438 = vmatpush.bf16.msra.mxu0 0
        %439 = vmatpush.bf16.msra.mxu0 %v429
        %440 = vmatpush.bf16.msra.mxu0 %v415
        %441 = vmatpush.bf16.msra.mxu0 %v413
        %442 = vmatmul.bf16.gmra.mxu0 %v425
        %v443 = vpop.f32.mrf.mxu0
        %v444 = vadd.f32 0.0, %v443
        %v445 = vpop.f32.mrf.mxu0
        %446 = vdwg.mxu0
        %447 = vmatpush.bf16.msra.mxu0 0
        %448 = vmatpush.bf16.msra.mxu0 0
        %449 = vmatpush.bf16.msra.mxu0 0
        %450 = vmatpush.bf16.msra.mxu0 0
        %451 = vmatpush.bf16.msra.mxu0 0
        %452 = vmatpush.bf16.msra.mxu0 %v432
        %453 = vmatpush.bf16.msra.mxu0 %v416
        %454 = vmatpush.bf16.msra.mxu0 %v414
        %455 = vmatmul.bf16.gmra.mxu0 %v425
        %v456 = vpop.f32.mrf.mxu0
        %v457 = vadd.f32 0.0, %v456
        %v458 = vpop.f32.mrf.mxu0
        %459 = vdwg.mxu0
        %v460 = vpack.c.bf16 %v444, %v444
        %v461 = vpack.c.bf16 %v457, %v457
        %v462 = vld [vmem:[%s1] sm:$0xff]
        %v463 = vld [vmem:[%s1 + $0x8] sm:$0xff]
        %v464 = vld [vmem:[%s1 + $0x10] sm:$0xff]
        %v465 = vld [vmem:[%s1 + $0x18] sm:$0xff]
        %v466 = vld [vmem:[%s1 + $0x20] sm:$0xff]
        %v467 = vld [vmem:[%s1 + $0x28] sm:$0xff]
        %v468 = vld [vmem:[%s1 + $0x30] sm:$0xff]
        %v469 = vld [vmem:[%s1 + $0x38] sm:$0xff]
        %v470 = vld [vmem:[%s1 + $0x40] sm:$0xff]
        %v471 = vld [vmem:[%s1 + $0x48] sm:$0xff]
        %v472 = vld [vmem:[%s1 + $0x50] sm:$0xff]
        %v473 = vld [vmem:[%s1 + $0x58] sm:$0xff]
        %v474 = vld [vmem:[%s1 + $0x60] sm:$0xff]
        %v475 = vld [vmem:[%s1 + $0x68] sm:$0xff]
        %v476 = vld [vmem:[%s1 + $0x70] sm:$0xff]
        %v477 = vld [vmem:[%s1 + $0x78] sm:$0xff]
        %v478 = vld [vmem:[%s1 + $0x80] sm:$0xff]
        %v479 = vld [vmem:[%s1 + $0x88] sm:$0xff]
        %v480 = vadd.s32 %v394, 1
        %vm481 = vcmp.eq.s32.totalorder %v393, %v480
        %v482 = vsel %vm481, 1.0, 0.0
        %v483 = vpack.c.bf16 %v482, %v482
        %v485 = vsel %vm423, %v483, 0
        %487 = vmatpush.bf16.msra.mxu0 0
        %488 = vmatpush.bf16.msra.mxu0 0
        %489 = vmatpush.bf16.msra.mxu0 0
        %490 = vmatpush.bf16.msra.mxu0 0
        %491 = vmatpush.bf16.msra.mxu0 0
        %492 = vmatpush.bf16.msra.mxu0 %v429
        %493 = vmatpush.bf16.msra.mxu0 %v415
        %494 = vmatpush.bf16.msra.mxu0 %v413
        %495 = vmatmul.bf16.gmra.mxu0 %v485
        %v496 = vpop.f32.mrf.mxu0
        %v497 = vadd.f32 0.0, %v496
        %v498 = vpop.f32.mrf.mxu0
        %499 = vdwg.mxu0
        %500 = vmatpush.bf16.msra.mxu0 0
        %501 = vmatpush.bf16.msra.mxu0 0
        %502 = vmatpush.bf16.msra.mxu0 0
        %503 = vmatpush.bf16.msra.mxu0 0
        %504 = vmatpush.bf16.msra.mxu0 0
        %505 = vmatpush.bf16.msra.mxu0 %v432
        %506 = vmatpush.bf16.msra.mxu0 %v416
        %507 = vmatpush.bf16.msra.mxu0 %v414
        %508 = vmatmul.bf16.gmra.mxu0 %v485
        %v509 = vpop.f32.mrf.mxu0
        %v510 = vadd.f32 0.0, %v509
        %v511 = vpop.f32.mrf.mxu0
        %512 = vdwg.mxu0
        %v513 = vpack.c.bf16 %v497, %v497
        %v514 = vpack.c.bf16 %v510, %v510
        %s515 = scalar_lea.vmem %s1, 144
        %v516 = vld [vmem:[%s515] sm:$0xff]
        %v517 = vld [vmem:[%s515 + $0x8] sm:$0xff]
        %v518 = vld [vmem:[%s515 + $0x10] sm:$0xff]
        %v519 = vld [vmem:[%s515 + $0x18] sm:$0xff]
        %v520 = vld [vmem:[%s515 + $0x20] sm:$0xff]
        %v521 = vld [vmem:[%s515 + $0x28] sm:$0xff]
        %v522 = vld [vmem:[%s515 + $0x30] sm:$0xff]
        %v523 = vld [vmem:[%s515 + $0x38] sm:$0xff]
        %v524 = vld [vmem:[%s515 + $0x40] sm:$0xff]
        %v525 = vld [vmem:[%s515 + $0x48] sm:$0xff]
        %v526 = vld [vmem:[%s515 + $0x50] sm:$0xff]
        %v527 = vld [vmem:[%s515 + $0x58] sm:$0xff]
        %v528 = vld [vmem:[%s515 + $0x60] sm:$0xff]
        %v529 = vld [vmem:[%s515 + $0x68] sm:$0xff]
        %v530 = vld [vmem:[%s515 + $0x70] sm:$0xff]
        %v531 = vld [vmem:[%s515 + $0x78] sm:$0xff]
        %v532 = vld [vmem:[%s515 + $0x80] sm:$0xff]
        %v533 = vld [vmem:[%s515 + $0x88] sm:$0xff]
        %v552 = vunpack.c.l.b16 %v516
        %v553 = vunpack.c.h.b16 %v516
        %v554 = vunpack.c.l.b16 %v517
        %v555 = vunpack.c.h.b16 %v517
        %v556 = vunpack.c.l.b16 %v518
        %v557 = vunpack.c.h.b16 %v518
        %v558 = vunpack.c.l.b16 %v519
        %v559 = vunpack.c.h.b16 %v519
        %v560 = vunpack.c.l.b16 %v520
        %v561 = vunpack.c.h.b16 %v520
        %v562 = vunpack.c.l.b16 %v521
        %v563 = vunpack.c.h.b16 %v521
        %v564 = vunpack.c.l.b16 %v522
        %v565 = vunpack.c.h.b16 %v522
        %v566 = vunpack.c.l.b16 %v523
        %v567 = vunpack.c.h.b16 %v523
        %v568 = vunpack.c.l.b16 %v524
        %v569 = vunpack.c.h.b16 %v524
        %v570 = vunpack.c.l.b16 %v525
        %v571 = vunpack.c.h.b16 %v525
        %v572 = vunpack.c.l.b16 %v526
        %v573 = vunpack.c.h.b16 %v526
        %v574 = vunpack.c.l.b16 %v527
        %v575 = vunpack.c.h.b16 %v527
        %v576 = vunpack.c.l.b16 %v528
        %v577 = vunpack.c.h.b16 %v528
        %v578 = vunpack.c.l.b16 %v529
        %v579 = vunpack.c.h.b16 %v529
        %v580 = vunpack.c.l.b16 %v530
        %v581 = vunpack.c.h.b16 %v530
        %v582 = vunpack.c.l.b16 %v531
        %v583 = vunpack.c.h.b16 %v531
        %v584 = vunpack.c.l.b16 %v532
        %v585 = vunpack.c.h.b16 %v532
        %v586 = vunpack.c.l.b16 %v533
        %v587 = vunpack.c.h.b16 %v533
        %v588 = vpack.c.b16 %v554, %v552
        %v589 = vpack.c.b16 %v555, %v553
        %v590 = vpack.c.b16 %v558, %v556
        %v591 = vpack.c.b16 %v559, %v557
        %v592 = vpack.c.b16 %v562, %v560
        %v593 = vpack.c.b16 %v563, %v561
        %v594 = vpack.c.b16 %v566, %v564
        %v595 = vpack.c.b16 %v567, %v565
        %v596 = vpack.c.b16 %v570, %v568
        %v597 = vpack.c.b16 %v571, %v569
        %v598 = vpack.c.b16 %v574, %v572
        %v599 = vpack.c.b16 %v575, %v573
        %v600 = vpack.c.b16 %v578, %v576
        %v601 = vpack.c.b16 %v579, %v577
        %v602 = vpack.c.b16 %v582, %v580
        %v603 = vpack.c.b16 %v583, %v581
        %v604 = vpack.c.b16 %v586, %v584
        %v605 = vpack.c.b16 %v587, %v585
        %vm624 = vcmask 130048
        %v626 = vsel %vm624, %v514, 0
        %628 = vmatpush.bf16.msra.mxu0 %v602
        %629 = vmatpush.bf16.msra.mxu0 %v600
        %630 = vmatpush.bf16.msra.mxu0 %v598
        %631 = vmatpush.bf16.msra.mxu0 %v596
        %632 = vmatpush.bf16.msra.mxu0 %v594
        %633 = vmatpush.bf16.msra.mxu0 %v592
        %634 = vmatpush.bf16.msra.mxu0 %v590
        %635 = vmatpush.bf16.msra.mxu0 %v588
        %636 = vmatmul.bf16.gmra.mxu0 %v513
        %v637 = vpop.f32.mrf.mxu0
        %v638 = vadd.f32 0.0, %v637
        %v639 = vpop.f32.mrf.mxu0
        %640 = vdwg.mxu0
        %641 = vmatpush.bf16.msra.mxu0 0
        %642 = vmatpush.bf16.msra.mxu0 0
        %643 = vmatpush.bf16.msra.mxu0 0
        %644 = vmatpush.bf16.msra.mxu0 0
        %645 = vmatpush.bf16.msra.mxu0 0
        %646 = vmatpush.bf16.msra.mxu0 0
        %647 = vmatpush.bf16.msra.mxu0 0
        %648 = vmatpush.bf16.msra.mxu0 %v604
        %649 = vmatmul.bf16.gmra.mxu0 %v626
        %v650 = vpop.f32.mrf.mxu0
        %v651 = vadd.f32 %v638, %v650
        %v652 = vpop.f32.mrf.mxu0
        %653 = vdwg.mxu0
        %654 = vmatpush.bf16.msra.mxu0 %v603
        %655 = vmatpush.bf16.msra.mxu0 %v601
        %656 = vmatpush.bf16.msra.mxu0 %v599
        %657 = vmatpush.bf16.msra.mxu0 %v597
        %658 = vmatpush.bf16.msra.mxu0 %v595
        %659 = vmatpush.bf16.msra.mxu0 %v593
        %660 = vmatpush.bf16.msra.mxu0 %v591
        %661 = vmatpush.bf16.msra.mxu0 %v589
        %662 = vmatmul.bf16.gmra.mxu0 %v513
        %v663 = vpop.f32.mrf.mxu0
        %v664 = vadd.f32 0.0, %v663
        %v665 = vpop.f32.mrf.mxu0
        %666 = vdwg.mxu0
        %667 = vmatpush.bf16.msra.mxu0 0
        %668 = vmatpush.bf16.msra.mxu0 0
        %669 = vmatpush.bf16.msra.mxu0 0
        %670 = vmatpush.bf16.msra.mxu0 0
        %671 = vmatpush.bf16.msra.mxu0 0
        %672 = vmatpush.bf16.msra.mxu0 0
        %673 = vmatpush.bf16.msra.mxu0 0
        %674 = vmatpush.bf16.msra.mxu0 %v605
        %675 = vmatmul.bf16.gmra.mxu0 %v626
        %v676 = vpop.f32.mrf.mxu0
        %v677 = vadd.f32 %v664, %v676
        %v678 = vpop.f32.mrf.mxu0
        %679 = vdwg.mxu0
        %v698 = vunpack.c.l.b16 %v462
        %v699 = vunpack.c.h.b16 %v462
        %v700 = vunpack.c.l.b16 %v463
        %v701 = vunpack.c.h.b16 %v463
        %v702 = vunpack.c.l.b16 %v464
        %v703 = vunpack.c.h.b16 %v464
        %v704 = vunpack.c.l.b16 %v465
        %v705 = vunpack.c.h.b16 %v465
        %v706 = vunpack.c.l.b16 %v466
        %v707 = vunpack.c.h.b16 %v466
        %v708 = vunpack.c.l.b16 %v467
        %v709 = vunpack.c.h.b16 %v467
        %v710 = vunpack.c.l.b16 %v468
        %v711 = vunpack.c.h.b16 %v468
        %v712 = vunpack.c.l.b16 %v469
        %v713 = vunpack.c.h.b16 %v469
        %v714 = vunpack.c.l.b16 %v470
        %v715 = vunpack.c.h.b16 %v470
        %v716 = vunpack.c.l.b16 %v471
        %v717 = vunpack.c.h.b16 %v471
        %v718 = vunpack.c.l.b16 %v472
        %v719 = vunpack.c.h.b16 %v472
        %v720 = vunpack.c.l.b16 %v473
        %v721 = vunpack.c.h.b16 %v473
        %v722 = vunpack.c.l.b16 %v474
        %v723 = vunpack.c.h.b16 %v474
        %v724 = vunpack.c.l.b16 %v475
        %v725 = vunpack.c.h.b16 %v475
        %v726 = vunpack.c.l.b16 %v476
        %v727 = vunpack.c.h.b16 %v476
        %v728 = vunpack.c.l.b16 %v477
        %v729 = vunpack.c.h.b16 %v477
        %v730 = vunpack.c.l.b16 %v478
        %v731 = vunpack.c.h.b16 %v478
        %v732 = vunpack.c.l.b16 %v479
        %v733 = vunpack.c.h.b16 %v479
        %v734 = vpack.c.b16 %v700, %v698
        %v735 = vpack.c.b16 %v701, %v699
        %v736 = vpack.c.b16 %v704, %v702
        %v737 = vpack.c.b16 %v705, %v703
        %v738 = vpack.c.b16 %v708, %v706
        %v739 = vpack.c.b16 %v709, %v707
        %v740 = vpack.c.b16 %v712, %v710
        %v741 = vpack.c.b16 %v713, %v711
        %v742 = vpack.c.b16 %v716, %v714
        %v743 = vpack.c.b16 %v717, %v715
        %v744 = vpack.c.b16 %v720, %v718
        %v745 = vpack.c.b16 %v721, %v719
        %v746 = vpack.c.b16 %v724, %v722
        %v747 = vpack.c.b16 %v725, %v723
        %v748 = vpack.c.b16 %v728, %v726
        %v749 = vpack.c.b16 %v729, %v727
        %v750 = vpack.c.b16 %v732, %v730
        %v751 = vpack.c.b16 %v733, %v731
        %v771 = vsel %vm624, %v461, 0
        %773 = vmatpush.bf16.msra.mxu0 %v748
        %774 = vmatpush.bf16.msra.mxu0 %v746
        %775 = vmatpush.bf16.msra.mxu0 %v744
        %776 = vmatpush.bf16.msra.mxu0 %v742
        %777 = vmatpush.bf16.msra.mxu0 %v740
        %778 = vmatpush.bf16.msra.mxu0 %v738
        %779 = vmatpush.bf16.msra.mxu0 %v736
        %780 = vmatpush.bf16.msra.mxu0 %v734
        %781 = vmatmul.bf16.gmra.mxu0 %v460
        %v782 = vpop.f32.mrf.mxu0
        %v783 = vadd.f32 %v651, %v782
        %v784 = vpop.f32.mrf.mxu0
        %785 = vdwg.mxu0
        %786 = vmatpush.bf16.msra.mxu0 0
        %787 = vmatpush.bf16.msra.mxu0 0
        %788 = vmatpush.bf16.msra.mxu0 0
        %789 = vmatpush.bf16.msra.mxu0 0
        %790 = vmatpush.bf16.msra.mxu0 0
        %791 = vmatpush.bf16.msra.mxu0 0
        %792 = vmatpush.bf16.msra.mxu0 0
        %793 = vmatpush.bf16.msra.mxu0 %v750
        %794 = vmatmul.bf16.gmra.mxu0 %v771
        %v795 = vpop.f32.mrf.mxu0
        %v796 = vadd.f32 %v783, %v795
        %v797 = vpop.f32.mrf.mxu0
        %798 = vdwg.mxu0
        %799 = vmatpush.bf16.msra.mxu0 %v749
        %800 = vmatpush.bf16.msra.mxu0 %v747
        %801 = vmatpush.bf16.msra.mxu0 %v745
        %802 = vmatpush.bf16.msra.mxu0 %v743
        %803 = vmatpush.bf16.msra.mxu0 %v741
        %804 = vmatpush.bf16.msra.mxu0 %v739
        %805 = vmatpush.bf16.msra.mxu0 %v737
        %806 = vmatpush.bf16.msra.mxu0 %v735
        %807 = vmatmul.bf16.gmra.mxu0 %v460
        %v808 = vpop.f32.mrf.mxu0
        %v809 = vadd.f32 %v677, %v808
        %v810 = vpop.f32.mrf.mxu0
        %811 = vdwg.mxu0
        %812 = vmatpush.bf16.msra.mxu0 0
        %813 = vmatpush.bf16.msra.mxu0 0
        %814 = vmatpush.bf16.msra.mxu0 0
        %815 = vmatpush.bf16.msra.mxu0 0
        %816 = vmatpush.bf16.msra.mxu0 0
        %817 = vmatpush.bf16.msra.mxu0 0
        %818 = vmatpush.bf16.msra.mxu0 0
        %819 = vmatpush.bf16.msra.mxu0 %v751
        %820 = vmatmul.bf16.gmra.mxu0 %v771
        %v821 = vpop.f32.mrf.mxu0
        %v822 = vadd.f32 %v809, %v821
        %v823 = vpop.f32.mrf.mxu0
        %824 = vdwg.mxu0
        %v825 = vadd.s32 %v394, 2
        %vm826 = vcmp.eq.s32.totalorder %v393, %v825
        %v827 = vsel %vm826, 1.0, 0.0
        %v828 = vpack.c.bf16 %v827, %v827
        %v830 = vsel %vm423, %v828, 0
        %832 = vmatpush.bf16.msra.mxu0 0
        %833 = vmatpush.bf16.msra.mxu0 0
        %834 = vmatpush.bf16.msra.mxu0 0
        %835 = vmatpush.bf16.msra.mxu0 0
        %836 = vmatpush.bf16.msra.mxu0 0
        %837 = vmatpush.bf16.msra.mxu0 %v429
        %838 = vmatpush.bf16.msra.mxu0 %v415
        %839 = vmatpush.bf16.msra.mxu0 %v413
        %840 = vmatmul.bf16.gmra.mxu0 %v830
        %v841 = vpop.f32.mrf.mxu0
        %v842 = vadd.f32 0.0, %v841
        %v843 = vpop.f32.mrf.mxu0
        %844 = vdwg.mxu0
        %845 = vmatpush.bf16.msra.mxu0 0
        %846 = vmatpush.bf16.msra.mxu0 0
        %847 = vmatpush.bf16.msra.mxu0 0
        %848 = vmatpush.bf16.msra.mxu0 0
        %849 = vmatpush.bf16.msra.mxu0 0
        %850 = vmatpush.bf16.msra.mxu0 %v432
        %851 = vmatpush.bf16.msra.mxu0 %v416
        %852 = vmatpush.bf16.msra.mxu0 %v414
        %853 = vmatmul.bf16.gmra.mxu0 %v830
        %v854 = vpop.f32.mrf.mxu0
        %v855 = vadd.f32 0.0, %v854
        %v856 = vpop.f32.mrf.mxu0
        %857 = vdwg.mxu0
        %v858 = vpack.c.bf16 %v842, %v842
        %v859 = vpack.c.bf16 %v855, %v855
        %s860 = scalar_lea.vmem %s1, 288
        %v861 = vld [vmem:[%s860] sm:$0xff]
        %v862 = vld [vmem:[%s860 + $0x8] sm:$0xff]
        %v863 = vld [vmem:[%s860 + $0x10] sm:$0xff]
        %v864 = vld [vmem:[%s860 + $0x18] sm:$0xff]
        %v865 = vld [vmem:[%s860 + $0x20] sm:$0xff]
        %v866 = vld [vmem:[%s860 + $0x28] sm:$0xff]
        %v867 = vld [vmem:[%s860 + $0x30] sm:$0xff]
        %v868 = vld [vmem:[%s860 + $0x38] sm:$0xff]
        %v869 = vld [vmem:[%s860 + $0x40] sm:$0xff]
        %v870 = vld [vmem:[%s860 + $0x48] sm:$0xff]
        %v871 = vld [vmem:[%s860 + $0x50] sm:$0xff]
        %v872 = vld [vmem:[%s860 + $0x58] sm:$0xff]
        %v873 = vld [vmem:[%s860 + $0x60] sm:$0xff]
        %v874 = vld [vmem:[%s860 + $0x68] sm:$0xff]
        %v875 = vld [vmem:[%s860 + $0x70] sm:$0xff]
        %v876 = vld [vmem:[%s860 + $0x78] sm:$0xff]
        %v877 = vld [vmem:[%s860 + $0x80] sm:$0xff]
        %v878 = vld [vmem:[%s860 + $0x88] sm:$0xff]
        %v897 = vunpack.c.l.b16 %v861
        %v898 = vunpack.c.h.b16 %v861
        %v899 = vunpack.c.l.b16 %v862
        %v900 = vunpack.c.h.b16 %v862
        %v901 = vunpack.c.l.b16 %v863
        %v902 = vunpack.c.h.b16 %v863
        %v903 = vunpack.c.l.b16 %v864
        %v904 = vunpack.c.h.b16 %v864
        %v905 = vunpack.c.l.b16 %v865
        %v906 = vunpack.c.h.b16 %v865
        %v907 = vunpack.c.l.b16 %v866
        %v908 = vunpack.c.h.b16 %v866
        %v909 = vunpack.c.l.b16 %v867
        %v910 = vunpack.c.h.b16 %v867
        %v911 = vunpack.c.l.b16 %v868
        %v912 = vunpack.c.h.b16 %v868
        %v913 = vunpack.c.l.b16 %v869
        %v914 = vunpack.c.h.b16 %v869
        %v915 = vunpack.c.l.b16 %v870
        %v916 = vunpack.c.h.b16 %v870
        %v917 = vunpack.c.l.b16 %v871
        %v918 = vunpack.c.h.b16 %v871
        %v919 = vunpack.c.l.b16 %v872
        %v920 = vunpack.c.h.b16 %v872
        %v921 = vunpack.c.l.b16 %v873
        %v922 = vunpack.c.h.b16 %v873
        %v923 = vunpack.c.l.b16 %v874
        %v924 = vunpack.c.h.b16 %v874
        %v925 = vunpack.c.l.b16 %v875
        %v926 = vunpack.c.h.b16 %v875
        %v927 = vunpack.c.l.b16 %v876
        %v928 = vunpack.c.h.b16 %v876
        %v929 = vunpack.c.l.b16 %v877
        %v930 = vunpack.c.h.b16 %v877
        %v931 = vunpack.c.l.b16 %v878
        %v932 = vunpack.c.h.b16 %v878
        %v933 = vpack.c.b16 %v899, %v897
        %v934 = vpack.c.b16 %v900, %v898
        %v935 = vpack.c.b16 %v903, %v901
        %v936 = vpack.c.b16 %v904, %v902
        %v937 = vpack.c.b16 %v907, %v905
        %v938 = vpack.c.b16 %v908, %v906
        %v939 = vpack.c.b16 %v911, %v909
        %v940 = vpack.c.b16 %v912, %v910
        %v941 = vpack.c.b16 %v915, %v913
        %v942 = vpack.c.b16 %v916, %v914
        %v943 = vpack.c.b16 %v919, %v917
        %v944 = vpack.c.b16 %v920, %v918
        %v945 = vpack.c.b16 %v923, %v921
        %v946 = vpack.c.b16 %v924, %v922
        %v947 = vpack.c.b16 %v927, %v925
        %v948 = vpack.c.b16 %v928, %v926
        %v949 = vpack.c.b16 %v931, %v929
        %v950 = vpack.c.b16 %v932, %v930
        %v970 = vsel %vm624, %v859, 0
        %972 = vmatpush.bf16.msra.mxu0 %v947
        %973 = vmatpush.bf16.msra.mxu0 %v945
        %974 = vmatpush.bf16.msra.mxu0 %v943
        %975 = vmatpush.bf16.msra.mxu0 %v941
        %976 = vmatpush.bf16.msra.mxu0 %v939
        %977 = vmatpush.bf16.msra.mxu0 %v937
        %978 = vmatpush.bf16.msra.mxu0 %v935
        %979 = vmatpush.bf16.msra.mxu0 %v933
        %980 = vmatmul.bf16.gmra.mxu0 %v858
        %v981 = vpop.f32.mrf.mxu0
        %v982 = vadd.f32 0.0, %v981
        %v983 = vpop.f32.mrf.mxu0
        %984 = vdwg.mxu0
        %985 = vmatpush.bf16.msra.mxu0 0
        %986 = vmatpush.bf16.msra.mxu0 0
        %987 = vmatpush.bf16.msra.mxu0 0
        %988 = vmatpush.bf16.msra.mxu0 0
        %989 = vmatpush.bf16.msra.mxu0 0
        %990 = vmatpush.bf16.msra.mxu0 0
        %991 = vmatpush.bf16.msra.mxu0 0
        %992 = vmatpush.bf16.msra.mxu0 %v949
        %993 = vmatmul.bf16.gmra.mxu0 %v970
        %v994 = vpop.f32.mrf.mxu0
        %v995 = vadd.f32 %v982, %v994
        %v996 = vpop.f32.mrf.mxu0
        %997 = vdwg.mxu0
        %998 = vmatpush.bf16.msra.mxu0 %v948
        %999 = vmatpush.bf16.msra.mxu0 %v946
        %1000 = vmatpush.bf16.msra.mxu0 %v944
        %1001 = vmatpush.bf16.msra.mxu0 %v942
        %1002 = vmatpush.bf16.msra.mxu0 %v940
        %1003 = vmatpush.bf16.msra.mxu0 %v938
        %1004 = vmatpush.bf16.msra.mxu0 %v936
        %1005 = vmatpush.bf16.msra.mxu0 %v934
        %1006 = vmatmul.bf16.gmra.mxu0 %v858
        %v1007 = vpop.f32.mrf.mxu0
        %v1008 = vadd.f32 0.0, %v1007
        %v1009 = vpop.f32.mrf.mxu0
        %1010 = vdwg.mxu0
        %1011 = vmatpush.bf16.msra.mxu0 0
        %1012 = vmatpush.bf16.msra.mxu0 0
        %1013 = vmatpush.bf16.msra.mxu0 0
        %1014 = vmatpush.bf16.msra.mxu0 0
        %1015 = vmatpush.bf16.msra.mxu0 0
        %1016 = vmatpush.bf16.msra.mxu0 0
        %1017 = vmatpush.bf16.msra.mxu0 0
        %1018 = vmatpush.bf16.msra.mxu0 %v950
        %1019 = vmatmul.bf16.gmra.mxu0 %v970
        %v1020 = vpop.f32.mrf.mxu0
        %v1021 = vadd.f32 %v1008, %v1020
        %v1022 = vpop.f32.mrf.mxu0
        %1023 = vdwg.mxu0
        %v1024 = vadd.f32 %v796, %v995
        %v1025 = vadd.f32 %v822, %v1021
        %v1026 = vadd.s32 %v394, 3
        %vm1027 = vcmp.eq.s32.totalorder %v393, %v1026
        %v1028 = vsel %vm1027, 1.0, 0.0
        %v1029 = vpack.c.bf16 %v1028, %v1028
        %v1031 = vsel %vm423, %v1029, 0
        %1033 = vmatpush.bf16.msra.mxu0 0
        %1034 = vmatpush.bf16.msra.mxu0 0
        %1035 = vmatpush.bf16.msra.mxu0 0
        %1036 = vmatpush.bf16.msra.mxu0 0
        %1037 = vmatpush.bf16.msra.mxu0 0
        %1038 = vmatpush.bf16.msra.mxu0 %v429
        %1039 = vmatpush.bf16.msra.mxu0 %v415
        %1040 = vmatpush.bf16.msra.mxu0 %v413
        %1041 = vmatmul.bf16.gmra.mxu0 %v1031
        %v1042 = vpop.f32.mrf.mxu0
        %v1043 = vadd.f32 0.0, %v1042
        %v1044 = vpop.f32.mrf.mxu0
        %1045 = vdwg.mxu0
        %1046 = vmatpush.bf16.msra.mxu0 0
        %1047 = vmatpush.bf16.msra.mxu0 0
        %1048 = vmatpush.bf16.msra.mxu0 0
        %1049 = vmatpush.bf16.msra.mxu0 0
        %1050 = vmatpush.bf16.msra.mxu0 0
        %1051 = vmatpush.bf16.msra.mxu0 %v432
        %1052 = vmatpush.bf16.msra.mxu0 %v416
        %1053 = vmatpush.bf16.msra.mxu0 %v414
        %1054 = vmatmul.bf16.gmra.mxu0 %v1031
        %v1055 = vpop.f32.mrf.mxu0
        %v1056 = vadd.f32 0.0, %v1055
        %v1057 = vpop.f32.mrf.mxu0
        %1058 = vdwg.mxu0
        %v1059 = vpack.c.bf16 %v1043, %v1043
        %v1060 = vpack.c.bf16 %v1056, %v1056
        %s1061 = scalar_lea.vmem %s1, 432
        %v1062 = vld [vmem:[%s1061] sm:$0xff]
        %v1063 = vld [vmem:[%s1061 + $0x8] sm:$0xff]
        %v1064 = vld [vmem:[%s1061 + $0x10] sm:$0xff]
        %v1065 = vld [vmem:[%s1061 + $0x18] sm:$0xff]
        %v1066 = vld [vmem:[%s1061 + $0x20] sm:$0xff]
        %v1067 = vld [vmem:[%s1061 + $0x28] sm:$0xff]
        %v1068 = vld [vmem:[%s1061 + $0x30] sm:$0xff]
        %v1069 = vld [vmem:[%s1061 + $0x38] sm:$0xff]
        %v1070 = vld [vmem:[%s1061 + $0x40] sm:$0xff]
        %v1071 = vld [vmem:[%s1061 + $0x48] sm:$0xff]
        %v1072 = vld [vmem:[%s1061 + $0x50] sm:$0xff]
        %v1073 = vld [vmem:[%s1061 + $0x58] sm:$0xff]
        %v1074 = vld [vmem:[%s1061 + $0x60] sm:$0xff]
        %v1075 = vld [vmem:[%s1061 + $0x68] sm:$0xff]
        %v1076 = vld [vmem:[%s1061 + $0x70] sm:$0xff]
        %v1077 = vld [vmem:[%s1061 + $0x78] sm:$0xff]
        %v1078 = vld [vmem:[%s1061 + $0x80] sm:$0xff]
        %v1079 = vld [vmem:[%s1061 + $0x88] sm:$0xff]
        %v1098 = vunpack.c.l.b16 %v1062
        %v1099 = vunpack.c.h.b16 %v1062
        %v1100 = vunpack.c.l.b16 %v1063
        %v1101 = vunpack.c.h.b16 %v1063
        %v1102 = vunpack.c.l.b16 %v1064
        %v1103 = vunpack.c.h.b16 %v1064
        %v1104 = vunpack.c.l.b16 %v1065
        %v1105 = vunpack.c.h.b16 %v1065
        %v1106 = vunpack.c.l.b16 %v1066
        %v1107 = vunpack.c.h.b16 %v1066
        %v1108 = vunpack.c.l.b16 %v1067
        %v1109 = vunpack.c.h.b16 %v1067
        %v1110 = vunpack.c.l.b16 %v1068
        %v1111 = vunpack.c.h.b16 %v1068
        %v1112 = vunpack.c.l.b16 %v1069
        %v1113 = vunpack.c.h.b16 %v1069
        %v1114 = vunpack.c.l.b16 %v1070
        %v1115 = vunpack.c.h.b16 %v1070
        %v1116 = vunpack.c.l.b16 %v1071
        %v1117 = vunpack.c.h.b16 %v1071
        %v1118 = vunpack.c.l.b16 %v1072
        %v1119 = vunpack.c.h.b16 %v1072
        %v1120 = vunpack.c.l.b16 %v1073
        %v1121 = vunpack.c.h.b16 %v1073
        %v1122 = vunpack.c.l.b16 %v1074
        %v1123 = vunpack.c.h.b16 %v1074
        %v1124 = vunpack.c.l.b16 %v1075
        %v1125 = vunpack.c.h.b16 %v1075
        %v1126 = vunpack.c.l.b16 %v1076
        %v1127 = vunpack.c.h.b16 %v1076
        %v1128 = vunpack.c.l.b16 %v1077
        %v1129 = vunpack.c.h.b16 %v1077
        %v1130 = vunpack.c.l.b16 %v1078
        %v1131 = vunpack.c.h.b16 %v1078
        %v1132 = vunpack.c.l.b16 %v1079
        %v1133 = vunpack.c.h.b16 %v1079
        %v1134 = vpack.c.b16 %v1100, %v1098
        %v1135 = vpack.c.b16 %v1101, %v1099
        %v1136 = vpack.c.b16 %v1104, %v1102
        %v1137 = vpack.c.b16 %v1105, %v1103
        %v1138 = vpack.c.b16 %v1108, %v1106
        %v1139 = vpack.c.b16 %v1109, %v1107
        %v1140 = vpack.c.b16 %v1112, %v1110
        %v1141 = vpack.c.b16 %v1113, %v1111
        %v1142 = vpack.c.b16 %v1116, %v1114
        %v1143 = vpack.c.b16 %v1117, %v1115
        %v1144 = vpack.c.b16 %v1120, %v1118
        %v1145 = vpack.c.b16 %v1121, %v1119
        %v1146 = vpack.c.b16 %v1124, %v1122
        %v1147 = vpack.c.b16 %v1125, %v1123
        %v1148 = vpack.c.b16 %v1128, %v1126
        %v1149 = vpack.c.b16 %v1129, %v1127
        %v1150 = vpack.c.b16 %v1132, %v1130
        %v1151 = vpack.c.b16 %v1133, %v1131
        %v1171 = vsel %vm624, %v1060, 0
        %1173 = vmatpush.bf16.msra.mxu0 %v1148
        %1174 = vmatpush.bf16.msra.mxu0 %v1146
        %1175 = vmatpush.bf16.msra.mxu0 %v1144
        %1176 = vmatpush.bf16.msra.mxu0 %v1142
        %1177 = vmatpush.bf16.msra.mxu0 %v1140
        %1178 = vmatpush.bf16.msra.mxu0 %v1138
        %1179 = vmatpush.bf16.msra.mxu0 %v1136
        %1180 = vmatpush.bf16.msra.mxu0 %v1134
        %1181 = vmatmul.bf16.gmra.mxu0 %v1059
        %v1182 = vpop.f32.mrf.mxu0
        %v1183 = vadd.f32 0.0, %v1182
        %v1184 = vpop.f32.mrf.mxu0
        %1185 = vdwg.mxu0
        %1186 = vmatpush.bf16.msra.mxu0 0
        %1187 = vmatpush.bf16.msra.mxu0 0
        %1188 = vmatpush.bf16.msra.mxu0 0
        %1189 = vmatpush.bf16.msra.mxu0 0
        %1190 = vmatpush.bf16.msra.mxu0 0
        %1191 = vmatpush.bf16.msra.mxu0 0
        %1192 = vmatpush.bf16.msra.mxu0 0
        %1193 = vmatpush.bf16.msra.mxu0 %v1150
        %1194 = vmatmul.bf16.gmra.mxu0 %v1171
        %v1195 = vpop.f32.mrf.mxu0
        %v1196 = vadd.f32 %v1183, %v1195
        %v1197 = vpop.f32.mrf.mxu0
        %1198 = vdwg.mxu0
        %1199 = vmatpush.bf16.msra.mxu0 %v1149
        %1200 = vmatpush.bf16.msra.mxu0 %v1147
        %1201 = vmatpush.bf16.msra.mxu0 %v1145
        %1202 = vmatpush.bf16.msra.mxu0 %v1143
        %1203 = vmatpush.bf16.msra.mxu0 %v1141
        %1204 = vmatpush.bf16.msra.mxu0 %v1139
        %1205 = vmatpush.bf16.msra.mxu0 %v1137
        %1206 = vmatpush.bf16.msra.mxu0 %v1135
        %1207 = vmatmul.bf16.gmra.mxu0 %v1059
        %v1208 = vpop.f32.mrf.mxu0
        %v1209 = vadd.f32 0.0, %v1208
        %v1210 = vpop.f32.mrf.mxu0
        %1211 = vdwg.mxu0
        %1212 = vmatpush.bf16.msra.mxu0 0
        %1213 = vmatpush.bf16.msra.mxu0 0
        %1214 = vmatpush.bf16.msra.mxu0 0
        %1215 = vmatpush.bf16.msra.mxu0 0
        %1216 = vmatpush.bf16.msra.mxu0 0
        %1217 = vmatpush.bf16.msra.mxu0 0
        %1218 = vmatpush.bf16.msra.mxu0 0
        %1219 = vmatpush.bf16.msra.mxu0 %v1151
        %1220 = vmatmul.bf16.gmra.mxu0 %v1171
        %v1221 = vpop.f32.mrf.mxu0
        %v1222 = vadd.f32 %v1209, %v1221
        %v1223 = vpop.f32.mrf.mxu0
        %1224 = vdwg.mxu0
        %v1225 = vadd.f32 %v1024, %v1196
        %v1226 = vadd.f32 %v1025, %v1222
        %v1227 = vadd.s32 %v394, 4
        %vm1228 = vcmp.eq.s32.totalorder %v393, %v1227
        %v1229 = vsel %vm1228, 1.0, 0.0
        %v1230 = vpack.c.bf16 %v1229, %v1229
        %v1232 = vsel %vm423, %v1230, 0
        %1234 = vmatpush.bf16.msra.mxu0 0
        %1235 = vmatpush.bf16.msra.mxu0 0
        %1236 = vmatpush.bf16.msra.mxu0 0
        %1237 = vmatpush.bf16.msra.mxu0 0
        %1238 = vmatpush.bf16.msra.mxu0 0
        %1239 = vmatpush.bf16.msra.mxu0 %v429
        %1240 = vmatpush.bf16.msra.mxu0 %v415
        %1241 = vmatpush.bf16.msra.mxu0 %v413
        %1242 = vmatmul.bf16.gmra.mxu0 %v1232
        %v1243 = vpop.f32.mrf.mxu0
        %v1244 = vadd.f32 0.0, %v1243
        %v1245 = vpop.f32.mrf.mxu0
        %1246 = vdwg.mxu0
        %1247 = vmatpush.bf16.msra.mxu0 0
        %1248 = vmatpush.bf16.msra.mxu0 0
        %1249 = vmatpush.bf16.msra.mxu0 0
        %1250 = vmatpush.bf16.msra.mxu0 0
        %1251 = vmatpush.bf16.msra.mxu0 0
        %1252 = vmatpush.bf16.msra.mxu0 %v432
        %1253 = vmatpush.bf16.msra.mxu0 %v416
        %1254 = vmatpush.bf16.msra.mxu0 %v414
        %1255 = vmatmul.bf16.gmra.mxu0 %v1232
        %v1256 = vpop.f32.mrf.mxu0
        %v1257 = vadd.f32 0.0, %v1256
        %v1258 = vpop.f32.mrf.mxu0
        %1259 = vdwg.mxu0
        %v1260 = vpack.c.bf16 %v1244, %v1244
        %v1261 = vpack.c.bf16 %v1257, %v1257
        %s1262 = scalar_lea.vmem %s1, 576
        %v1263 = vld [vmem:[%s1262] sm:$0xff]
        %v1264 = vld [vmem:[%s1262 + $0x8] sm:$0xff]
        %v1265 = vld [vmem:[%s1262 + $0x10] sm:$0xff]
        %v1266 = vld [vmem:[%s1262 + $0x18] sm:$0xff]
        %v1267 = vld [vmem:[%s1262 + $0x20] sm:$0xff]
        %v1268 = vld [vmem:[%s1262 + $0x28] sm:$0xff]
        %v1269 = vld [vmem:[%s1262 + $0x30] sm:$0xff]
        %v1270 = vld [vmem:[%s1262 + $0x38] sm:$0xff]
        %v1271 = vld [vmem:[%s1262 + $0x40] sm:$0xff]
        %v1272 = vld [vmem:[%s1262 + $0x48] sm:$0xff]
        %v1273 = vld [vmem:[%s1262 + $0x50] sm:$0xff]
        %v1274 = vld [vmem:[%s1262 + $0x58] sm:$0xff]
        %v1275 = vld [vmem:[%s1262 + $0x60] sm:$0xff]
        %v1276 = vld [vmem:[%s1262 + $0x68] sm:$0xff]
        %v1277 = vld [vmem:[%s1262 + $0x70] sm:$0xff]
        %v1278 = vld [vmem:[%s1262 + $0x78] sm:$0xff]
        %v1279 = vld [vmem:[%s1262 + $0x80] sm:$0xff]
        %v1280 = vld [vmem:[%s1262 + $0x88] sm:$0xff]
        %v1299 = vunpack.c.l.b16 %v1263
        %v1300 = vunpack.c.h.b16 %v1263
        %v1301 = vunpack.c.l.b16 %v1264
        %v1302 = vunpack.c.h.b16 %v1264
        %v1303 = vunpack.c.l.b16 %v1265
        %v1304 = vunpack.c.h.b16 %v1265
        %v1305 = vunpack.c.l.b16 %v1266
        %v1306 = vunpack.c.h.b16 %v1266
        %v1307 = vunpack.c.l.b16 %v1267
        %v1308 = vunpack.c.h.b16 %v1267
        %v1309 = vunpack.c.l.b16 %v1268
        %v1310 = vunpack.c.h.b16 %v1268
        %v1311 = vunpack.c.l.b16 %v1269
        %v1312 = vunpack.c.h.b16 %v1269
        %v1313 = vunpack.c.l.b16 %v1270
        %v1314 = vunpack.c.h.b16 %v1270
        %v1315 = vunpack.c.l.b16 %v1271
        %v1316 = vunpack.c.h.b16 %v1271
        %v1317 = vunpack.c.l.b16 %v1272
        %v1318 = vunpack.c.h.b16 %v1272
        %v1319 = vunpack.c.l.b16 %v1273
        %v1320 = vunpack.c.h.b16 %v1273
        %v1321 = vunpack.c.l.b16 %v1274
        %v1322 = vunpack.c.h.b16 %v1274
        %v1323 = vunpack.c.l.b16 %v1275
        %v1324 = vunpack.c.h.b16 %v1275
        %v1325 = vunpack.c.l.b16 %v1276
        %v1326 = vunpack.c.h.b16 %v1276
        %v1327 = vunpack.c.l.b16 %v1277
        %v1328 = vunpack.c.h.b16 %v1277
        %v1329 = vunpack.c.l.b16 %v1278
        %v1330 = vunpack.c.h.b16 %v1278
        %v1331 = vunpack.c.l.b16 %v1279
        %v1332 = vunpack.c.h.b16 %v1279
        %v1333 = vunpack.c.l.b16 %v1280
        %v1334 = vunpack.c.h.b16 %v1280
        %v1335 = vpack.c.b16 %v1301, %v1299
        %v1336 = vpack.c.b16 %v1302, %v1300
        %v1337 = vpack.c.b16 %v1305, %v1303
        %v1338 = vpack.c.b16 %v1306, %v1304
        %v1339 = vpack.c.b16 %v1309, %v1307
        %v1340 = vpack.c.b16 %v1310, %v1308
        %v1341 = vpack.c.b16 %v1313, %v1311
        %v1342 = vpack.c.b16 %v1314, %v1312
        %v1343 = vpack.c.b16 %v1317, %v1315
        %v1344 = vpack.c.b16 %v1318, %v1316
        %v1345 = vpack.c.b16 %v1321, %v1319
        %v1346 = vpack.c.b16 %v1322, %v1320
        %v1347 = vpack.c.b16 %v1325, %v1323
        %v1348 = vpack.c.b16 %v1326, %v1324
        %v1349 = vpack.c.b16 %v1329, %v1327
        %v1350 = vpack.c.b16 %v1330, %v1328
        %v1351 = vpack.c.b16 %v1333, %v1331
        %v1352 = vpack.c.b16 %v1334, %v1332
        %v1372 = vsel %vm624, %v1261, 0
        %1374 = vmatpush.bf16.msra.mxu0 %v1349
        %1375 = vmatpush.bf16.msra.mxu0 %v1347
        %1376 = vmatpush.bf16.msra.mxu0 %v1345
        %1377 = vmatpush.bf16.msra.mxu0 %v1343
        %1378 = vmatpush.bf16.msra.mxu0 %v1341
        %1379 = vmatpush.bf16.msra.mxu0 %v1339
        %1380 = vmatpush.bf16.msra.mxu0 %v1337
        %1381 = vmatpush.bf16.msra.mxu0 %v1335
        %1382 = vmatmul.bf16.gmra.mxu0 %v1260
        %v1383 = vpop.f32.mrf.mxu0
        %v1384 = vadd.f32 0.0, %v1383
        %v1385 = vpop.f32.mrf.mxu0
        %1386 = vdwg.mxu0
        %1387 = vmatpush.bf16.msra.mxu0 0
        %1388 = vmatpush.bf16.msra.mxu0 0
        %1389 = vmatpush.bf16.msra.mxu0 0
        %1390 = vmatpush.bf16.msra.mxu0 0
        %1391 = vmatpush.bf16.msra.mxu0 0
        %1392 = vmatpush.bf16.msra.mxu0 0
        %1393 = vmatpush.bf16.msra.mxu0 0
        %1394 = vmatpush.bf16.msra.mxu0 %v1351
        %1395 = vmatmul.bf16.gmra.mxu0 %v1372
        %v1396 = vpop.f32.mrf.mxu0
        %v1397 = vadd.f32 %v1384, %v1396
        %v1398 = vpop.f32.mrf.mxu0
        %1399 = vdwg.mxu0
        %1400 = vmatpush.bf16.msra.mxu0 %v1350
        %1401 = vmatpush.bf16.msra.mxu0 %v1348
        %1402 = vmatpush.bf16.msra.mxu0 %v1346
        %1403 = vmatpush.bf16.msra.mxu0 %v1344
        %1404 = vmatpush.bf16.msra.mxu0 %v1342
        %1405 = vmatpush.bf16.msra.mxu0 %v1340
        %1406 = vmatpush.bf16.msra.mxu0 %v1338
        %1407 = vmatpush.bf16.msra.mxu0 %v1336
        %1408 = vmatmul.bf16.gmra.mxu0 %v1260
        %v1409 = vpop.f32.mrf.mxu0
        %v1410 = vadd.f32 0.0, %v1409
        %v1411 = vpop.f32.mrf.mxu0
        %1412 = vdwg.mxu0
        %1413 = vmatpush.bf16.msra.mxu0 0
        %1414 = vmatpush.bf16.msra.mxu0 0
        %1415 = vmatpush.bf16.msra.mxu0 0
        %1416 = vmatpush.bf16.msra.mxu0 0
        %1417 = vmatpush.bf16.msra.mxu0 0
        %1418 = vmatpush.bf16.msra.mxu0 0
        %1419 = vmatpush.bf16.msra.mxu0 0
        %1420 = vmatpush.bf16.msra.mxu0 %v1352
        %1421 = vmatmul.bf16.gmra.mxu0 %v1372
        %v1422 = vpop.f32.mrf.mxu0
        %v1423 = vadd.f32 %v1410, %v1422
        %v1424 = vpop.f32.mrf.mxu0
        %1425 = vdwg.mxu0
        %v1426 = vadd.f32 %v1225, %v1397
        %v1427 = vadd.f32 %v1226, %v1423
        %v1428 = vadd.s32 %v394, 5
        %vm1429 = vcmp.eq.s32.totalorder %v393, %v1428
        %v1430 = vsel %vm1429, 1.0, 0.0
        %v1431 = vpack.c.bf16 %v1430, %v1430
        %v1433 = vsel %vm423, %v1431, 0
        %1435 = vmatpush.bf16.msra.mxu0 0
        %1436 = vmatpush.bf16.msra.mxu0 0
        %1437 = vmatpush.bf16.msra.mxu0 0
        %1438 = vmatpush.bf16.msra.mxu0 0
        %1439 = vmatpush.bf16.msra.mxu0 0
        %1440 = vmatpush.bf16.msra.mxu0 %v429
        %1441 = vmatpush.bf16.msra.mxu0 %v415
        %1442 = vmatpush.bf16.msra.mxu0 %v413
        %1443 = vmatmul.bf16.gmra.mxu0 %v1433
        %v1444 = vpop.f32.mrf.mxu0
        %v1445 = vadd.f32 0.0, %v1444
        %v1446 = vpop.f32.mrf.mxu0
        %1447 = vdwg.mxu0
        %1448 = vmatpush.bf16.msra.mxu0 0
        %1449 = vmatpush.bf16.msra.mxu0 0
        %1450 = vmatpush.bf16.msra.mxu0 0
        %1451 = vmatpush.bf16.msra.mxu0 0
        %1452 = vmatpush.bf16.msra.mxu0 0
        %1453 = vmatpush.bf16.msra.mxu0 %v432
        %1454 = vmatpush.bf16.msra.mxu0 %v416
        %1455 = vmatpush.bf16.msra.mxu0 %v414
        %1456 = vmatmul.bf16.gmra.mxu0 %v1433
        %v1457 = vpop.f32.mrf.mxu0
        %v1458 = vadd.f32 0.0, %v1457
        %v1459 = vpop.f32.mrf.mxu0
        %1460 = vdwg.mxu0
        %v1461 = vpack.c.bf16 %v1445, %v1445
        %v1462 = vpack.c.bf16 %v1458, %v1458
        %s1463 = scalar_lea.vmem %s1, 720
        %v1464 = vld [vmem:[%s1463] sm:$0xff]
        %v1465 = vld [vmem:[%s1463 + $0x8] sm:$0xff]
        %v1466 = vld [vmem:[%s1463 + $0x10] sm:$0xff]
        %v1467 = vld [vmem:[%s1463 + $0x18] sm:$0xff]
        %v1468 = vld [vmem:[%s1463 + $0x20] sm:$0xff]
        %v1469 = vld [vmem:[%s1463 + $0x28] sm:$0xff]
        %v1470 = vld [vmem:[%s1463 + $0x30] sm:$0xff]
        %v1471 = vld [vmem:[%s1463 + $0x38] sm:$0xff]
        %v1472 = vld [vmem:[%s1463 + $0x40] sm:$0xff]
        %v1473 = vld [vmem:[%s1463 + $0x48] sm:$0xff]
        %v1474 = vld [vmem:[%s1463 + $0x50] sm:$0xff]
        %v1475 = vld [vmem:[%s1463 + $0x58] sm:$0xff]
        %v1476 = vld [vmem:[%s1463 + $0x60] sm:$0xff]
        %v1477 = vld [vmem:[%s1463 + $0x68] sm:$0xff]
        %v1478 = vld [vmem:[%s1463 + $0x70] sm:$0xff]
        %v1479 = vld [vmem:[%s1463 + $0x78] sm:$0xff]
        %v1480 = vld [vmem:[%s1463 + $0x80] sm:$0xff]
        %v1481 = vld [vmem:[%s1463 + $0x88] sm:$0xff]
        %v1500 = vunpack.c.l.b16 %v1464
        %v1501 = vunpack.c.h.b16 %v1464
        %v1502 = vunpack.c.l.b16 %v1465
        %v1503 = vunpack.c.h.b16 %v1465
        %v1504 = vunpack.c.l.b16 %v1466
        %v1505 = vunpack.c.h.b16 %v1466
        %v1506 = vunpack.c.l.b16 %v1467
        %v1507 = vunpack.c.h.b16 %v1467
        %v1508 = vunpack.c.l.b16 %v1468
        %v1509 = vunpack.c.h.b16 %v1468
        %v1510 = vunpack.c.l.b16 %v1469
        %v1511 = vunpack.c.h.b16 %v1469
        %v1512 = vunpack.c.l.b16 %v1470
        %v1513 = vunpack.c.h.b16 %v1470
        %v1514 = vunpack.c.l.b16 %v1471
        %v1515 = vunpack.c.h.b16 %v1471
        %v1516 = vunpack.c.l.b16 %v1472
        %v1517 = vunpack.c.h.b16 %v1472
        %v1518 = vunpack.c.l.b16 %v1473
        %v1519 = vunpack.c.h.b16 %v1473
        %v1520 = vunpack.c.l.b16 %v1474
        %v1521 = vunpack.c.h.b16 %v1474
        %v1522 = vunpack.c.l.b16 %v1475
        %v1523 = vunpack.c.h.b16 %v1475
        %v1524 = vunpack.c.l.b16 %v1476
        %v1525 = vunpack.c.h.b16 %v1476
        %v1526 = vunpack.c.l.b16 %v1477
        %v1527 = vunpack.c.h.b16 %v1477
        %v1528 = vunpack.c.l.b16 %v1478
        %v1529 = vunpack.c.h.b16 %v1478
        %v1530 = vunpack.c.l.b16 %v1479
        %v1531 = vunpack.c.h.b16 %v1479
        %v1532 = vunpack.c.l.b16 %v1480
        %v1533 = vunpack.c.h.b16 %v1480
        %v1534 = vunpack.c.l.b16 %v1481
        %v1535 = vunpack.c.h.b16 %v1481
        %v1536 = vpack.c.b16 %v1502, %v1500
        %v1537 = vpack.c.b16 %v1503, %v1501
        %v1538 = vpack.c.b16 %v1506, %v1504
        %v1539 = vpack.c.b16 %v1507, %v1505
        %v1540 = vpack.c.b16 %v1510, %v1508
        %v1541 = vpack.c.b16 %v1511, %v1509
        %v1542 = vpack.c.b16 %v1514, %v1512
        %v1543 = vpack.c.b16 %v1515, %v1513
        %v1544 = vpack.c.b16 %v1518, %v1516
        %v1545 = vpack.c.b16 %v1519, %v1517
        %v1546 = vpack.c.b16 %v1522, %v1520
        %v1547 = vpack.c.b16 %v1523, %v1521
        %v1548 = vpack.c.b16 %v1526, %v1524
        %v1549 = vpack.c.b16 %v1527, %v1525
        %v1550 = vpack.c.b16 %v1530, %v1528
        %v1551 = vpack.c.b16 %v1531, %v1529
        %v1552 = vpack.c.b16 %v1534, %v1532
        %v1553 = vpack.c.b16 %v1535, %v1533
        %v1573 = vsel %vm624, %v1462, 0
        %1575 = vmatpush.bf16.msra.mxu0 %v1550
        %1576 = vmatpush.bf16.msra.mxu0 %v1548
        %1577 = vmatpush.bf16.msra.mxu0 %v1546
        %1578 = vmatpush.bf16.msra.mxu0 %v1544
        %1579 = vmatpush.bf16.msra.mxu0 %v1542
        %1580 = vmatpush.bf16.msra.mxu0 %v1540
        %1581 = vmatpush.bf16.msra.mxu0 %v1538
        %1582 = vmatpush.bf16.msra.mxu0 %v1536
        %1583 = vmatmul.bf16.gmra.mxu0 %v1461
        %v1584 = vpop.f32.mrf.mxu0
        %v1585 = vadd.f32 0.0, %v1584
        %v1586 = vpop.f32.mrf.mxu0
        %1587 = vdwg.mxu0
        %1588 = vmatpush.bf16.msra.mxu0 0
        %1589 = vmatpush.bf16.msra.mxu0 0
        %1590 = vmatpush.bf16.msra.mxu0 0
        %1591 = vmatpush.bf16.msra.mxu0 0
        %1592 = vmatpush.bf16.msra.mxu0 0
        %1593 = vmatpush.bf16.msra.mxu0 0
        %1594 = vmatpush.bf16.msra.mxu0 0
        %1595 = vmatpush.bf16.msra.mxu0 %v1552
        %1596 = vmatmul.bf16.gmra.mxu0 %v1573
        %v1597 = vpop.f32.mrf.mxu0
        %v1598 = vadd.f32 %v1585, %v1597
        %v1599 = vpop.f32.mrf.mxu0
        %1600 = vdwg.mxu0
        %1601 = vmatpush.bf16.msra.mxu0 %v1551
        %1602 = vmatpush.bf16.msra.mxu0 %v1549
        %1603 = vmatpush.bf16.msra.mxu0 %v1547
        %1604 = vmatpush.bf16.msra.mxu0 %v1545
        %1605 = vmatpush.bf16.msra.mxu0 %v1543
        %1606 = vmatpush.bf16.msra.mxu0 %v1541
        %1607 = vmatpush.bf16.msra.mxu0 %v1539
        %1608 = vmatpush.bf16.msra.mxu0 %v1537
        %1609 = vmatmul.bf16.gmra.mxu0 %v1461
        %v1610 = vpop.f32.mrf.mxu0
        %v1611 = vadd.f32 0.0, %v1610
        %v1612 = vpop.f32.mrf.mxu0
        %1613 = vdwg.mxu0
        %1614 = vmatpush.bf16.msra.mxu0 0
        %1615 = vmatpush.bf16.msra.mxu0 0
        %1616 = vmatpush.bf16.msra.mxu0 0
        %1617 = vmatpush.bf16.msra.mxu0 0
        %1618 = vmatpush.bf16.msra.mxu0 0
        %1619 = vmatpush.bf16.msra.mxu0 0
        %1620 = vmatpush.bf16.msra.mxu0 0
        %1621 = vmatpush.bf16.msra.mxu0 %v1553
        %1622 = vmatmul.bf16.gmra.mxu0 %v1573
        %v1623 = vpop.f32.mrf.mxu0
        %v1624 = vadd.f32 %v1611, %v1623
        %v1625 = vpop.f32.mrf.mxu0
        %1626 = vdwg.mxu0
        %v1627 = vadd.f32 %v1426, %v1598
        %v1628 = vadd.f32 %v1427, %v1624
        %v1629 = vadd.s32 %v394, 6
        %vm1630 = vcmp.eq.s32.totalorder %v393, %v1629
        %v1631 = vsel %vm1630, 1.0, 0.0
        %v1632 = vpack.c.bf16 %v1631, %v1631
        %v1634 = vsel %vm423, %v1632, 0
        %1636 = vmatpush.bf16.msra.mxu0 0
        %1637 = vmatpush.bf16.msra.mxu0 0
        %1638 = vmatpush.bf16.msra.mxu0 0
        %1639 = vmatpush.bf16.msra.mxu0 0
        %1640 = vmatpush.bf16.msra.mxu0 0
        %1641 = vmatpush.bf16.msra.mxu0 %v429
        %1642 = vmatpush.bf16.msra.mxu0 %v415
        %1643 = vmatpush.bf16.msra.mxu0 %v413
        %1644 = vmatmul.bf16.gmra.mxu0 %v1634
        %v1645 = vpop.f32.mrf.mxu0
        %v1646 = vadd.f32 0.0, %v1645
        %v1647 = vpop.f32.mrf.mxu0
        %1648 = vdwg.mxu0
        %1649 = vmatpush.bf16.msra.mxu0 0
        %1650 = vmatpush.bf16.msra.mxu0 0
        %1651 = vmatpush.bf16.msra.mxu0 0
        %1652 = vmatpush.bf16.msra.mxu0 0
        %1653 = vmatpush.bf16.msra.mxu0 0
        %1654 = vmatpush.bf16.msra.mxu0 %v432
        %1655 = vmatpush.bf16.msra.mxu0 %v416
        %1656 = vmatpush.bf16.msra.mxu0 %v414
        %1657 = vmatmul.bf16.gmra.mxu0 %v1634
        %v1658 = vpop.f32.mrf.mxu0
        %v1659 = vadd.f32 0.0, %v1658
        %v1660 = vpop.f32.mrf.mxu0
        %1661 = vdwg.mxu0
        %v1662 = vpack.c.bf16 %v1646, %v1646
        %v1663 = vpack.c.bf16 %v1659, %v1659
        %s1664 = scalar_lea.vmem %s1, 864
        %v1665 = vld [vmem:[%s1664] sm:$0xff]
        %v1666 = vld [vmem:[%s1664 + $0x8] sm:$0xff]
        %v1667 = vld [vmem:[%s1664 + $0x10] sm:$0xff]
        %v1668 = vld [vmem:[%s1664 + $0x18] sm:$0xff]
        %v1669 = vld [vmem:[%s1664 + $0x20] sm:$0xff]
        %v1670 = vld [vmem:[%s1664 + $0x28] sm:$0xff]
        %v1671 = vld [vmem:[%s1664 + $0x30] sm:$0xff]
        %v1672 = vld [vmem:[%s1664 + $0x38] sm:$0xff]
        %v1673 = vld [vmem:[%s1664 + $0x40] sm:$0xff]
        %v1674 = vld [vmem:[%s1664 + $0x48] sm:$0xff]
        %v1675 = vld [vmem:[%s1664 + $0x50] sm:$0xff]
        %v1676 = vld [vmem:[%s1664 + $0x58] sm:$0xff]
        %v1677 = vld [vmem:[%s1664 + $0x60] sm:$0xff]
        %v1678 = vld [vmem:[%s1664 + $0x68] sm:$0xff]
        %v1679 = vld [vmem:[%s1664 + $0x70] sm:$0xff]
        %v1680 = vld [vmem:[%s1664 + $0x78] sm:$0xff]
        %v1681 = vld [vmem:[%s1664 + $0x80] sm:$0xff]
        %v1682 = vld [vmem:[%s1664 + $0x88] sm:$0xff]
        %v1701 = vunpack.c.l.b16 %v1665
        %v1702 = vunpack.c.h.b16 %v1665
        %v1703 = vunpack.c.l.b16 %v1666
        %v1704 = vunpack.c.h.b16 %v1666
        %v1705 = vunpack.c.l.b16 %v1667
        %v1706 = vunpack.c.h.b16 %v1667
        %v1707 = vunpack.c.l.b16 %v1668
        %v1708 = vunpack.c.h.b16 %v1668
        %v1709 = vunpack.c.l.b16 %v1669
        %v1710 = vunpack.c.h.b16 %v1669
        %v1711 = vunpack.c.l.b16 %v1670
        %v1712 = vunpack.c.h.b16 %v1670
        %v1713 = vunpack.c.l.b16 %v1671
        %v1714 = vunpack.c.h.b16 %v1671
        %v1715 = vunpack.c.l.b16 %v1672
        %v1716 = vunpack.c.h.b16 %v1672
        %v1717 = vunpack.c.l.b16 %v1673
        %v1718 = vunpack.c.h.b16 %v1673
        %v1719 = vunpack.c.l.b16 %v1674
        %v1720 = vunpack.c.h.b16 %v1674
        %v1721 = vunpack.c.l.b16 %v1675
        %v1722 = vunpack.c.h.b16 %v1675
        %v1723 = vunpack.c.l.b16 %v1676
        %v1724 = vunpack.c.h.b16 %v1676
        %v1725 = vunpack.c.l.b16 %v1677
        %v1726 = vunpack.c.h.b16 %v1677
        %v1727 = vunpack.c.l.b16 %v1678
        %v1728 = vunpack.c.h.b16 %v1678
        %v1729 = vunpack.c.l.b16 %v1679
        %v1730 = vunpack.c.h.b16 %v1679
        %v1731 = vunpack.c.l.b16 %v1680
        %v1732 = vunpack.c.h.b16 %v1680
        %v1733 = vunpack.c.l.b16 %v1681
        %v1734 = vunpack.c.h.b16 %v1681
        %v1735 = vunpack.c.l.b16 %v1682
        %v1736 = vunpack.c.h.b16 %v1682
        %v1737 = vpack.c.b16 %v1703, %v1701
        %v1738 = vpack.c.b16 %v1704, %v1702
        %v1739 = vpack.c.b16 %v1707, %v1705
        %v1740 = vpack.c.b16 %v1708, %v1706
        %v1741 = vpack.c.b16 %v1711, %v1709
        %v1742 = vpack.c.b16 %v1712, %v1710
        %v1743 = vpack.c.b16 %v1715, %v1713
        %v1744 = vpack.c.b16 %v1716, %v1714
        %v1745 = vpack.c.b16 %v1719, %v1717
        %v1746 = vpack.c.b16 %v1720, %v1718
        %v1747 = vpack.c.b16 %v1723, %v1721
        %v1748 = vpack.c.b16 %v1724, %v1722
        %v1749 = vpack.c.b16 %v1727, %v1725
        %v1750 = vpack.c.b16 %v1728, %v1726
        %v1751 = vpack.c.b16 %v1731, %v1729
        %v1752 = vpack.c.b16 %v1732, %v1730
        %v1753 = vpack.c.b16 %v1735, %v1733
        %v1754 = vpack.c.b16 %v1736, %v1734
        %v1774 = vsel %vm624, %v1663, 0
        %1776 = vmatpush.bf16.msra.mxu0 %v1751
        %1777 = vmatpush.bf16.msra.mxu0 %v1749
        %1778 = vmatpush.bf16.msra.mxu0 %v1747
        %1779 = vmatpush.bf16.msra.mxu0 %v1745
        %1780 = vmatpush.bf16.msra.mxu0 %v1743
        %1781 = vmatpush.bf16.msra.mxu0 %v1741
        %1782 = vmatpush.bf16.msra.mxu0 %v1739
        %1783 = vmatpush.bf16.msra.mxu0 %v1737
        %1784 = vmatmul.bf16.gmra.mxu0 %v1662
        %v1785 = vpop.f32.mrf.mxu0
        %v1786 = vadd.f32 0.0, %v1785
        %v1787 = vpop.f32.mrf.mxu0
        %1788 = vdwg.mxu0
        %1789 = vmatpush.bf16.msra.mxu0 0
        %1790 = vmatpush.bf16.msra.mxu0 0
        %1791 = vmatpush.bf16.msra.mxu0 0
        %1792 = vmatpush.bf16.msra.mxu0 0
        %1793 = vmatpush.bf16.msra.mxu0 0
        %1794 = vmatpush.bf16.msra.mxu0 0
        %1795 = vmatpush.bf16.msra.mxu0 0
        %1796 = vmatpush.bf16.msra.mxu0 %v1753
        %1797 = vmatmul.bf16.gmra.mxu0 %v1774
        %v1798 = vpop.f32.mrf.mxu0
        %v1799 = vadd.f32 %v1786, %v1798
        %v1800 = vpop.f32.mrf.mxu0
        %1801 = vdwg.mxu0
        %1802 = vmatpush.bf16.msra.mxu0 %v1752
        %1803 = vmatpush.bf16.msra.mxu0 %v1750
        %1804 = vmatpush.bf16.msra.mxu0 %v1748
        %1805 = vmatpush.bf16.msra.mxu0 %v1746
        %1806 = vmatpush.bf16.msra.mxu0 %v1744
        %1807 = vmatpush.bf16.msra.mxu0 %v1742
        %1808 = vmatpush.bf16.msra.mxu0 %v1740
        %1809 = vmatpush.bf16.msra.mxu0 %v1738
        %1810 = vmatmul.bf16.gmra.mxu0 %v1662
        %v1811 = vpop.f32.mrf.mxu0
        %v1812 = vadd.f32 0.0, %v1811
        %v1813 = vpop.f32.mrf.mxu0
        %1814 = vdwg.mxu0
        %1815 = vmatpush.bf16.msra.mxu0 0
        %1816 = vmatpush.bf16.msra.mxu0 0
        %1817 = vmatpush.bf16.msra.mxu0 0
        %1818 = vmatpush.bf16.msra.mxu0 0
        %1819 = vmatpush.bf16.msra.mxu0 0
        %1820 = vmatpush.bf16.msra.mxu0 0
        %1821 = vmatpush.bf16.msra.mxu0 0
        %1822 = vmatpush.bf16.msra.mxu0 %v1754
        %1823 = vmatmul.bf16.gmra.mxu0 %v1774
        %v1824 = vpop.f32.mrf.mxu0
        %v1825 = vadd.f32 %v1812, %v1824
        %v1826 = vpop.f32.mrf.mxu0
        %1827 = vdwg.mxu0
        %v1828 = vadd.f32 %v1627, %v1799
        %v1829 = vadd.f32 %v1628, %v1825
        %v1830 = vadd.s32 %v394, 7
        %vm1831 = vcmp.eq.s32.totalorder %v393, %v1830
        %v1832 = vsel %vm1831, 1.0, 0.0
        %v1833 = vpack.c.bf16 %v1832, %v1832
        %v1835 = vsel %vm423, %v1833, 0
        %1837 = vmatpush.bf16.msra.mxu0 0
        %1838 = vmatpush.bf16.msra.mxu0 0
        %1839 = vmatpush.bf16.msra.mxu0 0
        %1840 = vmatpush.bf16.msra.mxu0 0
        %1841 = vmatpush.bf16.msra.mxu0 0
        %1842 = vmatpush.bf16.msra.mxu0 %v429
        %1843 = vmatpush.bf16.msra.mxu0 %v415
        %1844 = vmatpush.bf16.msra.mxu0 %v413
        %1845 = vmatmul.bf16.gmra.mxu0 %v1835
        %v1846 = vpop.f32.mrf.mxu0
        %v1847 = vadd.f32 0.0, %v1846
        %v1848 = vpop.f32.mrf.mxu0
        %1849 = vdwg.mxu0
        %1850 = vmatpush.bf16.msra.mxu0 0
        %1851 = vmatpush.bf16.msra.mxu0 0
        %1852 = vmatpush.bf16.msra.mxu0 0
        %1853 = vmatpush.bf16.msra.mxu0 0
        %1854 = vmatpush.bf16.msra.mxu0 0
        %1855 = vmatpush.bf16.msra.mxu0 %v432
        %1856 = vmatpush.bf16.msra.mxu0 %v416
        %1857 = vmatpush.bf16.msra.mxu0 %v414
        %1858 = vmatmul.bf16.gmra.mxu0 %v1835
        %v1859 = vpop.f32.mrf.mxu0
        %v1860 = vadd.f32 0.0, %v1859
        %v1861 = vpop.f32.mrf.mxu0
        %1862 = vdwg.mxu0
        %v1863 = vpack.c.bf16 %v1847, %v1847
        %v1864 = vpack.c.bf16 %v1860, %v1860
        %s1865 = scalar_lea.vmem %s1, 1008
        %v1866 = vld [vmem:[%s1865] sm:$0xff]
        %v1867 = vld [vmem:[%s1865 + $0x8] sm:$0xff]
        %v1868 = vld [vmem:[%s1865 + $0x10] sm:$0xff]
        %v1869 = vld [vmem:[%s1865 + $0x18] sm:$0xff]
        %v1870 = vld [vmem:[%s1865 + $0x20] sm:$0xff]
        %v1871 = vld [vmem:[%s1865 + $0x28] sm:$0xff]
        %v1872 = vld [vmem:[%s1865 + $0x30] sm:$0xff]
        %v1873 = vld [vmem:[%s1865 + $0x38] sm:$0xff]
        %v1874 = vld [vmem:[%s1865 + $0x40] sm:$0xff]
        %v1875 = vld [vmem:[%s1865 + $0x48] sm:$0xff]
        %v1876 = vld [vmem:[%s1865 + $0x50] sm:$0xff]
        %v1877 = vld [vmem:[%s1865 + $0x58] sm:$0xff]
        %v1878 = vld [vmem:[%s1865 + $0x60] sm:$0xff]
        %v1879 = vld [vmem:[%s1865 + $0x68] sm:$0xff]
        %v1880 = vld [vmem:[%s1865 + $0x70] sm:$0xff]
        %v1881 = vld [vmem:[%s1865 + $0x78] sm:$0xff]
        %v1882 = vld [vmem:[%s1865 + $0x80] sm:$0xff]
        %v1883 = vld [vmem:[%s1865 + $0x88] sm:$0xff]
        %v1902 = vunpack.c.l.b16 %v1866
        %v1903 = vunpack.c.h.b16 %v1866
        %v1904 = vunpack.c.l.b16 %v1867
        %v1905 = vunpack.c.h.b16 %v1867
        %v1906 = vunpack.c.l.b16 %v1868
        %v1907 = vunpack.c.h.b16 %v1868
        %v1908 = vunpack.c.l.b16 %v1869
        %v1909 = vunpack.c.h.b16 %v1869
        %v1910 = vunpack.c.l.b16 %v1870
        %v1911 = vunpack.c.h.b16 %v1870
        %v1912 = vunpack.c.l.b16 %v1871
        %v1913 = vunpack.c.h.b16 %v1871
        %v1914 = vunpack.c.l.b16 %v1872
        %v1915 = vunpack.c.h.b16 %v1872
        %v1916 = vunpack.c.l.b16 %v1873
        %v1917 = vunpack.c.h.b16 %v1873
        %v1918 = vunpack.c.l.b16 %v1874
        %v1919 = vunpack.c.h.b16 %v1874
        %v1920 = vunpack.c.l.b16 %v1875
        %v1921 = vunpack.c.h.b16 %v1875
        %v1922 = vunpack.c.l.b16 %v1876
        %v1923 = vunpack.c.h.b16 %v1876
        %v1924 = vunpack.c.l.b16 %v1877
        %v1925 = vunpack.c.h.b16 %v1877
        %v1926 = vunpack.c.l.b16 %v1878
        %v1927 = vunpack.c.h.b16 %v1878
        %v1928 = vunpack.c.l.b16 %v1879
        %v1929 = vunpack.c.h.b16 %v1879
        %v1930 = vunpack.c.l.b16 %v1880
        %v1931 = vunpack.c.h.b16 %v1880
        %v1932 = vunpack.c.l.b16 %v1881
        %v1933 = vunpack.c.h.b16 %v1881
        %v1934 = vunpack.c.l.b16 %v1882
        %v1935 = vunpack.c.h.b16 %v1882
        %v1936 = vunpack.c.l.b16 %v1883
        %v1937 = vunpack.c.h.b16 %v1883
        %v1938 = vpack.c.b16 %v1904, %v1902
        %v1939 = vpack.c.b16 %v1905, %v1903
        %v1940 = vpack.c.b16 %v1908, %v1906
        %v1941 = vpack.c.b16 %v1909, %v1907
        %v1942 = vpack.c.b16 %v1912, %v1910
        %v1943 = vpack.c.b16 %v1913, %v1911
        %v1944 = vpack.c.b16 %v1916, %v1914
        %v1945 = vpack.c.b16 %v1917, %v1915
        %v1946 = vpack.c.b16 %v1920, %v1918
        %v1947 = vpack.c.b16 %v1921, %v1919
        %v1948 = vpack.c.b16 %v1924, %v1922
        %v1949 = vpack.c.b16 %v1925, %v1923
        %v1950 = vpack.c.b16 %v1928, %v1926
        %v1951 = vpack.c.b16 %v1929, %v1927
        %v1952 = vpack.c.b16 %v1932, %v1930
        %v1953 = vpack.c.b16 %v1933, %v1931
        %v1954 = vpack.c.b16 %v1936, %v1934
        %v1955 = vpack.c.b16 %v1937, %v1935
        %v1975 = vsel %vm624, %v1864, 0
        %1977 = vmatpush.bf16.msra.mxu0 %v1952
        %1978 = vmatpush.bf16.msra.mxu0 %v1950
        %1979 = vmatpush.bf16.msra.mxu0 %v1948
        %1980 = vmatpush.bf16.msra.mxu0 %v1946
        %1981 = vmatpush.bf16.msra.mxu0 %v1944
        %1982 = vmatpush.bf16.msra.mxu0 %v1942
        %1983 = vmatpush.bf16.msra.mxu0 %v1940
        %1984 = vmatpush.bf16.msra.mxu0 %v1938
        %1985 = vmatmul.bf16.gmra.mxu0 %v1863
        %v1986 = vpop.f32.mrf.mxu0
        %v1987 = vadd.f32 0.0, %v1986
        %v1988 = vpop.f32.mrf.mxu0
        %1989 = vdwg.mxu0
        %1990 = vmatpush.bf16.msra.mxu0 0
        %1991 = vmatpush.bf16.msra.mxu0 0
        %1992 = vmatpush.bf16.msra.mxu0 0
        %1993 = vmatpush.bf16.msra.mxu0 0
        %1994 = vmatpush.bf16.msra.mxu0 0
        %1995 = vmatpush.bf16.msra.mxu0 0
        %1996 = vmatpush.bf16.msra.mxu0 0
        %1997 = vmatpush.bf16.msra.mxu0 %v1954
        %1998 = vmatmul.bf16.gmra.mxu0 %v1975
        %v1999 = vpop.f32.mrf.mxu0
        %v2000 = vadd.f32 %v1987, %v1999
        %v2001 = vpop.f32.mrf.mxu0
        %2002 = vdwg.mxu0
        %2003 = vmatpush.bf16.msra.mxu0 %v1953
        %2004 = vmatpush.bf16.msra.mxu0 %v1951
        %2005 = vmatpush.bf16.msra.mxu0 %v1949
        %2006 = vmatpush.bf16.msra.mxu0 %v1947
        %2007 = vmatpush.bf16.msra.mxu0 %v1945
        %2008 = vmatpush.bf16.msra.mxu0 %v1943
        %2009 = vmatpush.bf16.msra.mxu0 %v1941
        %2010 = vmatpush.bf16.msra.mxu0 %v1939
        %2011 = vmatmul.bf16.gmra.mxu0 %v1863
        %v2012 = vpop.f32.mrf.mxu0
        %v2013 = vadd.f32 0.0, %v2012
        %v2014 = vpop.f32.mrf.mxu0
        %2015 = vdwg.mxu0
        %2016 = vmatpush.bf16.msra.mxu0 0
        %2017 = vmatpush.bf16.msra.mxu0 0
        %2018 = vmatpush.bf16.msra.mxu0 0
        %2019 = vmatpush.bf16.msra.mxu0 0
        %2020 = vmatpush.bf16.msra.mxu0 0
        %2021 = vmatpush.bf16.msra.mxu0 0
        %2022 = vmatpush.bf16.msra.mxu0 0
        %2023 = vmatpush.bf16.msra.mxu0 %v1955
        %2024 = vmatmul.bf16.gmra.mxu0 %v1975
        %v2025 = vpop.f32.mrf.mxu0
        %v2026 = vadd.f32 %v2013, %v2025
        %v2027 = vpop.f32.mrf.mxu0
        %2028 = vdwg.mxu0
        %v2029 = vadd.f32 %v1828, %v2000
        %v2030 = vadd.f32 %v1829, %v2026
        %v2031 = vld [vmem:[%s2] sm:$0x3]
        %v2033 = vperm.slane %v2031, 0
        %v2034 = vperm.slane %v2031, 1
        %v2037 = vadd.f32 %v2029, %v2033
        %v2038 = vadd.f32 %v2030, %v2034
        %v2039 = vmax.f32 %v2037, 0.0
        %v2040 = vmax.f32 %v2038, 0.0
        %v2041 = vpack.c.bf16 %v2039, %v2039
        %v2042 = vpack.c.bf16 %v2040, %v2040
        %v2043 = vmul.u32 %v391, 2
        %vm2044 = vcmp.eq.s32.totalorder %v393, %v2043
        %v2045 = vsel %vm2044, 1.0, 0.0
        %v2046 = vpack.c.bf16 %v2045, %v2045
        %vm2047 = vcmask 64512
        %v2049 = vsel %vm2047, %v2046, 0
        %vm2051 = vcmask 1043456
        %v2053 = vsel %vm2051, %v2041, 0
        %v2056 = vsel %vm2051, %v2042, 0
        %2058 = vmatpush.bf16.msra.mxu0 0
        %2059 = vmatpush.bf16.msra.mxu0 0
        %2060 = vmatpush.bf16.msra.mxu0 0
        %2061 = vmatpush.bf16.msra.mxu0 0
        %2062 = vmatpush.bf16.msra.mxu0 0
        %2063 = vmatpush.bf16.msra.mxu0 0
        %2064 = vmatpush.bf16.msra.mxu0 0
        %2065 = vmatpush.bf16.msra.mxu0 %v2053
        %2066 = vmatmul.bf16.gmra.mxu0 %v2049
        %v2067 = vpop.f32.mrf.mxu0
        %v2068 = vadd.f32 0.0, %v2067
        %v2069 = vpop.f32.mrf.mxu0
        %2070 = vdwg.mxu0
        %2071 = vmatpush.bf16.msra.mxu0 0
        %2072 = vmatpush.bf16.msra.mxu0 0
        %2073 = vmatpush.bf16.msra.mxu0 0
        %2074 = vmatpush.bf16.msra.mxu0 0
        %2075 = vmatpush.bf16.msra.mxu0 0
        %2076 = vmatpush.bf16.msra.mxu0 0
        %2077 = vmatpush.bf16.msra.mxu0 0
        %2078 = vmatpush.bf16.msra.mxu0 %v2056
        %2079 = vmatmul.bf16.gmra.mxu0 %v2049
        %v2080 = vpop.f32.mrf.mxu0
        %v2081 = vadd.f32 0.0, %v2080
        %v2082 = vpop.f32.mrf.mxu0
        %2083 = vdwg.mxu0
        %v2084 = vpack.c.bf16 %v2068, %v2068
        %v2085 = vpack.c.bf16 %v2081, %v2081
        %v2086 = vld [vmem:[%s3] sm:$0xff]
        %v2087 = vld [vmem:[%s3 + $0x8] sm:$0xff]
        %v2088 = vld [vmem:[%s3 + $0x10] sm:$0xff]
        %v2089 = vld [vmem:[%s3 + $0x18] sm:$0xff]
        %v2090 = vld [vmem:[%s3 + $0x20] sm:$0xff]
        %v2091 = vld [vmem:[%s3 + $0x28] sm:$0xff]
        %v2092 = vld [vmem:[%s3 + $0x30] sm:$0xff]
        %v2093 = vld [vmem:[%s3 + $0x38] sm:$0xff]
        %v2094 = vld [vmem:[%s3 + $0x40] sm:$0xff]
        %v2095 = vld [vmem:[%s3 + $0x48] sm:$0xff]
        %v2096 = vld [vmem:[%s3 + $0x50] sm:$0xff]
        %v2097 = vld [vmem:[%s3 + $0x58] sm:$0xff]
        %v2098 = vld [vmem:[%s3 + $0x60] sm:$0xff]
        %v2099 = vld [vmem:[%s3 + $0x68] sm:$0xff]
        %v2100 = vld [vmem:[%s3 + $0x70] sm:$0xff]
        %v2101 = vld [vmem:[%s3 + $0x78] sm:$0xff]
        %v2102 = vld [vmem:[%s3 + $0x80] sm:$0xff]
        %v2103 = vld [vmem:[%s3 + $0x88] sm:$0xff]
        %v2104 = vld [vmem:[%s3 + $0x90] sm:$0xff]
        %v2105 = vld [vmem:[%s3 + $0x98] sm:$0xff]
        %v2106 = vld [vmem:[%s3 + $0xa0] sm:$0xff]
        %v2107 = vld [vmem:[%s3 + $0xa8] sm:$0xff]
        %v2108 = vld [vmem:[%s3 + $0xb0] sm:$0xff]
        %v2109 = vld [vmem:[%s3 + $0xb8] sm:$0xff]
        %v2110 = vld [vmem:[%s3 + $0xc0] sm:$0xff]
        %v2111 = vld [vmem:[%s3 + $0xc8] sm:$0xff]
        %v2112 = vld [vmem:[%s3 + $0xd0] sm:$0xff]
        %v2113 = vld [vmem:[%s3 + $0xd8] sm:$0xff]
        %v2114 = vld [vmem:[%s3 + $0xe0] sm:$0xff]
        %v2115 = vld [vmem:[%s3 + $0xe8] sm:$0xff]
        %v2116 = vld [vmem:[%s3 + $0xf0] sm:$0xff]
        %v2117 = vld [vmem:[%s3 + $0xf8] sm:$0xff]
        %v2118 = vadd.s32 %v2043, 1
        %vm2119 = vcmp.eq.s32.totalorder %v393, %v2118
        %v2120 = vsel %vm2119, 1.0, 0.0
        %v2121 = vpack.c.bf16 %v2120, %v2120
        %v2123 = vsel %vm2047, %v2121, 0
        %2125 = vmatpush.bf16.msra.mxu0 0
        %2126 = vmatpush.bf16.msra.mxu0 0
        %2127 = vmatpush.bf16.msra.mxu0 0
        %2128 = vmatpush.bf16.msra.mxu0 0
        %2129 = vmatpush.bf16.msra.mxu0 0
        %2130 = vmatpush.bf16.msra.mxu0 0
        %2131 = vmatpush.bf16.msra.mxu0 0
        %2132 = vmatpush.bf16.msra.mxu0 %v2053
        %2133 = vmatmul.bf16.gmra.mxu0 %v2123
        %v2134 = vpop.f32.mrf.mxu0
        %v2135 = vadd.f32 0.0, %v2134
        %v2136 = vpop.f32.mrf.mxu0
        %2137 = vdwg.mxu0
        %2138 = vmatpush.bf16.msra.mxu0 0
        %2139 = vmatpush.bf16.msra.mxu0 0
        %2140 = vmatpush.bf16.msra.mxu0 0
        %2141 = vmatpush.bf16.msra.mxu0 0
        %2142 = vmatpush.bf16.msra.mxu0 0
        %2143 = vmatpush.bf16.msra.mxu0 0
        %2144 = vmatpush.bf16.msra.mxu0 0
        %2145 = vmatpush.bf16.msra.mxu0 %v2056
        %2146 = vmatmul.bf16.gmra.mxu0 %v2123
        %v2147 = vpop.f32.mrf.mxu0
        %v2148 = vadd.f32 0.0, %v2147
        %v2149 = vpop.f32.mrf.mxu0
        %2150 = vdwg.mxu0
        %v2151 = vpack.c.bf16 %v2135, %v2135
        %v2152 = vpack.c.bf16 %v2148, %v2148
        %s2153 = scalar_lea.vmem %s3, 256
        %v2154 = vld [vmem:[%s2153] sm:$0xff]
        %v2155 = vld [vmem:[%s2153 + $0x8] sm:$0xff]
        %v2156 = vld [vmem:[%s2153 + $0x10] sm:$0xff]
        %v2157 = vld [vmem:[%s2153 + $0x18] sm:$0xff]
        %v2158 = vld [vmem:[%s2153 + $0x20] sm:$0xff]
        %v2159 = vld [vmem:[%s2153 + $0x28] sm:$0xff]
        %v2160 = vld [vmem:[%s2153 + $0x30] sm:$0xff]
        %v2161 = vld [vmem:[%s2153 + $0x38] sm:$0xff]
        %v2162 = vld [vmem:[%s2153 + $0x40] sm:$0xff]
        %v2163 = vld [vmem:[%s2153 + $0x48] sm:$0xff]
        %v2164 = vld [vmem:[%s2153 + $0x50] sm:$0xff]
        %v2165 = vld [vmem:[%s2153 + $0x58] sm:$0xff]
        %v2166 = vld [vmem:[%s2153 + $0x60] sm:$0xff]
        %v2167 = vld [vmem:[%s2153 + $0x68] sm:$0xff]
        %v2168 = vld [vmem:[%s2153 + $0x70] sm:$0xff]
        %v2169 = vld [vmem:[%s2153 + $0x78] sm:$0xff]
        %v2170 = vld [vmem:[%s2153 + $0x80] sm:$0xff]
        %v2171 = vld [vmem:[%s2153 + $0x88] sm:$0xff]
        %v2172 = vld [vmem:[%s2153 + $0x90] sm:$0xff]
        %v2173 = vld [vmem:[%s2153 + $0x98] sm:$0xff]
        %v2174 = vld [vmem:[%s2153 + $0xa0] sm:$0xff]
        %v2175 = vld [vmem:[%s2153 + $0xa8] sm:$0xff]
        %v2176 = vld [vmem:[%s2153 + $0xb0] sm:$0xff]
        %v2177 = vld [vmem:[%s2153 + $0xb8] sm:$0xff]
        %v2178 = vld [vmem:[%s2153 + $0xc0] sm:$0xff]
        %v2179 = vld [vmem:[%s2153 + $0xc8] sm:$0xff]
        %v2180 = vld [vmem:[%s2153 + $0xd0] sm:$0xff]
        %v2181 = vld [vmem:[%s2153 + $0xd8] sm:$0xff]
        %v2182 = vld [vmem:[%s2153 + $0xe0] sm:$0xff]
        %v2183 = vld [vmem:[%s2153 + $0xe8] sm:$0xff]
        %v2184 = vld [vmem:[%s2153 + $0xf0] sm:$0xff]
        %v2185 = vld [vmem:[%s2153 + $0xf8] sm:$0xff]
        %v2218 = vunpack.c.l.b16 %v2154
        %v2219 = vunpack.c.h.b16 %v2154
        %v2220 = vunpack.c.l.b16 %v2155
        %v2221 = vunpack.c.h.b16 %v2155
        %v2222 = vunpack.c.l.b16 %v2156
        %v2223 = vunpack.c.h.b16 %v2156
        %v2224 = vunpack.c.l.b16 %v2157
        %v2225 = vunpack.c.h.b16 %v2157
        %v2226 = vunpack.c.l.b16 %v2158
        %v2227 = vunpack.c.h.b16 %v2158
        %v2228 = vunpack.c.l.b16 %v2159
        %v2229 = vunpack.c.h.b16 %v2159
        %v2230 = vunpack.c.l.b16 %v2160
        %v2231 = vunpack.c.h.b16 %v2160
        %v2232 = vunpack.c.l.b16 %v2161
        %v2233 = vunpack.c.h.b16 %v2161
        %v2234 = vunpack.c.l.b16 %v2162
        %v2235 = vunpack.c.h.b16 %v2162
        %v2236 = vunpack.c.l.b16 %v2163
        %v2237 = vunpack.c.h.b16 %v2163
        %v2238 = vunpack.c.l.b16 %v2164
        %v2239 = vunpack.c.h.b16 %v2164
        %v2240 = vunpack.c.l.b16 %v2165
        %v2241 = vunpack.c.h.b16 %v2165
        %v2242 = vunpack.c.l.b16 %v2166
        %v2243 = vunpack.c.h.b16 %v2166
        %v2244 = vunpack.c.l.b16 %v2167
        %v2245 = vunpack.c.h.b16 %v2167
        %v2246 = vunpack.c.l.b16 %v2168
        %v2247 = vunpack.c.h.b16 %v2168
        %v2248 = vunpack.c.l.b16 %v2169
        %v2249 = vunpack.c.h.b16 %v2169
        %v2250 = vunpack.c.l.b16 %v2170
        %v2251 = vunpack.c.h.b16 %v2170
        %v2252 = vunpack.c.l.b16 %v2171
        %v2253 = vunpack.c.h.b16 %v2171
        %v2254 = vunpack.c.l.b16 %v2172
        %v2255 = vunpack.c.h.b16 %v2172
        %v2256 = vunpack.c.l.b16 %v2173
        %v2257 = vunpack.c.h.b16 %v2173
        %v2258 = vunpack.c.l.b16 %v2174
        %v2259 = vunpack.c.h.b16 %v2174
        %v2260 = vunpack.c.l.b16 %v2175
        %v2261 = vunpack.c.h.b16 %v2175
        %v2262 = vunpack.c.l.b16 %v2176
        %v2263 = vunpack.c.h.b16 %v2176
        %v2264 = vunpack.c.l.b16 %v2177
        %v2265 = vunpack.c.h.b16 %v2177
        %v2266 = vunpack.c.l.b16 %v2178
        %v2267 = vunpack.c.h.b16 %v2178
        %v2268 = vunpack.c.l.b16 %v2179
        %v2269 = vunpack.c.h.b16 %v2179
        %v2270 = vunpack.c.l.b16 %v2180
        %v2271 = vunpack.c.h.b16 %v2180
        %v2272 = vunpack.c.l.b16 %v2181
        %v2273 = vunpack.c.h.b16 %v2181
        %v2274 = vunpack.c.l.b16 %v2182
        %v2275 = vunpack.c.h.b16 %v2182
        %v2276 = vunpack.c.l.b16 %v2183
        %v2277 = vunpack.c.h.b16 %v2183
        %v2278 = vunpack.c.l.b16 %v2184
        %v2279 = vunpack.c.h.b16 %v2184
        %v2280 = vunpack.c.l.b16 %v2185
        %v2281 = vunpack.c.h.b16 %v2185
        %v2282 = vpack.c.b16 %v2220, %v2218
        %v2283 = vpack.c.b16 %v2221, %v2219
        %v2284 = vpack.c.b16 %v2224, %v2222
        %v2285 = vpack.c.b16 %v2225, %v2223
        %v2286 = vpack.c.b16 %v2228, %v2226
        %v2287 = vpack.c.b16 %v2229, %v2227
        %v2288 = vpack.c.b16 %v2232, %v2230
        %v2289 = vpack.c.b16 %v2233, %v2231
        %v2290 = vpack.c.b16 %v2236, %v2234
        %v2291 = vpack.c.b16 %v2237, %v2235
        %v2292 = vpack.c.b16 %v2240, %v2238
        %v2293 = vpack.c.b16 %v2241, %v2239
        %v2294 = vpack.c.b16 %v2244, %v2242
        %v2295 = vpack.c.b16 %v2245, %v2243
        %v2296 = vpack.c.b16 %v2248, %v2246
        %v2297 = vpack.c.b16 %v2249, %v2247
        %v2298 = vpack.c.b16 %v2252, %v2250
        %v2299 = vpack.c.b16 %v2253, %v2251
        %v2300 = vpack.c.b16 %v2256, %v2254
        %v2301 = vpack.c.b16 %v2257, %v2255
        %v2302 = vpack.c.b16 %v2260, %v2258
        %v2303 = vpack.c.b16 %v2261, %v2259
        %v2304 = vpack.c.b16 %v2264, %v2262
        %v2305 = vpack.c.b16 %v2265, %v2263
        %v2306 = vpack.c.b16 %v2268, %v2266
        %v2307 = vpack.c.b16 %v2269, %v2267
        %v2308 = vpack.c.b16 %v2272, %v2270
        %v2309 = vpack.c.b16 %v2273, %v2271
        %v2310 = vpack.c.b16 %v2276, %v2274
        %v2311 = vpack.c.b16 %v2277, %v2275
        %v2312 = vpack.c.b16 %v2280, %v2278
        %v2313 = vpack.c.b16 %v2281, %v2279
        %2346 = vmatpush.bf16.msra.mxu0 %v2296
        %2347 = vmatpush.bf16.msra.mxu0 %v2294
        %2348 = vmatpush.bf16.msra.mxu0 %v2292
        %2349 = vmatpush.bf16.msra.mxu0 %v2290
        %2350 = vmatpush.bf16.msra.mxu0 %v2288
        %2351 = vmatpush.bf16.msra.mxu0 %v2286
        %2352 = vmatpush.bf16.msra.mxu0 %v2284
        %2353 = vmatpush.bf16.msra.mxu0 %v2282
        %2354 = vmatmul.bf16.gmra.mxu0 %v2151
        %v2355 = vpop.f32.mrf.mxu0
        %v2356 = vadd.f32 0.0, %v2355
        %v2357 = vpop.f32.mrf.mxu0
        %2358 = vdwg.mxu0
        %2359 = vmatpush.bf16.msra.mxu0 %v2312
        %2360 = vmatpush.bf16.msra.mxu0 %v2310
        %2361 = vmatpush.bf16.msra.mxu0 %v2308
        %2362 = vmatpush.bf16.msra.mxu0 %v2306
        %2363 = vmatpush.bf16.msra.mxu0 %v2304
        %2364 = vmatpush.bf16.msra.mxu0 %v2302
        %2365 = vmatpush.bf16.msra.mxu0 %v2300
        %2366 = vmatpush.bf16.msra.mxu0 %v2298
        %2367 = vmatmul.bf16.gmra.mxu0 %v2152
        %v2368 = vpop.f32.mrf.mxu0
        %v2369 = vadd.f32 %v2356, %v2368
        %v2370 = vpop.f32.mrf.mxu0
        %2371 = vdwg.mxu0
        %2372 = vmatpush.bf16.msra.mxu0 %v2297
        %2373 = vmatpush.bf16.msra.mxu0 %v2295
        %2374 = vmatpush.bf16.msra.mxu0 %v2293
        %2375 = vmatpush.bf16.msra.mxu0 %v2291
        %2376 = vmatpush.bf16.msra.mxu0 %v2289
        %2377 = vmatpush.bf16.msra.mxu0 %v2287
        %2378 = vmatpush.bf16.msra.mxu0 %v2285
        %2379 = vmatpush.bf16.msra.mxu0 %v2283
        %2380 = vmatmul.bf16.gmra.mxu0 %v2151
        %v2381 = vpop.f32.mrf.mxu0
        %v2382 = vadd.f32 0.0, %v2381
        %v2383 = vpop.f32.mrf.mxu0
        %2384 = vdwg.mxu0
        %2385 = vmatpush.bf16.msra.mxu0 %v2313
        %2386 = vmatpush.bf16.msra.mxu0 %v2311
        %2387 = vmatpush.bf16.msra.mxu0 %v2309
        %2388 = vmatpush.bf16.msra.mxu0 %v2307
        %2389 = vmatpush.bf16.msra.mxu0 %v2305
        %2390 = vmatpush.bf16.msra.mxu0 %v2303
        %2391 = vmatpush.bf16.msra.mxu0 %v2301
        %2392 = vmatpush.bf16.msra.mxu0 %v2299
        %2393 = vmatmul.bf16.gmra.mxu0 %v2152
        %v2394 = vpop.f32.mrf.mxu0
        %v2395 = vadd.f32 %v2382, %v2394
        %v2396 = vpop.f32.mrf.mxu0
        %2397 = vdwg.mxu0
        %v2430 = vunpack.c.l.b16 %v2086
        %v2431 = vunpack.c.h.b16 %v2086
        %v2432 = vunpack.c.l.b16 %v2087
        %v2433 = vunpack.c.h.b16 %v2087
        %v2434 = vunpack.c.l.b16 %v2088
        %v2435 = vunpack.c.h.b16 %v2088
        %v2436 = vunpack.c.l.b16 %v2089
        %v2437 = vunpack.c.h.b16 %v2089
        %v2438 = vunpack.c.l.b16 %v2090
        %v2439 = vunpack.c.h.b16 %v2090
        %v2440 = vunpack.c.l.b16 %v2091
        %v2441 = vunpack.c.h.b16 %v2091
        %v2442 = vunpack.c.l.b16 %v2092
        %v2443 = vunpack.c.h.b16 %v2092
        %v2444 = vunpack.c.l.b16 %v2093
        %v2445 = vunpack.c.h.b16 %v2093
        %v2446 = vunpack.c.l.b16 %v2094
        %v2447 = vunpack.c.h.b16 %v2094
        %v2448 = vunpack.c.l.b16 %v2095
        %v2449 = vunpack.c.h.b16 %v2095
        %v2450 = vunpack.c.l.b16 %v2096
        %v2451 = vunpack.c.h.b16 %v2096
        %v2452 = vunpack.c.l.b16 %v2097
        %v2453 = vunpack.c.h.b16 %v2097
        %v2454 = vunpack.c.l.b16 %v2098
        %v2455 = vunpack.c.h.b16 %v2098
        %v2456 = vunpack.c.l.b16 %v2099
        %v2457 = vunpack.c.h.b16 %v2099
        %v2458 = vunpack.c.l.b16 %v2100
        %v2459 = vunpack.c.h.b16 %v2100
        %v2460 = vunpack.c.l.b16 %v2101
        %v2461 = vunpack.c.h.b16 %v2101
        %v2462 = vunpack.c.l.b16 %v2102
        %v2463 = vunpack.c.h.b16 %v2102
        %v2464 = vunpack.c.l.b16 %v2103
        %v2465 = vunpack.c.h.b16 %v2103
        %v2466 = vunpack.c.l.b16 %v2104
        %v2467 = vunpack.c.h.b16 %v2104
        %v2468 = vunpack.c.l.b16 %v2105
        %v2469 = vunpack.c.h.b16 %v2105
        %v2470 = vunpack.c.l.b16 %v2106
        %v2471 = vunpack.c.h.b16 %v2106
        %v2472 = vunpack.c.l.b16 %v2107
        %v2473 = vunpack.c.h.b16 %v2107
        %v2474 = vunpack.c.l.b16 %v2108
        %v2475 = vunpack.c.h.b16 %v2108
        %v2476 = vunpack.c.l.b16 %v2109
        %v2477 = vunpack.c.h.b16 %v2109
        %v2478 = vunpack.c.l.b16 %v2110
        %v2479 = vunpack.c.h.b16 %v2110
        %v2480 = vunpack.c.l.b16 %v2111
        %v2481 = vunpack.c.h.b16 %v2111
        %v2482 = vunpack.c.l.b16 %v2112
        %v2483 = vunpack.c.h.b16 %v2112
        %v2484 = vunpack.c.l.b16 %v2113
        %v2485 = vunpack.c.h.b16 %v2113
        %v2486 = vunpack.c.l.b16 %v2114
        %v2487 = vunpack.c.h.b16 %v2114
        %v2488 = vunpack.c.l.b16 %v2115
        %v2489 = vunpack.c.h.b16 %v2115
        %v2490 = vunpack.c.l.b16 %v2116
        %v2491 = vunpack.c.h.b16 %v2116
        %v2492 = vunpack.c.l.b16 %v2117
        %v2493 = vunpack.c.h.b16 %v2117
        %v2494 = vpack.c.b16 %v2432, %v2430
        %v2495 = vpack.c.b16 %v2433, %v2431
        %v2496 = vpack.c.b16 %v2436, %v2434
        %v2497 = vpack.c.b16 %v2437, %v2435
        %v2498 = vpack.c.b16 %v2440, %v2438
        %v2499 = vpack.c.b16 %v2441, %v2439
        %v2500 = vpack.c.b16 %v2444, %v2442
        %v2501 = vpack.c.b16 %v2445, %v2443
        %v2502 = vpack.c.b16 %v2448, %v2446
        %v2503 = vpack.c.b16 %v2449, %v2447
        %v2504 = vpack.c.b16 %v2452, %v2450
        %v2505 = vpack.c.b16 %v2453, %v2451
        %v2506 = vpack.c.b16 %v2456, %v2454
        %v2507 = vpack.c.b16 %v2457, %v2455
        %v2508 = vpack.c.b16 %v2460, %v2458
        %v2509 = vpack.c.b16 %v2461, %v2459
        %v2510 = vpack.c.b16 %v2464, %v2462
        %v2511 = vpack.c.b16 %v2465, %v2463
        %v2512 = vpack.c.b16 %v2468, %v2466
        %v2513 = vpack.c.b16 %v2469, %v2467
        %v2514 = vpack.c.b16 %v2472, %v2470
        %v2515 = vpack.c.b16 %v2473, %v2471
        %v2516 = vpack.c.b16 %v2476, %v2474
        %v2517 = vpack.c.b16 %v2477, %v2475
        %v2518 = vpack.c.b16 %v2480, %v2478
        %v2519 = vpack.c.b16 %v2481, %v2479
        %v2520 = vpack.c.b16 %v2484, %v2482
        %v2521 = vpack.c.b16 %v2485, %v2483
        %v2522 = vpack.c.b16 %v2488, %v2486
        %v2523 = vpack.c.b16 %v2489, %v2487
        %v2524 = vpack.c.b16 %v2492, %v2490
        %v2525 = vpack.c.b16 %v2493, %v2491
        %2558 = vmatpush.bf16.msra.mxu0 %v2508
        %2559 = vmatpush.bf16.msra.mxu0 %v2506
        %2560 = vmatpush.bf16.msra.mxu0 %v2504
        %2561 = vmatpush.bf16.msra.mxu0 %v2502
        %2562 = vmatpush.bf16.msra.mxu0 %v2500
        %2563 = vmatpush.bf16.msra.mxu0 %v2498
        %2564 = vmatpush.bf16.msra.mxu0 %v2496
        %2565 = vmatpush.bf16.msra.mxu0 %v2494
        %2566 = vmatmul.bf16.gmra.mxu0 %v2084
        %v2567 = vpop.f32.mrf.mxu0
        %v2568 = vadd.f32 %v2369, %v2567
        %v2569 = vpop.f32.mrf.mxu0
        %2570 = vdwg.mxu0
        %2571 = vmatpush.bf16.msra.mxu0 %v2524
        %2572 = vmatpush.bf16.msra.mxu0 %v2522
        %2573 = vmatpush.bf16.msra.mxu0 %v2520
        %2574 = vmatpush.bf16.msra.mxu0 %v2518
        %2575 = vmatpush.bf16.msra.mxu0 %v2516
        %2576 = vmatpush.bf16.msra.mxu0 %v2514
        %2577 = vmatpush.bf16.msra.mxu0 %v2512
        %2578 = vmatpush.bf16.msra.mxu0 %v2510
        %2579 = vmatmul.bf16.gmra.mxu0 %v2085
        %v2580 = vpop.f32.mrf.mxu0
        %v2581 = vadd.f32 %v2568, %v2580
        %v2582 = vpop.f32.mrf.mxu0
        %2583 = vdwg.mxu0
        %2584 = vmatpush.bf16.msra.mxu0 %v2509
        %2585 = vmatpush.bf16.msra.mxu0 %v2507
        %2586 = vmatpush.bf16.msra.mxu0 %v2505
        %2587 = vmatpush.bf16.msra.mxu0 %v2503
        %2588 = vmatpush.bf16.msra.mxu0 %v2501
        %2589 = vmatpush.bf16.msra.mxu0 %v2499
        %2590 = vmatpush.bf16.msra.mxu0 %v2497
        %2591 = vmatpush.bf16.msra.mxu0 %v2495
        %2592 = vmatmul.bf16.gmra.mxu0 %v2084
        %v2593 = vpop.f32.mrf.mxu0
        %v2594 = vadd.f32 %v2395, %v2593
        %v2595 = vpop.f32.mrf.mxu0
        %2596 = vdwg.mxu0
        %2597 = vmatpush.bf16.msra.mxu0 %v2525
        %2598 = vmatpush.bf16.msra.mxu0 %v2523
        %2599 = vmatpush.bf16.msra.mxu0 %v2521
        %2600 = vmatpush.bf16.msra.mxu0 %v2519
        %2601 = vmatpush.bf16.msra.mxu0 %v2517
        %2602 = vmatpush.bf16.msra.mxu0 %v2515
        %2603 = vmatpush.bf16.msra.mxu0 %v2513
        %2604 = vmatpush.bf16.msra.mxu0 %v2511
        %2605 = vmatmul.bf16.gmra.mxu0 %v2085
        %v2606 = vpop.f32.mrf.mxu0
        %v2607 = vadd.f32 %v2594, %v2606
        %v2608 = vpop.f32.mrf.mxu0
        %2609 = vdwg.mxu0
        %v2610 = vadd.s32 %v2043, 2
        %vm2611 = vcmp.eq.s32.totalorder %v393, %v2610
        %v2612 = vsel %vm2611, 1.0, 0.0
        %v2613 = vpack.c.bf16 %v2612, %v2612
        %v2615 = vsel %vm2047, %v2613, 0
        %2617 = vmatpush.bf16.msra.mxu0 0
        %2618 = vmatpush.bf16.msra.mxu0 0
        %2619 = vmatpush.bf16.msra.mxu0 0
        %2620 = vmatpush.bf16.msra.mxu0 0
        %2621 = vmatpush.bf16.msra.mxu0 0
        %2622 = vmatpush.bf16.msra.mxu0 0
        %2623 = vmatpush.bf16.msra.mxu0 0
        %2624 = vmatpush.bf16.msra.mxu0 %v2053
        %2625 = vmatmul.bf16.gmra.mxu0 %v2615
        %v2626 = vpop.f32.mrf.mxu0
        %v2627 = vadd.f32 0.0, %v2626
        %v2628 = vpop.f32.mrf.mxu0
        %2629 = vdwg.mxu0
        %2630 = vmatpush.bf16.msra.mxu0 0
        %2631 = vmatpush.bf16.msra.mxu0 0
        %2632 = vmatpush.bf16.msra.mxu0 0
        %2633 = vmatpush.bf16.msra.mxu0 0
        %2634 = vmatpush.bf16.msra.mxu0 0
        %2635 = vmatpush.bf16.msra.mxu0 0
        %2636 = vmatpush.bf16.msra.mxu0 0
        %2637 = vmatpush.bf16.msra.mxu0 %v2056
        %2638 = vmatmul.bf16.gmra.mxu0 %v2615
        %v2639 = vpop.f32.mrf.mxu0
        %v2640 = vadd.f32 0.0, %v2639
        %v2641 = vpop.f32.mrf.mxu0
        %2642 = vdwg.mxu0
        %v2643 = vpack.c.bf16 %v2627, %v2627
        %v2644 = vpack.c.bf16 %v2640, %v2640
        %s2645 = scalar_lea.vmem %s3, 512
        %v2646 = vld [vmem:[%s2645] sm:$0xff]
        %v2647 = vld [vmem:[%s2645 + $0x8] sm:$0xff]
        %v2648 = vld [vmem:[%s2645 + $0x10] sm:$0xff]
        %v2649 = vld [vmem:[%s2645 + $0x18] sm:$0xff]
        %v2650 = vld [vmem:[%s2645 + $0x20] sm:$0xff]
        %v2651 = vld [vmem:[%s2645 + $0x28] sm:$0xff]
        %v2652 = vld [vmem:[%s2645 + $0x30] sm:$0xff]
        %v2653 = vld [vmem:[%s2645 + $0x38] sm:$0xff]
        %v2654 = vld [vmem:[%s2645 + $0x40] sm:$0xff]
        %v2655 = vld [vmem:[%s2645 + $0x48] sm:$0xff]
        %v2656 = vld [vmem:[%s2645 + $0x50] sm:$0xff]
        %v2657 = vld [vmem:[%s2645 + $0x58] sm:$0xff]
        %v2658 = vld [vmem:[%s2645 + $0x60] sm:$0xff]
        %v2659 = vld [vmem:[%s2645 + $0x68] sm:$0xff]
        %v2660 = vld [vmem:[%s2645 + $0x70] sm:$0xff]
        %v2661 = vld [vmem:[%s2645 + $0x78] sm:$0xff]
        %v2662 = vld [vmem:[%s2645 + $0x80] sm:$0xff]
        %v2663 = vld [vmem:[%s2645 + $0x88] sm:$0xff]
        %v2664 = vld [vmem:[%s2645 + $0x90] sm:$0xff]
        %v2665 = vld [vmem:[%s2645 + $0x98] sm:$0xff]
        %v2666 = vld [vmem:[%s2645 + $0xa0] sm:$0xff]
        %v2667 = vld [vmem:[%s2645 + $0xa8] sm:$0xff]
        %v2668 = vld [vmem:[%s2645 + $0xb0] sm:$0xff]
        %v2669 = vld [vmem:[%s2645 + $0xb8] sm:$0xff]
        %v2670 = vld [vmem:[%s2645 + $0xc0] sm:$0xff]
        %v2671 = vld [vmem:[%s2645 + $0xc8] sm:$0xff]
        %v2672 = vld [vmem:[%s2645 + $0xd0] sm:$0xff]
        %v2673 = vld [vmem:[%s2645 + $0xd8] sm:$0xff]
        %v2674 = vld [vmem:[%s2645 + $0xe0] sm:$0xff]
        %v2675 = vld [vmem:[%s2645 + $0xe8] sm:$0xff]
        %v2676 = vld [vmem:[%s2645 + $0xf0] sm:$0xff]
        %v2677 = vld [vmem:[%s2645 + $0xf8] sm:$0xff]
        %v2710 = vunpack.c.l.b16 %v2646
        %v2711 = vunpack.c.h.b16 %v2646
        %v2712 = vunpack.c.l.b16 %v2647
        %v2713 = vunpack.c.h.b16 %v2647
        %v2714 = vunpack.c.l.b16 %v2648
        %v2715 = vunpack.c.h.b16 %v2648
        %v2716 = vunpack.c.l.b16 %v2649
        %v2717 = vunpack.c.h.b16 %v2649
        %v2718 = vunpack.c.l.b16 %v2650
        %v2719 = vunpack.c.h.b16 %v2650
        %v2720 = vunpack.c.l.b16 %v2651
        %v2721 = vunpack.c.h.b16 %v2651
        %v2722 = vunpack.c.l.b16 %v2652
        %v2723 = vunpack.c.h.b16 %v2652
        %v2724 = vunpack.c.l.b16 %v2653
        %v2725 = vunpack.c.h.b16 %v2653
        %v2726 = vunpack.c.l.b16 %v2654
        %v2727 = vunpack.c.h.b16 %v2654
        %v2728 = vunpack.c.l.b16 %v2655
        %v2729 = vunpack.c.h.b16 %v2655
        %v2730 = vunpack.c.l.b16 %v2656
        %v2731 = vunpack.c.h.b16 %v2656
        %v2732 = vunpack.c.l.b16 %v2657
        %v2733 = vunpack.c.h.b16 %v2657
        %v2734 = vunpack.c.l.b16 %v2658
        %v2735 = vunpack.c.h.b16 %v2658
        %v2736 = vunpack.c.l.b16 %v2659
        %v2737 = vunpack.c.h.b16 %v2659
        %v2738 = vunpack.c.l.b16 %v2660
        %v2739 = vunpack.c.h.b16 %v2660
        %v2740 = vunpack.c.l.b16 %v2661
        %v2741 = vunpack.c.h.b16 %v2661
        %v2742 = vunpack.c.l.b16 %v2662
        %v2743 = vunpack.c.h.b16 %v2662
        %v2744 = vunpack.c.l.b16 %v2663
        %v2745 = vunpack.c.h.b16 %v2663
        %v2746 = vunpack.c.l.b16 %v2664
        %v2747 = vunpack.c.h.b16 %v2664
        %v2748 = vunpack.c.l.b16 %v2665
        %v2749 = vunpack.c.h.b16 %v2665
        %v2750 = vunpack.c.l.b16 %v2666
        %v2751 = vunpack.c.h.b16 %v2666
        %v2752 = vunpack.c.l.b16 %v2667
        %v2753 = vunpack.c.h.b16 %v2667
        %v2754 = vunpack.c.l.b16 %v2668
        %v2755 = vunpack.c.h.b16 %v2668
        %v2756 = vunpack.c.l.b16 %v2669
        %v2757 = vunpack.c.h.b16 %v2669
        %v2758 = vunpack.c.l.b16 %v2670
        %v2759 = vunpack.c.h.b16 %v2670
        %v2760 = vunpack.c.l.b16 %v2671
        %v2761 = vunpack.c.h.b16 %v2671
        %v2762 = vunpack.c.l.b16 %v2672
        %v2763 = vunpack.c.h.b16 %v2672
        %v2764 = vunpack.c.l.b16 %v2673
        %v2765 = vunpack.c.h.b16 %v2673
        %v2766 = vunpack.c.l.b16 %v2674
        %v2767 = vunpack.c.h.b16 %v2674
        %v2768 = vunpack.c.l.b16 %v2675
        %v2769 = vunpack.c.h.b16 %v2675
        %v2770 = vunpack.c.l.b16 %v2676
        %v2771 = vunpack.c.h.b16 %v2676
        %v2772 = vunpack.c.l.b16 %v2677
        %v2773 = vunpack.c.h.b16 %v2677
        %v2774 = vpack.c.b16 %v2712, %v2710
        %v2775 = vpack.c.b16 %v2713, %v2711
        %v2776 = vpack.c.b16 %v2716, %v2714
        %v2777 = vpack.c.b16 %v2717, %v2715
        %v2778 = vpack.c.b16 %v2720, %v2718
        %v2779 = vpack.c.b16 %v2721, %v2719
        %v2780 = vpack.c.b16 %v2724, %v2722
        %v2781 = vpack.c.b16 %v2725, %v2723
        %v2782 = vpack.c.b16 %v2728, %v2726
        %v2783 = vpack.c.b16 %v2729, %v2727
        %v2784 = vpack.c.b16 %v2732, %v2730
        %v2785 = vpack.c.b16 %v2733, %v2731
        %v2786 = vpack.c.b16 %v2736, %v2734
        %v2787 = vpack.c.b16 %v2737, %v2735
        %v2788 = vpack.c.b16 %v2740, %v2738
        %v2789 = vpack.c.b16 %v2741, %v2739
        %v2790 = vpack.c.b16 %v2744, %v2742
        %v2791 = vpack.c.b16 %v2745, %v2743
        %v2792 = vpack.c.b16 %v2748, %v2746
        %v2793 = vpack.c.b16 %v2749, %v2747
        %v2794 = vpack.c.b16 %v2752, %v2750
        %v2795 = vpack.c.b16 %v2753, %v2751
        %v2796 = vpack.c.b16 %v2756, %v2754
        %v2797 = vpack.c.b16 %v2757, %v2755
        %v2798 = vpack.c.b16 %v2760, %v2758
        %v2799 = vpack.c.b16 %v2761, %v2759
        %v2800 = vpack.c.b16 %v2764, %v2762
        %v2801 = vpack.c.b16 %v2765, %v2763
        %v2802 = vpack.c.b16 %v2768, %v2766
        %v2803 = vpack.c.b16 %v2769, %v2767
        %v2804 = vpack.c.b16 %v2772, %v2770
        %v2805 = vpack.c.b16 %v2773, %v2771
        %2838 = vmatpush.bf16.msra.mxu0 %v2788
        %2839 = vmatpush.bf16.msra.mxu0 %v2786
        %2840 = vmatpush.bf16.msra.mxu0 %v2784
        %2841 = vmatpush.bf16.msra.mxu0 %v2782
        %2842 = vmatpush.bf16.msra.mxu0 %v2780
        %2843 = vmatpush.bf16.msra.mxu0 %v2778
        %2844 = vmatpush.bf16.msra.mxu0 %v2776
        %2845 = vmatpush.bf16.msra.mxu0 %v2774
        %2846 = vmatmul.bf16.gmra.mxu0 %v2643
        %v2847 = vpop.f32.mrf.mxu0
        %v2848 = vadd.f32 0.0, %v2847
        %v2849 = vpop.f32.mrf.mxu0
        %2850 = vdwg.mxu0
        %2851 = vmatpush.bf16.msra.mxu0 %v2804
        %2852 = vmatpush.bf16.msra.mxu0 %v2802
        %2853 = vmatpush.bf16.msra.mxu0 %v2800
        %2854 = vmatpush.bf16.msra.mxu0 %v2798
        %2855 = vmatpush.bf16.msra.mxu0 %v2796
        %2856 = vmatpush.bf16.msra.mxu0 %v2794
        %2857 = vmatpush.bf16.msra.mxu0 %v2792
        %2858 = vmatpush.bf16.msra.mxu0 %v2790
        %2859 = vmatmul.bf16.gmra.mxu0 %v2644
        %v2860 = vpop.f32.mrf.mxu0
        %v2861 = vadd.f32 %v2848, %v2860
        %v2862 = vpop.f32.mrf.mxu0
        %2863 = vdwg.mxu0
        %2864 = vmatpush.bf16.msra.mxu0 %v2789
        %2865 = vmatpush.bf16.msra.mxu0 %v2787
        %2866 = vmatpush.bf16.msra.mxu0 %v2785
        %2867 = vmatpush.bf16.msra.mxu0 %v2783
        %2868 = vmatpush.bf16.msra.mxu0 %v2781
        %2869 = vmatpush.bf16.msra.mxu0 %v2779
        %2870 = vmatpush.bf16.msra.mxu0 %v2777
        %2871 = vmatpush.bf16.msra.mxu0 %v2775
        %2872 = vmatmul.bf16.gmra.mxu0 %v2643
        %v2873 = vpop.f32.mrf.mxu0
        %v2874 = vadd.f32 0.0, %v2873
        %v2875 = vpop.f32.mrf.mxu0
        %2876 = vdwg.mxu0
        %2877 = vmatpush.bf16.msra.mxu0 %v2805
        %2878 = vmatpush.bf16.msra.mxu0 %v2803
        %2879 = vmatpush.bf16.msra.mxu0 %v2801
        %2880 = vmatpush.bf16.msra.mxu0 %v2799
        %2881 = vmatpush.bf16.msra.mxu0 %v2797
        %2882 = vmatpush.bf16.msra.mxu0 %v2795
        %2883 = vmatpush.bf16.msra.mxu0 %v2793
        %2884 = vmatpush.bf16.msra.mxu0 %v2791
        %2885 = vmatmul.bf16.gmra.mxu0 %v2644
        %v2886 = vpop.f32.mrf.mxu0
        %v2887 = vadd.f32 %v2874, %v2886
        %v2888 = vpop.f32.mrf.mxu0
        %2889 = vdwg.mxu0
        %v2890 = vadd.f32 %v2581, %v2861
        %v2891 = vadd.f32 %v2607, %v2887
        %v2892 = vadd.s32 %v2043, 3
        %vm2893 = vcmp.eq.s32.totalorder %v393, %v2892
        %v2894 = vsel %vm2893, 1.0, 0.0
        %v2895 = vpack.c.bf16 %v2894, %v2894
        %v2897 = vsel %vm2047, %v2895, 0
        %2899 = vmatpush.bf16.msra.mxu0 0
        %2900 = vmatpush.bf16.msra.mxu0 0
        %2901 = vmatpush.bf16.msra.mxu0 0
        %2902 = vmatpush.bf16.msra.mxu0 0
        %2903 = vmatpush.bf16.msra.mxu0 0
        %2904 = vmatpush.bf16.msra.mxu0 0
        %2905 = vmatpush.bf16.msra.mxu0 0
        %2906 = vmatpush.bf16.msra.mxu0 %v2053
        %2907 = vmatmul.bf16.gmra.mxu0 %v2897
        %v2908 = vpop.f32.mrf.mxu0
        %v2909 = vadd.f32 0.0, %v2908
        %v2910 = vpop.f32.mrf.mxu0
        %2911 = vdwg.mxu0
        %2912 = vmatpush.bf16.msra.mxu0 0
        %2913 = vmatpush.bf16.msra.mxu0 0
        %2914 = vmatpush.bf16.msra.mxu0 0
        %2915 = vmatpush.bf16.msra.mxu0 0
        %2916 = vmatpush.bf16.msra.mxu0 0
        %2917 = vmatpush.bf16.msra.mxu0 0
        %2918 = vmatpush.bf16.msra.mxu0 0
        %2919 = vmatpush.bf16.msra.mxu0 %v2056
        %2920 = vmatmul.bf16.gmra.mxu0 %v2897
        %v2921 = vpop.f32.mrf.mxu0
        %v2922 = vadd.f32 0.0, %v2921
        %v2923 = vpop.f32.mrf.mxu0
        %2924 = vdwg.mxu0
        %v2925 = vpack.c.bf16 %v2909, %v2909
        %v2926 = vpack.c.bf16 %v2922, %v2922
        %s2927 = scalar_lea.vmem %s3, 768
        %v2928 = vld [vmem:[%s2927] sm:$0xff]
        %v2929 = vld [vmem:[%s2927 + $0x8] sm:$0xff]
        %v2930 = vld [vmem:[%s2927 + $0x10] sm:$0xff]
        %v2931 = vld [vmem:[%s2927 + $0x18] sm:$0xff]
        %v2932 = vld [vmem:[%s2927 + $0x20] sm:$0xff]
        %v2933 = vld [vmem:[%s2927 + $0x28] sm:$0xff]
        %v2934 = vld [vmem:[%s2927 + $0x30] sm:$0xff]
        %v2935 = vld [vmem:[%s2927 + $0x38] sm:$0xff]
        %v2936 = vld [vmem:[%s2927 + $0x40] sm:$0xff]
        %v2937 = vld [vmem:[%s2927 + $0x48] sm:$0xff]
        %v2938 = vld [vmem:[%s2927 + $0x50] sm:$0xff]
        %v2939 = vld [vmem:[%s2927 + $0x58] sm:$0xff]
        %v2940 = vld [vmem:[%s2927 + $0x60] sm:$0xff]
        %v2941 = vld [vmem:[%s2927 + $0x68] sm:$0xff]
        %v2942 = vld [vmem:[%s2927 + $0x70] sm:$0xff]
        %v2943 = vld [vmem:[%s2927 + $0x78] sm:$0xff]
        %v2944 = vld [vmem:[%s2927 + $0x80] sm:$0xff]
        %v2945 = vld [vmem:[%s2927 + $0x88] sm:$0xff]
        %v2946 = vld [vmem:[%s2927 + $0x90] sm:$0xff]
        %v2947 = vld [vmem:[%s2927 + $0x98] sm:$0xff]
        %v2948 = vld [vmem:[%s2927 + $0xa0] sm:$0xff]
        %v2949 = vld [vmem:[%s2927 + $0xa8] sm:$0xff]
        %v2950 = vld [vmem:[%s2927 + $0xb0] sm:$0xff]
        %v2951 = vld [vmem:[%s2927 + $0xb8] sm:$0xff]
        %v2952 = vld [vmem:[%s2927 + $0xc0] sm:$0xff]
        %v2953 = vld [vmem:[%s2927 + $0xc8] sm:$0xff]
        %v2954 = vld [vmem:[%s2927 + $0xd0] sm:$0xff]
        %v2955 = vld [vmem:[%s2927 + $0xd8] sm:$0xff]
        %v2956 = vld [vmem:[%s2927 + $0xe0] sm:$0xff]
        %v2957 = vld [vmem:[%s2927 + $0xe8] sm:$0xff]
        %v2958 = vld [vmem:[%s2927 + $0xf0] sm:$0xff]
        %v2959 = vld [vmem:[%s2927 + $0xf8] sm:$0xff]
        %v2992 = vunpack.c.l.b16 %v2928
        %v2993 = vunpack.c.h.b16 %v2928
        %v2994 = vunpack.c.l.b16 %v2929
        %v2995 = vunpack.c.h.b16 %v2929
        %v2996 = vunpack.c.l.b16 %v2930
        %v2997 = vunpack.c.h.b16 %v2930
        %v2998 = vunpack.c.l.b16 %v2931
        %v2999 = vunpack.c.h.b16 %v2931
        %v3000 = vunpack.c.l.b16 %v2932
        %v3001 = vunpack.c.h.b16 %v2932
        %v3002 = vunpack.c.l.b16 %v2933
        %v3003 = vunpack.c.h.b16 %v2933
        %v3004 = vunpack.c.l.b16 %v2934
        %v3005 = vunpack.c.h.b16 %v2934
        %v3006 = vunpack.c.l.b16 %v2935
        %v3007 = vunpack.c.h.b16 %v2935
        %v3008 = vunpack.c.l.b16 %v2936
        %v3009 = vunpack.c.h.b16 %v2936
        %v3010 = vunpack.c.l.b16 %v2937
        %v3011 = vunpack.c.h.b16 %v2937
        %v3012 = vunpack.c.l.b16 %v2938
        %v3013 = vunpack.c.h.b16 %v2938
        %v3014 = vunpack.c.l.b16 %v2939
        %v3015 = vunpack.c.h.b16 %v2939
        %v3016 = vunpack.c.l.b16 %v2940
        %v3017 = vunpack.c.h.b16 %v2940
        %v3018 = vunpack.c.l.b16 %v2941
        %v3019 = vunpack.c.h.b16 %v2941
        %v3020 = vunpack.c.l.b16 %v2942
        %v3021 = vunpack.c.h.b16 %v2942
        %v3022 = vunpack.c.l.b16 %v2943
        %v3023 = vunpack.c.h.b16 %v2943
        %v3024 = vunpack.c.l.b16 %v2944
        %v3025 = vunpack.c.h.b16 %v2944
        %v3026 = vunpack.c.l.b16 %v2945
        %v3027 = vunpack.c.h.b16 %v2945
        %v3028 = vunpack.c.l.b16 %v2946
        %v3029 = vunpack.c.h.b16 %v2946
        %v3030 = vunpack.c.l.b16 %v2947
        %v3031 = vunpack.c.h.b16 %v2947
        %v3032 = vunpack.c.l.b16 %v2948
        %v3033 = vunpack.c.h.b16 %v2948
        %v3034 = vunpack.c.l.b16 %v2949
        %v3035 = vunpack.c.h.b16 %v2949
        %v3036 = vunpack.c.l.b16 %v2950
        %v3037 = vunpack.c.h.b16 %v2950
        %v3038 = vunpack.c.l.b16 %v2951
        %v3039 = vunpack.c.h.b16 %v2951
        %v3040 = vunpack.c.l.b16 %v2952
        %v3041 = vunpack.c.h.b16 %v2952
        %v3042 = vunpack.c.l.b16 %v2953
        %v3043 = vunpack.c.h.b16 %v2953
        %v3044 = vunpack.c.l.b16 %v2954
        %v3045 = vunpack.c.h.b16 %v2954
        %v3046 = vunpack.c.l.b16 %v2955
        %v3047 = vunpack.c.h.b16 %v2955
        %v3048 = vunpack.c.l.b16 %v2956
        %v3049 = vunpack.c.h.b16 %v2956
        %v3050 = vunpack.c.l.b16 %v2957
        %v3051 = vunpack.c.h.b16 %v2957
        %v3052 = vunpack.c.l.b16 %v2958
        %v3053 = vunpack.c.h.b16 %v2958
        %v3054 = vunpack.c.l.b16 %v2959
        %v3055 = vunpack.c.h.b16 %v2959
        %v3056 = vpack.c.b16 %v2994, %v2992
        %v3057 = vpack.c.b16 %v2995, %v2993
        %v3058 = vpack.c.b16 %v2998, %v2996
        %v3059 = vpack.c.b16 %v2999, %v2997
        %v3060 = vpack.c.b16 %v3002, %v3000
        %v3061 = vpack.c.b16 %v3003, %v3001
        %v3062 = vpack.c.b16 %v3006, %v3004
        %v3063 = vpack.c.b16 %v3007, %v3005
        %v3064 = vpack.c.b16 %v3010, %v3008
        %v3065 = vpack.c.b16 %v3011, %v3009
        %v3066 = vpack.c.b16 %v3014, %v3012
        %v3067 = vpack.c.b16 %v3015, %v3013
        %v3068 = vpack.c.b16 %v3018, %v3016
        %v3069 = vpack.c.b16 %v3019, %v3017
        %v3070 = vpack.c.b16 %v3022, %v3020
        %v3071 = vpack.c.b16 %v3023, %v3021
        %v3072 = vpack.c.b16 %v3026, %v3024
        %v3073 = vpack.c.b16 %v3027, %v3025
        %v3074 = vpack.c.b16 %v3030, %v3028
        %v3075 = vpack.c.b16 %v3031, %v3029
        %v3076 = vpack.c.b16 %v3034, %v3032
        %v3077 = vpack.c.b16 %v3035, %v3033
        %v3078 = vpack.c.b16 %v3038, %v3036
        %v3079 = vpack.c.b16 %v3039, %v3037
        %v3080 = vpack.c.b16 %v3042, %v3040
        %v3081 = vpack.c.b16 %v3043, %v3041
        %v3082 = vpack.c.b16 %v3046, %v3044
        %v3083 = vpack.c.b16 %v3047, %v3045
        %v3084 = vpack.c.b16 %v3050, %v3048
        %v3085 = vpack.c.b16 %v3051, %v3049
        %v3086 = vpack.c.b16 %v3054, %v3052
        %v3087 = vpack.c.b16 %v3055, %v3053
        %3120 = vmatpush.bf16.msra.mxu0 %v3070
        %3121 = vmatpush.bf16.msra.mxu0 %v3068
        %3122 = vmatpush.bf16.msra.mxu0 %v3066
        %3123 = vmatpush.bf16.msra.mxu0 %v3064
        %3124 = vmatpush.bf16.msra.mxu0 %v3062
        %3125 = vmatpush.bf16.msra.mxu0 %v3060
        %3126 = vmatpush.bf16.msra.mxu0 %v3058
        %3127 = vmatpush.bf16.msra.mxu0 %v3056
        %3128 = vmatmul.bf16.gmra.mxu0 %v2925
        %v3129 = vpop.f32.mrf.mxu0
        %v3130 = vadd.f32 0.0, %v3129
        %v3131 = vpop.f32.mrf.mxu0
        %3132 = vdwg.mxu0
        %3133 = vmatpush.bf16.msra.mxu0 %v3086
        %3134 = vmatpush.bf16.msra.mxu0 %v3084
        %3135 = vmatpush.bf16.msra.mxu0 %v3082
        %3136 = vmatpush.bf16.msra.mxu0 %v3080
        %3137 = vmatpush.bf16.msra.mxu0 %v3078
        %3138 = vmatpush.bf16.msra.mxu0 %v3076
        %3139 = vmatpush.bf16.msra.mxu0 %v3074
        %3140 = vmatpush.bf16.msra.mxu0 %v3072
        %3141 = vmatmul.bf16.gmra.mxu0 %v2926
        %v3142 = vpop.f32.mrf.mxu0
        %v3143 = vadd.f32 %v3130, %v3142
        %v3144 = vpop.f32.mrf.mxu0
        %3145 = vdwg.mxu0
        %3146 = vmatpush.bf16.msra.mxu0 %v3071
        %3147 = vmatpush.bf16.msra.mxu0 %v3069
        %3148 = vmatpush.bf16.msra.mxu0 %v3067
        %3149 = vmatpush.bf16.msra.mxu0 %v3065
        %3150 = vmatpush.bf16.msra.mxu0 %v3063
        %3151 = vmatpush.bf16.msra.mxu0 %v3061
        %3152 = vmatpush.bf16.msra.mxu0 %v3059
        %3153 = vmatpush.bf16.msra.mxu0 %v3057
        %3154 = vmatmul.bf16.gmra.mxu0 %v2925
        %v3155 = vpop.f32.mrf.mxu0
        %v3156 = vadd.f32 0.0, %v3155
        %v3157 = vpop.f32.mrf.mxu0
        %3158 = vdwg.mxu0
        %3159 = vmatpush.bf16.msra.mxu0 %v3087
        %3160 = vmatpush.bf16.msra.mxu0 %v3085
        %3161 = vmatpush.bf16.msra.mxu0 %v3083
        %3162 = vmatpush.bf16.msra.mxu0 %v3081
        %3163 = vmatpush.bf16.msra.mxu0 %v3079
        %3164 = vmatpush.bf16.msra.mxu0 %v3077
        %3165 = vmatpush.bf16.msra.mxu0 %v3075
        %3166 = vmatpush.bf16.msra.mxu0 %v3073
        %3167 = vmatmul.bf16.gmra.mxu0 %v2926
        %v3168 = vpop.f32.mrf.mxu0
        %v3169 = vadd.f32 %v3156, %v3168
        %v3170 = vpop.f32.mrf.mxu0
        %3171 = vdwg.mxu0
        %v3172 = vadd.f32 %v2890, %v3143
        %v3173 = vadd.f32 %v2891, %v3169
        %v3174 = vld [vmem:[%s4] sm:$0x3]
        %v3176 = vperm.slane %v3174, 0
        %v3177 = vperm.slane %v3174, 1
        %v3180 = vadd.f32 %v3172, %v3176
        %v3181 = vadd.f32 %v3173, %v3177
        %v3182 = vmax.f32 %v3180, 0.0
        %v3183 = vmax.f32 %v3181, 0.0
        %v3184 = vpack.c.bf16 %v3182, %v3182
        %v3185 = vpack.c.bf16 %v3183, %v3183
        %vm3186 = vcmp.eq.s32.totalorder %v393, %v391
        %v3187 = vsel %vm3186, 1.0, 0.0
        %v3188 = vpack.c.bf16 %v3187, %v3187
        %vm3189 = vcmask 23552
        %v3191 = vsel %vm3189, %v3188, 0
        %vm3193 = vcmask 1040384
        %v3194 = vsel %vm3193, 4294967295, 65535
        %v3195 = vsel %vm427, %v3194, 0
        %v3197 = vand.u32 %v3184, %v3195
        %v3200 = vand.u32 %v3185, %v3195
        %3202 = vmatpush.bf16.msra.mxu0 0
        %3203 = vmatpush.bf16.msra.mxu0 0
        %3204 = vmatpush.bf16.msra.mxu0 0
        %3205 = vmatpush.bf16.msra.mxu0 0
        %3206 = vmatpush.bf16.msra.mxu0 0
        %3207 = vmatpush.bf16.msra.mxu0 0
        %3208 = vmatpush.bf16.msra.mxu0 0
        %3209 = vmatpush.bf16.msra.mxu0 %v3197
        %3210 = vmatmul.bf16.gmra.mxu0 %v3191
        %v3211 = vpop.f32.mrf.mxu0
        %v3212 = vadd.f32 0.0, %v3211
        %v3213 = vpop.f32.mrf.mxu0
        %3214 = vdwg.mxu0
        %3215 = vmatpush.bf16.msra.mxu0 0
        %3216 = vmatpush.bf16.msra.mxu0 0
        %3217 = vmatpush.bf16.msra.mxu0 0
        %3218 = vmatpush.bf16.msra.mxu0 0
        %3219 = vmatpush.bf16.msra.mxu0 0
        %3220 = vmatpush.bf16.msra.mxu0 0
        %3221 = vmatpush.bf16.msra.mxu0 0
        %3222 = vmatpush.bf16.msra.mxu0 %v3200
        %3223 = vmatmul.bf16.gmra.mxu0 %v3191
        %v3224 = vpop.f32.mrf.mxu0
        %v3225 = vadd.f32 0.0, %v3224
        %v3226 = vpop.f32.mrf.mxu0
        %3227 = vdwg.mxu0
        %v3228 = vpack.c.bf16 %v3212, %v3212
        %v3229 = vpack.c.bf16 %v3225, %v3225
        %v3230 = vld [vmem:[%s5] sm:$0xf]
        %v3231 = vld [vmem:[%s5 + $0x4] sm:$0xf]
        %v3232 = vld [vmem:[%s5 + $0x8] sm:$0xf]
        %v3233 = vld [vmem:[%s5 + $0xc] sm:$0xf]
        %v3234 = vld [vmem:[%s5 + $0x10] sm:$0xf]
        %v3235 = vld [vmem:[%s5 + $0x14] sm:$0xf]
        %v3236 = vld [vmem:[%s5 + $0x18] sm:$0xf]
        %v3237 = vld [vmem:[%s5 + $0x1c] sm:$0xf]
        %v3238 = vld [vmem:[%s5 + $0x20] sm:$0xf]
        %v3239 = vld [vmem:[%s5 + $0x24] sm:$0xf]
        %v3240 = vld [vmem:[%s5 + $0x28] sm:$0xf]
        %v3241 = vld [vmem:[%s5 + $0x2c] sm:$0xf]
        %v3242 = vld [vmem:[%s5 + $0x30] sm:$0xf]
        %v3243 = vld [vmem:[%s5 + $0x34] sm:$0xf]
        %v3244 = vld [vmem:[%s5 + $0x38] sm:$0xf]
        %v3245 = vld [vmem:[%s5 + $0x3c] sm:$0xf]
        %v3246 = vld [vmem:[%s5 + $0x40] sm:$0xf]
        %v3247 = vld [vmem:[%s5 + $0x44] sm:$0xf]
        %v3248 = vld [vmem:[%s5 + $0x48] sm:$0xf]
        %v3249 = vld [vmem:[%s5 + $0x4c] sm:$0xf]
        %v3250 = vld [vmem:[%s5 + $0x50] sm:$0xf]
        %v3251 = vld [vmem:[%s5 + $0x54] sm:$0xf]
        %v3252 = vld [vmem:[%s5 + $0x58] sm:$0xf]
        %v3253 = vld [vmem:[%s5 + $0x5c] sm:$0xf]
        %v3254 = vadd.s32 %v391, 1
        %vm3255 = vcmp.eq.s32.totalorder %v393, %v3254
        %v3256 = vsel %vm3255, 1.0, 0.0
        %v3257 = vpack.c.bf16 %v3256, %v3256
        %v3259 = vsel %vm3189, %v3257, 0
        %3261 = vmatpush.bf16.msra.mxu0 0
        %3262 = vmatpush.bf16.msra.mxu0 0
        %3263 = vmatpush.bf16.msra.mxu0 0
        %3264 = vmatpush.bf16.msra.mxu0 0
        %3265 = vmatpush.bf16.msra.mxu0 0
        %3266 = vmatpush.bf16.msra.mxu0 0
        %3267 = vmatpush.bf16.msra.mxu0 0
        %3268 = vmatpush.bf16.msra.mxu0 %v3197
        %3269 = vmatmul.bf16.gmra.mxu0 %v3259
        %v3270 = vpop.f32.mrf.mxu0
        %v3271 = vadd.f32 0.0, %v3270
        %v3272 = vpop.f32.mrf.mxu0
        %3273 = vdwg.mxu0
        %3274 = vmatpush.bf16.msra.mxu0 0
        %3275 = vmatpush.bf16.msra.mxu0 0
        %3276 = vmatpush.bf16.msra.mxu0 0
        %3277 = vmatpush.bf16.msra.mxu0 0
        %3278 = vmatpush.bf16.msra.mxu0 0
        %3279 = vmatpush.bf16.msra.mxu0 0
        %3280 = vmatpush.bf16.msra.mxu0 0
        %3281 = vmatpush.bf16.msra.mxu0 %v3200
        %3282 = vmatmul.bf16.gmra.mxu0 %v3259
        %v3283 = vpop.f32.mrf.mxu0
        %v3284 = vadd.f32 0.0, %v3283
        %v3285 = vpop.f32.mrf.mxu0
        %3286 = vdwg.mxu0
        %v3287 = vpack.c.bf16 %v3271, %v3271
        %v3288 = vpack.c.bf16 %v3284, %v3284
        %s3289 = scalar_lea.vmem %s5, 96
        %v3290 = vld [vmem:[%s3289] sm:$0xf]
        %v3291 = vld [vmem:[%s3289 + $0x4] sm:$0xf]
        %v3292 = vld [vmem:[%s3289 + $0x8] sm:$0xf]
        %v3293 = vld [vmem:[%s3289 + $0xc] sm:$0xf]
        %v3294 = vld [vmem:[%s3289 + $0x10] sm:$0xf]
        %v3295 = vld [vmem:[%s3289 + $0x14] sm:$0xf]
        %v3296 = vld [vmem:[%s3289 + $0x18] sm:$0xf]
        %v3297 = vld [vmem:[%s3289 + $0x1c] sm:$0xf]
        %v3298 = vld [vmem:[%s3289 + $0x20] sm:$0xf]
        %v3299 = vld [vmem:[%s3289 + $0x24] sm:$0xf]
        %v3300 = vld [vmem:[%s3289 + $0x28] sm:$0xf]
        %v3301 = vld [vmem:[%s3289 + $0x2c] sm:$0xf]
        %v3302 = vld [vmem:[%s3289 + $0x30] sm:$0xf]
        %v3303 = vld [vmem:[%s3289 + $0x34] sm:$0xf]
        %v3304 = vld [vmem:[%s3289 + $0x38] sm:$0xf]
        %v3305 = vld [vmem:[%s3289 + $0x3c] sm:$0xf]
        %v3306 = vld [vmem:[%s3289 + $0x40] sm:$0xf]
        %v3307 = vld [vmem:[%s3289 + $0x44] sm:$0xf]
        %v3308 = vld [vmem:[%s3289 + $0x48] sm:$0xf]
        %v3309 = vld [vmem:[%s3289 + $0x4c] sm:$0xf]
        %v3310 = vld [vmem:[%s3289 + $0x50] sm:$0xf]
        %v3311 = vld [vmem:[%s3289 + $0x54] sm:$0xf]
        %v3312 = vld [vmem:[%s3289 + $0x58] sm:$0xf]
        %v3313 = vld [vmem:[%s3289 + $0x5c] sm:$0xf]
        %v3338 = vunpack.c.l.b16 %v3290
        %v3339 = vunpack.c.l.b16 %v3291
        %v3340 = vunpack.c.l.b16 %v3292
        %v3341 = vunpack.c.l.b16 %v3293
        %v3342 = vunpack.c.l.b16 %v3294
        %v3343 = vunpack.c.l.b16 %v3295
        %v3344 = vunpack.c.l.b16 %v3296
        %v3345 = vunpack.c.l.b16 %v3297
        %v3346 = vunpack.c.l.b16 %v3298
        %v3347 = vunpack.c.l.b16 %v3299
        %v3348 = vunpack.c.l.b16 %v3300
        %v3349 = vunpack.c.l.b16 %v3301
        %v3350 = vunpack.c.l.b16 %v3302
        %v3351 = vunpack.c.l.b16 %v3303
        %v3352 = vunpack.c.l.b16 %v3304
        %v3353 = vunpack.c.l.b16 %v3305
        %v3354 = vunpack.c.l.b16 %v3306
        %v3355 = vunpack.c.l.b16 %v3307
        %v3356 = vunpack.c.l.b16 %v3308
        %v3357 = vunpack.c.l.b16 %v3309
        %v3358 = vunpack.c.l.b16 %v3310
        %v3359 = vunpack.c.l.b16 %v3311
        %v3360 = vunpack.c.l.b16 %v3312
        %v3361 = vunpack.c.l.b16 %v3313
        %v3362 = vpack.c.b16 %v3339, %v3338
        %v3363 = vpack.c.b16 %v3341, %v3340
        %v3364 = vpack.c.b16 %v3343, %v3342
        %v3365 = vpack.c.b16 %v3345, %v3344
        %v3366 = vpack.c.b16 %v3347, %v3346
        %v3367 = vpack.c.b16 %v3349, %v3348
        %v3368 = vpack.c.b16 %v3351, %v3350
        %v3369 = vpack.c.b16 %v3353, %v3352
        %v3370 = vpack.c.b16 %v3355, %v3354
        %v3371 = vpack.c.b16 %v3357, %v3356
        %v3372 = vpack.c.b16 %v3359, %v3358
        %v3373 = vpack.c.b16 %v3361, %v3360
        %vm3386 = vcmask 523264
        %v3388 = vsel %vm3386, %v3288, 0
        %3390 = vmatpush.bf16.msra.mxu0 %v3369
        %3391 = vmatpush.bf16.msra.mxu0 %v3368
        %3392 = vmatpush.bf16.msra.mxu0 %v3367
        %3393 = vmatpush.bf16.msra.mxu0 %v3366
        %3394 = vmatpush.bf16.msra.mxu0 %v3365
        %3395 = vmatpush.bf16.msra.mxu0 %v3364
        %3396 = vmatpush.bf16.msra.mxu0 %v3363
        %3397 = vmatpush.bf16.msra.mxu0 %v3362
        %3398 = vmatmul.bf16.gmra.mxu0 %v3287
        %v3399 = vpop.f32.mrf.mxu0
        %v3400 = vadd.f32 0.0, %v3399
        %v3401 = vpop.f32.mrf.mxu0
        %3402 = vdwg.mxu0
        %3403 = vmatpush.bf16.msra.mxu0 0
        %3404 = vmatpush.bf16.msra.mxu0 0
        %3405 = vmatpush.bf16.msra.mxu0 0
        %3406 = vmatpush.bf16.msra.mxu0 0
        %3407 = vmatpush.bf16.msra.mxu0 %v3373
        %3408 = vmatpush.bf16.msra.mxu0 %v3372
        %3409 = vmatpush.bf16.msra.mxu0 %v3371
        %3410 = vmatpush.bf16.msra.mxu0 %v3370
        %3411 = vmatmul.bf16.gmra.mxu0 %v3388
        %v3412 = vpop.f32.mrf.mxu0
        %v3413 = vadd.f32 %v3400, %v3412
        %v3414 = vpop.f32.mrf.mxu0
        %3415 = vdwg.mxu0
        %v3440 = vunpack.c.l.b16 %v3230
        %v3441 = vunpack.c.l.b16 %v3231
        %v3442 = vunpack.c.l.b16 %v3232
        %v3443 = vunpack.c.l.b16 %v3233
        %v3444 = vunpack.c.l.b16 %v3234
        %v3445 = vunpack.c.l.b16 %v3235
        %v3446 = vunpack.c.l.b16 %v3236
        %v3447 = vunpack.c.l.b16 %v3237
        %v3448 = vunpack.c.l.b16 %v3238
        %v3449 = vunpack.c.l.b16 %v3239
        %v3450 = vunpack.c.l.b16 %v3240
        %v3451 = vunpack.c.l.b16 %v3241
        %v3452 = vunpack.c.l.b16 %v3242
        %v3453 = vunpack.c.l.b16 %v3243
        %v3454 = vunpack.c.l.b16 %v3244
        %v3455 = vunpack.c.l.b16 %v3245
        %v3456 = vunpack.c.l.b16 %v3246
        %v3457 = vunpack.c.l.b16 %v3247
        %v3458 = vunpack.c.l.b16 %v3248
        %v3459 = vunpack.c.l.b16 %v3249
        %v3460 = vunpack.c.l.b16 %v3250
        %v3461 = vunpack.c.l.b16 %v3251
        %v3462 = vunpack.c.l.b16 %v3252
        %v3463 = vunpack.c.l.b16 %v3253
        %v3464 = vpack.c.b16 %v3441, %v3440
        %v3465 = vpack.c.b16 %v3443, %v3442
        %v3466 = vpack.c.b16 %v3445, %v3444
        %v3467 = vpack.c.b16 %v3447, %v3446
        %v3468 = vpack.c.b16 %v3449, %v3448
        %v3469 = vpack.c.b16 %v3451, %v3450
        %v3470 = vpack.c.b16 %v3453, %v3452
        %v3471 = vpack.c.b16 %v3455, %v3454
        %v3472 = vpack.c.b16 %v3457, %v3456
        %v3473 = vpack.c.b16 %v3459, %v3458
        %v3474 = vpack.c.b16 %v3461, %v3460
        %v3475 = vpack.c.b16 %v3463, %v3462
        %v3489 = vsel %vm3386, %v3229, 0
        %3491 = vmatpush.bf16.msra.mxu0 %v3471
        %3492 = vmatpush.bf16.msra.mxu0 %v3470
        %3493 = vmatpush.bf16.msra.mxu0 %v3469
        %3494 = vmatpush.bf16.msra.mxu0 %v3468
        %3495 = vmatpush.bf16.msra.mxu0 %v3467
        %3496 = vmatpush.bf16.msra.mxu0 %v3466
        %3497 = vmatpush.bf16.msra.mxu0 %v3465
        %3498 = vmatpush.bf16.msra.mxu0 %v3464
        %3499 = vmatmul.bf16.gmra.mxu0 %v3228
        %v3500 = vpop.f32.mrf.mxu0
        %v3501 = vadd.f32 %v3413, %v3500
        %v3502 = vpop.f32.mrf.mxu0
        %3503 = vdwg.mxu0
        %3504 = vmatpush.bf16.msra.mxu0 0
        %3505 = vmatpush.bf16.msra.mxu0 0
        %3506 = vmatpush.bf16.msra.mxu0 0
        %3507 = vmatpush.bf16.msra.mxu0 0
        %3508 = vmatpush.bf16.msra.mxu0 %v3475
        %3509 = vmatpush.bf16.msra.mxu0 %v3474
        %3510 = vmatpush.bf16.msra.mxu0 %v3473
        %3511 = vmatpush.bf16.msra.mxu0 %v3472
        %3512 = vmatmul.bf16.gmra.mxu0 %v3489
        %v3513 = vpop.f32.mrf.mxu0
        %v3514 = vadd.f32 %v3501, %v3513
        %v3515 = vpop.f32.mrf.mxu0
        %3516 = vdwg.mxu0
        %v3517 = vadd.s32 %v391, 2
        %vm3518 = vcmp.eq.s32.totalorder %v393, %v3517
        %v3519 = vsel %vm3518, 1.0, 0.0
        %v3520 = vpack.c.bf16 %v3519, %v3519
        %v3522 = vsel %vm3189, %v3520, 0
        %3524 = vmatpush.bf16.msra.mxu0 0
        %3525 = vmatpush.bf16.msra.mxu0 0
        %3526 = vmatpush.bf16.msra.mxu0 0
        %3527 = vmatpush.bf16.msra.mxu0 0
        %3528 = vmatpush.bf16.msra.mxu0 0
        %3529 = vmatpush.bf16.msra.mxu0 0
        %3530 = vmatpush.bf16.msra.mxu0 0
        %3531 = vmatpush.bf16.msra.mxu0 %v3197
        %3532 = vmatmul.bf16.gmra.mxu0 %v3522
        %v3533 = vpop.f32.mrf.mxu0
        %v3534 = vadd.f32 0.0, %v3533
        %v3535 = vpop.f32.mrf.mxu0
        %3536 = vdwg.mxu0
        %3537 = vmatpush.bf16.msra.mxu0 0
        %3538 = vmatpush.bf16.msra.mxu0 0
        %3539 = vmatpush.bf16.msra.mxu0 0
        %3540 = vmatpush.bf16.msra.mxu0 0
        %3541 = vmatpush.bf16.msra.mxu0 0
        %3542 = vmatpush.bf16.msra.mxu0 0
        %3543 = vmatpush.bf16.msra.mxu0 0
        %3544 = vmatpush.bf16.msra.mxu0 %v3200
        %3545 = vmatmul.bf16.gmra.mxu0 %v3522
        %v3546 = vpop.f32.mrf.mxu0
        %v3547 = vadd.f32 0.0, %v3546
        %v3548 = vpop.f32.mrf.mxu0
        %3549 = vdwg.mxu0
        %v3550 = vpack.c.bf16 %v3534, %v3534
        %v3551 = vpack.c.bf16 %v3547, %v3547
        %s3552 = scalar_lea.vmem %s5, 192
        %v3553 = vld [vmem:[%s3552] sm:$0xf]
        %v3554 = vld [vmem:[%s3552 + $0x4] sm:$0xf]
        %v3555 = vld [vmem:[%s3552 + $0x8] sm:$0xf]
        %v3556 = vld [vmem:[%s3552 + $0xc] sm:$0xf]
        %v3557 = vld [vmem:[%s3552 + $0x10] sm:$0xf]
        %v3558 = vld [vmem:[%s3552 + $0x14] sm:$0xf]
        %v3559 = vld [vmem:[%s3552 + $0x18] sm:$0xf]
        %v3560 = vld [vmem:[%s3552 + $0x1c] sm:$0xf]
        %v3561 = vld [vmem:[%s3552 + $0x20] sm:$0xf]
        %v3562 = vld [vmem:[%s3552 + $0x24] sm:$0xf]
        %v3563 = vld [vmem:[%s3552 + $0x28] sm:$0xf]
        %v3564 = vld [vmem:[%s3552 + $0x2c] sm:$0xf]
        %v3565 = vld [vmem:[%s3552 + $0x30] sm:$0xf]
        %v3566 = vld [vmem:[%s3552 + $0x34] sm:$0xf]
        %v3567 = vld [vmem:[%s3552 + $0x38] sm:$0xf]
        %v3568 = vld [vmem:[%s3552 + $0x3c] sm:$0xf]
        %v3569 = vld [vmem:[%s3552 + $0x40] sm:$0xf]
        %v3570 = vld [vmem:[%s3552 + $0x44] sm:$0xf]
        %v3571 = vld [vmem:[%s3552 + $0x48] sm:$0xf]
        %v3572 = vld [vmem:[%s3552 + $0x4c] sm:$0xf]
        %v3573 = vld [vmem:[%s3552 + $0x50] sm:$0xf]
        %v3574 = vld [vmem:[%s3552 + $0x54] sm:$0xf]
        %v3575 = vld [vmem:[%s3552 + $0x58] sm:$0xf]
        %v3576 = vld [vmem:[%s3552 + $0x5c] sm:$0xf]
        %v3601 = vunpack.c.l.b16 %v3553
        %v3602 = vunpack.c.l.b16 %v3554
        %v3603 = vunpack.c.l.b16 %v3555
        %v3604 = vunpack.c.l.b16 %v3556
        %v3605 = vunpack.c.l.b16 %v3557
        %v3606 = vunpack.c.l.b16 %v3558
        %v3607 = vunpack.c.l.b16 %v3559
        %v3608 = vunpack.c.l.b16 %v3560
        %v3609 = vunpack.c.l.b16 %v3561
        %v3610 = vunpack.c.l.b16 %v3562
        %v3611 = vunpack.c.l.b16 %v3563
        %v3612 = vunpack.c.l.b16 %v3564
        %v3613 = vunpack.c.l.b16 %v3565
        %v3614 = vunpack.c.l.b16 %v3566
        %v3615 = vunpack.c.l.b16 %v3567
        %v3616 = vunpack.c.l.b16 %v3568
        %v3617 = vunpack.c.l.b16 %v3569
        %v3618 = vunpack.c.l.b16 %v3570
        %v3619 = vunpack.c.l.b16 %v3571
        %v3620 = vunpack.c.l.b16 %v3572
        %v3621 = vunpack.c.l.b16 %v3573
        %v3622 = vunpack.c.l.b16 %v3574
        %v3623 = vunpack.c.l.b16 %v3575
        %v3624 = vunpack.c.l.b16 %v3576
        %v3625 = vpack.c.b16 %v3602, %v3601
        %v3626 = vpack.c.b16 %v3604, %v3603
        %v3627 = vpack.c.b16 %v3606, %v3605
        %v3628 = vpack.c.b16 %v3608, %v3607
        %v3629 = vpack.c.b16 %v3610, %v3609
        %v3630 = vpack.c.b16 %v3612, %v3611
        %v3631 = vpack.c.b16 %v3614, %v3613
        %v3632 = vpack.c.b16 %v3616, %v3615
        %v3633 = vpack.c.b16 %v3618, %v3617
        %v3634 = vpack.c.b16 %v3620, %v3619
        %v3635 = vpack.c.b16 %v3622, %v3621
        %v3636 = vpack.c.b16 %v3624, %v3623
        %v3650 = vsel %vm3386, %v3551, 0
        %3652 = vmatpush.bf16.msra.mxu0 %v3632
        %3653 = vmatpush.bf16.msra.mxu0 %v3631
        %3654 = vmatpush.bf16.msra.mxu0 %v3630
        %3655 = vmatpush.bf16.msra.mxu0 %v3629
        %3656 = vmatpush.bf16.msra.mxu0 %v3628
        %3657 = vmatpush.bf16.msra.mxu0 %v3627
        %3658 = vmatpush.bf16.msra.mxu0 %v3626
        %3659 = vmatpush.bf16.msra.mxu0 %v3625
        %3660 = vmatmul.bf16.gmra.mxu0 %v3550
        %v3661 = vpop.f32.mrf.mxu0
        %v3662 = vadd.f32 0.0, %v3661
        %v3663 = vpop.f32.mrf.mxu0
        %3664 = vdwg.mxu0
        %3665 = vmatpush.bf16.msra.mxu0 0
        %3666 = vmatpush.bf16.msra.mxu0 0
        %3667 = vmatpush.bf16.msra.mxu0 0
        %3668 = vmatpush.bf16.msra.mxu0 0
        %3669 = vmatpush.bf16.msra.mxu0 %v3636
        %3670 = vmatpush.bf16.msra.mxu0 %v3635
        %3671 = vmatpush.bf16.msra.mxu0 %v3634
        %3672 = vmatpush.bf16.msra.mxu0 %v3633
        %3673 = vmatmul.bf16.gmra.mxu0 %v3650
        %v3674 = vpop.f32.mrf.mxu0
        %v3675 = vadd.f32 %v3662, %v3674
        %v3676 = vpop.f32.mrf.mxu0
        %3677 = vdwg.mxu0
        %v3678 = vadd.f32 %v3514, %v3675
        %v3679 = vld [vmem:[%s6] sm:$0x1]
        %v3680 = vadd.f32 %v3678, %v3679
        %v3681 = vmax.f32 %v3680, 0.0
        %v3682 = vpack.c.bf16 %v3681, %v3681
        %v3683 = vld [vmem:[%s7] sm:$0xff]
        %v3684 = vld [vmem:[%s7 + $0x8] sm:$0xff]
        %v3685 = vld [vmem:[%s7 + $0x10] sm:$0xff]
        %v3686 = vld [vmem:[%s7 + $0x18] sm:$0xff]
        %v3687 = vld [vmem:[%s7 + $0x20] sm:$0xff]
        %v3688 = vld [vmem:[%s7 + $0x28] sm:$0xff]
        %v3689 = vld [vmem:[%s7 + $0x30] sm:$0xff]
        %v3690 = vld [vmem:[%s7 + $0x38] sm:$0xff]
        %v3691 = vld [vmem:[%s7 + $0x40] sm:$0xff]
        %v3692 = vld [vmem:[%s7 + $0x48] sm:$0xff]
        %v3693 = vld [vmem:[%s7 + $0x50] sm:$0xff]
        %v3694 = vld [vmem:[%s7 + $0x58] sm:$0xff]
        %v3695 = vld [vmem:[%s7 + $0x60] sm:$0xff]
        %v3696 = vld [vmem:[%s7 + $0x68] sm:$0xff]
        %v3697 = vld [vmem:[%s7 + $0x70] sm:$0xff]
        %v3698 = vld [vmem:[%s7 + $0x78] sm:$0xff]
        %v3699 = vld [vmem:[%s8] sm:$0xf]
        %v3716 = vunpack.c.l.b16 %v3683
        %v3717 = vunpack.c.h.b16 %v3683
        %v3718 = vunpack.c.l.b16 %v3684
        %v3719 = vunpack.c.h.b16 %v3684
        %v3720 = vunpack.c.l.b16 %v3685
        %v3721 = vunpack.c.h.b16 %v3685
        %v3722 = vunpack.c.l.b16 %v3686
        %v3723 = vunpack.c.h.b16 %v3686
        %v3724 = vunpack.c.l.b16 %v3687
        %v3725 = vunpack.c.h.b16 %v3687
        %v3726 = vunpack.c.l.b16 %v3688
        %v3727 = vunpack.c.h.b16 %v3688
        %v3728 = vunpack.c.l.b16 %v3689
        %v3729 = vunpack.c.h.b16 %v3689
        %v3730 = vunpack.c.l.b16 %v3690
        %v3731 = vunpack.c.h.b16 %v3690
        %v3732 = vunpack.c.l.b16 %v3691
        %v3733 = vunpack.c.h.b16 %v3691
        %v3734 = vunpack.c.l.b16 %v3692
        %v3735 = vunpack.c.h.b16 %v3692
        %v3736 = vunpack.c.l.b16 %v3693
        %v3737 = vunpack.c.h.b16 %v3693
        %v3738 = vunpack.c.l.b16 %v3694
        %v3739 = vunpack.c.h.b16 %v3694
        %v3740 = vunpack.c.l.b16 %v3695
        %v3741 = vunpack.c.h.b16 %v3695
        %v3742 = vunpack.c.l.b16 %v3696
        %v3743 = vunpack.c.h.b16 %v3696
        %v3744 = vunpack.c.l.b16 %v3697
        %v3745 = vunpack.c.h.b16 %v3697
        %v3746 = vunpack.c.l.b16 %v3698
        %v3747 = vunpack.c.h.b16 %v3698
        %v3748 = vpack.c.b16 %v3720, %v3716
        %v3749 = vpack.c.b16 %v3721, %v3717
        %v3750 = vpack.c.b16 %v3722, %v3718
        %v3751 = vpack.c.b16 %v3723, %v3719
        %v3752 = vpack.c.b16 %v3728, %v3724
        %v3753 = vpack.c.b16 %v3729, %v3725
        %v3754 = vpack.c.b16 %v3730, %v3726
        %v3755 = vpack.c.b16 %v3731, %v3727
        %v3756 = vpack.c.b16 %v3736, %v3732
        %v3757 = vpack.c.b16 %v3737, %v3733
        %v3758 = vpack.c.b16 %v3738, %v3734
        %v3759 = vpack.c.b16 %v3739, %v3735
        %v3760 = vpack.c.b16 %v3744, %v3740
        %v3761 = vpack.c.b16 %v3745, %v3741
        %v3762 = vpack.c.b16 %v3746, %v3742
        %v3763 = vpack.c.b16 %v3747, %v3743
        %v3781 = vperm.slane %v3699, 0
        %v3782 = vperm.slane %v3699, 1
        %v3783 = vperm.slane %v3699, 2
        %v3784 = vperm.slane %v3699, 3
        %v3790 = vsel %vm3386, %v3682, 0
        %3792 = vmatpush.bf16.msra.mxu0 0
        %3793 = vmatpush.bf16.msra.mxu0 0
        %3794 = vmatpush.bf16.msra.mxu0 0
        %3795 = vmatpush.bf16.msra.mxu0 0
        %3796 = vmatpush.bf16.msra.mxu0 %v3760
        %3797 = vmatpush.bf16.msra.mxu0 %v3756
        %3798 = vmatpush.bf16.msra.mxu0 %v3752
        %3799 = vmatpush.bf16.msra.mxu0 %v3748
        %3800 = vmatmul.bf16.gmra.mxu0 %v3790
        %v3801 = vpop.f32.mrf.mxu0
        %v3802 = vadd.f32 %v3781, %v3801
        %v3803 = vpop.f32.mrf.mxu0
        %3804 = vdwg.mxu0
        %3805 = vmatpush.bf16.msra.mxu0 0
        %3806 = vmatpush.bf16.msra.mxu0 0
        %3807 = vmatpush.bf16.msra.mxu0 0
        %3808 = vmatpush.bf16.msra.mxu0 0
        %3809 = vmatpush.bf16.msra.mxu0 %v3761
        %3810 = vmatpush.bf16.msra.mxu0 %v3757
        %3811 = vmatpush.bf16.msra.mxu0 %v3753
        %3812 = vmatpush.bf16.msra.mxu0 %v3749
        %3813 = vmatmul.bf16.gmra.mxu0 %v3790
        %v3814 = vpop.f32.mrf.mxu0
        %v3815 = vadd.f32 %v3782, %v3814
        %v3816 = vpop.f32.mrf.mxu0
        %3817 = vdwg.mxu0
        %3818 = vmatpush.bf16.msra.mxu0 0
        %3819 = vmatpush.bf16.msra.mxu0 0
        %3820 = vmatpush.bf16.msra.mxu0 0
        %3821 = vmatpush.bf16.msra.mxu0 0
        %3822 = vmatpush.bf16.msra.mxu0 %v3762
        %3823 = vmatpush.bf16.msra.mxu0 %v3758
        %3824 = vmatpush.bf16.msra.mxu0 %v3754
        %3825 = vmatpush.bf16.msra.mxu0 %v3750
        %3826 = vmatmul.bf16.gmra.mxu0 %v3790
        %v3827 = vpop.f32.mrf.mxu0
        %v3828 = vadd.f32 %v3783, %v3827
        %v3829 = vpop.f32.mrf.mxu0
        %3830 = vdwg.mxu0
        %3831 = vmatpush.bf16.msra.mxu0 0
        %3832 = vmatpush.bf16.msra.mxu0 0
        %3833 = vmatpush.bf16.msra.mxu0 0
        %3834 = vmatpush.bf16.msra.mxu0 0
        %3835 = vmatpush.bf16.msra.mxu0 %v3763
        %3836 = vmatpush.bf16.msra.mxu0 %v3759
        %3837 = vmatpush.bf16.msra.mxu0 %v3755
        %3838 = vmatpush.bf16.msra.mxu0 %v3751
        %3839 = vmatmul.bf16.gmra.mxu0 %v3790
        %v3840 = vpop.f32.mrf.mxu0
        %v3841 = vadd.f32 %v3784, %v3840
        %v3842 = vpop.f32.mrf.mxu0
        %3843 = vdwg.mxu0
        %v3844 = vmax.f32 %v3802, 0.0
        %v3845 = vmax.f32 %v3815, 0.0
        %v3846 = vmax.f32 %v3828, 0.0
        %v3847 = vmax.f32 %v3841, 0.0
        %v3848 = vpack.c.bf16 %v3844, %v3844
        %v3849 = vpack.c.bf16 %v3845, %v3845
        %v3850 = vpack.c.bf16 %v3846, %v3846
        %v3851 = vpack.c.bf16 %v3847, %v3847
        %v3852 = vld [vmem:[%s9] sm:$0xf]
        %v3853 = vld [vmem:[%s9 + $0x4] sm:$0xf]
        %v3854 = vld [vmem:[%s9 + $0x8] sm:$0xf]
        %v3855 = vld [vmem:[%s9 + $0xc] sm:$0xf]
        %v3856 = vld [vmem:[%s9 + $0x10] sm:$0xf]
        %v3857 = vld [vmem:[%s9 + $0x14] sm:$0xf]
        %v3858 = vld [vmem:[%s9 + $0x18] sm:$0xf]
        %v3859 = vld [vmem:[%s9 + $0x1c] sm:$0xf]
        %v3860 = vld [vmem:[%s9 + $0x20] sm:$0xf]
        %v3861 = vld [vmem:[%s9 + $0x24] sm:$0xf]
        %v3862 = vld [vmem:[%s9 + $0x28] sm:$0xf]
        %v3863 = vld [vmem:[%s9 + $0x2c] sm:$0xf]
        %v3864 = vld [vmem:[%s9 + $0x30] sm:$0xf]
        %v3865 = vld [vmem:[%s9 + $0x34] sm:$0xf]
        %v3866 = vld [vmem:[%s9 + $0x38] sm:$0xf]
        %v3867 = vld [vmem:[%s9 + $0x3c] sm:$0xf]
        %v3868 = vld [vmem:[%s9 + $0x40] sm:$0xf]
        %v3869 = vld [vmem:[%s9 + $0x44] sm:$0xf]
        %v3870 = vld [vmem:[%s9 + $0x48] sm:$0xf]
        %v3871 = vld [vmem:[%s9 + $0x4c] sm:$0xf]
        %v3872 = vld [vmem:[%s9 + $0x50] sm:$0xf]
        %v3873 = vld [vmem:[%s9 + $0x54] sm:$0xf]
        %v3874 = vld [vmem:[%s9 + $0x58] sm:$0xf]
        %v3875 = vld [vmem:[%s9 + $0x5c] sm:$0xf]
        %v3876 = vld [vmem:[%s9 + $0x60] sm:$0xf]
        %v3877 = vld [vmem:[%s9 + $0x64] sm:$0xf]
        %v3878 = vld [vmem:[%s9 + $0x68] sm:$0xf]
        %v3879 = vld [vmem:[%s9 + $0x6c] sm:$0xf]
        %v3880 = vld [vmem:[%s9 + $0x70] sm:$0xf]
        %v3881 = vld [vmem:[%s9 + $0x74] sm:$0xf]
        %v3882 = vld [vmem:[%s9 + $0x78] sm:$0xf]
        %v3883 = vld [vmem:[%s9 + $0x7c] sm:$0xf]
        %v3884 = vld [vmem:[%s9 + $0x80] sm:$0xf]
        %v3885 = vld [vmem:[%s9 + $0x84] sm:$0xf]
        %v3886 = vld [vmem:[%s9 + $0x88] sm:$0xf]
        %v3887 = vld [vmem:[%s9 + $0x8c] sm:$0xf]
        %v3888 = vld [vmem:[%s9 + $0x90] sm:$0xf]
        %v3889 = vld [vmem:[%s9 + $0x94] sm:$0xf]
        %v3890 = vld [vmem:[%s9 + $0x98] sm:$0xf]
        %v3891 = vld [vmem:[%s9 + $0x9c] sm:$0xf]
        %v3892 = vld [vmem:[%s9 + $0xa0] sm:$0xf]
        %v3893 = vld [vmem:[%s9 + $0xa4] sm:$0xf]
        %v3894 = vld [vmem:[%s9 + $0xa8] sm:$0xf]
        %v3895 = vld [vmem:[%s9 + $0xac] sm:$0xf]
        %v3896 = vld [vmem:[%s9 + $0xb0] sm:$0xf]
        %v3897 = vld [vmem:[%s9 + $0xb4] sm:$0xf]
        %v3898 = vld [vmem:[%s9 + $0xb8] sm:$0xf]
        %v3899 = vld [vmem:[%s9 + $0xbc] sm:$0xf]
        %v3900 = vld [vmem:[%s9 + $0xc0] sm:$0xf]
        %v3901 = vld [vmem:[%s9 + $0xc4] sm:$0xf]
        %v3902 = vld [vmem:[%s9 + $0xc8] sm:$0xf]
        %v3903 = vld [vmem:[%s9 + $0xcc] sm:$0xf]
        %v3904 = vld [vmem:[%s9 + $0xd0] sm:$0xf]
        %v3905 = vld [vmem:[%s9 + $0xd4] sm:$0xf]
        %v3906 = vld [vmem:[%s9 + $0xd8] sm:$0xf]
        %v3907 = vld [vmem:[%s9 + $0xdc] sm:$0xf]
        %v3908 = vld [vmem:[%s9 + $0xe0] sm:$0xf]
        %v3909 = vld [vmem:[%s9 + $0xe4] sm:$0xf]
        %v3910 = vld [vmem:[%s9 + $0xe8] sm:$0xf]
        %v3911 = vld [vmem:[%s9 + $0xec] sm:$0xf]
        %v3912 = vld [vmem:[%s9 + $0xf0] sm:$0xf]
        %v3913 = vld [vmem:[%s9 + $0xf4] sm:$0xf]
        %v3914 = vld [vmem:[%s9 + $0xf8] sm:$0xf]
        %v3915 = vld [vmem:[%s9 + $0xfc] sm:$0xf]
        %v3916 = vld [vmem:[%s10] sm:$0x1]
        %v3981 = vunpack.c.l.b16 %v3852
        %v3982 = vunpack.c.l.b16 %v3853
        %v3983 = vunpack.c.l.b16 %v3854
        %v3984 = vunpack.c.l.b16 %v3855
        %v3985 = vunpack.c.l.b16 %v3856
        %v3986 = vunpack.c.l.b16 %v3857
        %v3987 = vunpack.c.l.b16 %v3858
        %v3988 = vunpack.c.l.b16 %v3859
        %v3989 = vunpack.c.l.b16 %v3860
        %v3990 = vunpack.c.l.b16 %v3861
        %v3991 = vunpack.c.l.b16 %v3862
        %v3992 = vunpack.c.l.b16 %v3863
        %v3993 = vunpack.c.l.b16 %v3864
        %v3994 = vunpack.c.l.b16 %v3865
        %v3995 = vunpack.c.l.b16 %v3866
        %v3996 = vunpack.c.l.b16 %v3867
        %v3997 = vunpack.c.l.b16 %v3868
        %v3998 = vunpack.c.l.b16 %v3869
        %v3999 = vunpack.c.l.b16 %v3870
        %v4000 = vunpack.c.l.b16 %v3871
        %v4001 = vunpack.c.l.b16 %v3872
        %v4002 = vunpack.c.l.b16 %v3873
        %v4003 = vunpack.c.l.b16 %v3874
        %v4004 = vunpack.c.l.b16 %v3875
        %v4005 = vunpack.c.l.b16 %v3876
        %v4006 = vunpack.c.l.b16 %v3877
        %v4007 = vunpack.c.l.b16 %v3878
        %v4008 = vunpack.c.l.b16 %v3879
        %v4009 = vunpack.c.l.b16 %v3880
        %v4010 = vunpack.c.l.b16 %v3881
        %v4011 = vunpack.c.l.b16 %v3882
        %v4012 = vunpack.c.l.b16 %v3883
        %v4013 = vunpack.c.l.b16 %v3884
        %v4014 = vunpack.c.l.b16 %v3885
        %v4015 = vunpack.c.l.b16 %v3886
        %v4016 = vunpack.c.l.b16 %v3887
        %v4017 = vunpack.c.l.b16 %v3888
        %v4018 = vunpack.c.l.b16 %v3889
        %v4019 = vunpack.c.l.b16 %v3890
        %v4020 = vunpack.c.l.b16 %v3891
        %v4021 = vunpack.c.l.b16 %v3892
        %v4022 = vunpack.c.l.b16 %v3893
        %v4023 = vunpack.c.l.b16 %v3894
        %v4024 = vunpack.c.l.b16 %v3895
        %v4025 = vunpack.c.l.b16 %v3896
        %v4026 = vunpack.c.l.b16 %v3897
        %v4027 = vunpack.c.l.b16 %v3898
        %v4028 = vunpack.c.l.b16 %v3899
        %v4029 = vunpack.c.l.b16 %v3900
        %v4030 = vunpack.c.l.b16 %v3901
        %v4031 = vunpack.c.l.b16 %v3902
        %v4032 = vunpack.c.l.b16 %v3903
        %v4033 = vunpack.c.l.b16 %v3904
        %v4034 = vunpack.c.l.b16 %v3905
        %v4035 = vunpack.c.l.b16 %v3906
        %v4036 = vunpack.c.l.b16 %v3907
        %v4037 = vunpack.c.l.b16 %v3908
        %v4038 = vunpack.c.l.b16 %v3909
        %v4039 = vunpack.c.l.b16 %v3910
        %v4040 = vunpack.c.l.b16 %v3911
        %v4041 = vunpack.c.l.b16 %v3912
        %v4042 = vunpack.c.l.b16 %v3913
        %v4043 = vunpack.c.l.b16 %v3914
        %v4044 = vunpack.c.l.b16 %v3915
        %v4045 = vpack.c.b16 %v3982, %v3981
        %v4046 = vpack.c.b16 %v3984, %v3983
        %v4047 = vpack.c.b16 %v3986, %v3985
        %v4048 = vpack.c.b16 %v3988, %v3987
        %v4049 = vpack.c.b16 %v3990, %v3989
        %v4050 = vpack.c.b16 %v3992, %v3991
        %v4051 = vpack.c.b16 %v3994, %v3993
        %v4052 = vpack.c.b16 %v3996, %v3995
        %v4053 = vpack.c.b16 %v3998, %v3997
        %v4054 = vpack.c.b16 %v4000, %v3999
        %v4055 = vpack.c.b16 %v4002, %v4001
        %v4056 = vpack.c.b16 %v4004, %v4003
        %v4057 = vpack.c.b16 %v4006, %v4005
        %v4058 = vpack.c.b16 %v4008, %v4007
        %v4059 = vpack.c.b16 %v4010, %v4009
        %v4060 = vpack.c.b16 %v4012, %v4011
        %v4061 = vpack.c.b16 %v4014, %v4013
        %v4062 = vpack.c.b16 %v4016, %v4015
        %v4063 = vpack.c.b16 %v4018, %v4017
        %v4064 = vpack.c.b16 %v4020, %v4019
        %v4065 = vpack.c.b16 %v4022, %v4021
        %v4066 = vpack.c.b16 %v4024, %v4023
        %v4067 = vpack.c.b16 %v4026, %v4025
        %v4068 = vpack.c.b16 %v4028, %v4027
        %v4069 = vpack.c.b16 %v4030, %v4029
        %v4070 = vpack.c.b16 %v4032, %v4031
        %v4071 = vpack.c.b16 %v4034, %v4033
        %v4072 = vpack.c.b16 %v4036, %v4035
        %v4073 = vpack.c.b16 %v4038, %v4037
        %v4074 = vpack.c.b16 %v4040, %v4039
        %v4075 = vpack.c.b16 %v4042, %v4041
        %v4076 = vpack.c.b16 %v4044, %v4043
        %4109 = vmatpush.bf16.msra.mxu0 %v4052
        %4110 = vmatpush.bf16.msra.mxu0 %v4051
        %4111 = vmatpush.bf16.msra.mxu0 %v4050
        %4112 = vmatpush.bf16.msra.mxu0 %v4049
        %4113 = vmatpush.bf16.msra.mxu0 %v4048
        %4114 = vmatpush.bf16.msra.mxu0 %v4047
        %4115 = vmatpush.bf16.msra.mxu0 %v4046
        %4116 = vmatpush.bf16.msra.mxu0 %v4045
        %4117 = vmatmul.bf16.gmra.mxu0 %v3848
        %v4118 = vpop.f32.mrf.mxu0
        %v4119 = vadd.f32 %v3916, %v4118
        %v4120 = vpop.f32.mrf.mxu0
        %4121 = vdwg.mxu0
        %4122 = vmatpush.bf16.msra.mxu0 %v4060
        %4123 = vmatpush.bf16.msra.mxu0 %v4059
        %4124 = vmatpush.bf16.msra.mxu0 %v4058
        %4125 = vmatpush.bf16.msra.mxu0 %v4057
        %4126 = vmatpush.bf16.msra.mxu0 %v4056
        %4127 = vmatpush.bf16.msra.mxu0 %v4055
        %4128 = vmatpush.bf16.msra.mxu0 %v4054
        %4129 = vmatpush.bf16.msra.mxu0 %v4053
        %4130 = vmatmul.bf16.gmra.mxu0 %v3849
        %v4131 = vpop.f32.mrf.mxu0
        %v4132 = vadd.f32 %v4119, %v4131
        %v4133 = vpop.f32.mrf.mxu0
        %4134 = vdwg.mxu0
        %4135 = vmatpush.bf16.msra.mxu0 %v4068
        %4136 = vmatpush.bf16.msra.mxu0 %v4067
        %4137 = vmatpush.bf16.msra.mxu0 %v4066
        %4138 = vmatpush.bf16.msra.mxu0 %v4065
        %4139 = vmatpush.bf16.msra.mxu0 %v4064
        %4140 = vmatpush.bf16.msra.mxu0 %v4063
        %4141 = vmatpush.bf16.msra.mxu0 %v4062
        %4142 = vmatpush.bf16.msra.mxu0 %v4061
        %4143 = vmatmul.bf16.gmra.mxu0 %v3850
        %v4144 = vpop.f32.mrf.mxu0
        %v4145 = vadd.f32 %v4132, %v4144
        %v4146 = vpop.f32.mrf.mxu0
        %4147 = vdwg.mxu0
        %4148 = vmatpush.bf16.msra.mxu0 %v4076
        %4149 = vmatpush.bf16.msra.mxu0 %v4075
        %4150 = vmatpush.bf16.msra.mxu0 %v4074
        %4151 = vmatpush.bf16.msra.mxu0 %v4073
        %4152 = vmatpush.bf16.msra.mxu0 %v4072
        %4153 = vmatpush.bf16.msra.mxu0 %v4071
        %4154 = vmatpush.bf16.msra.mxu0 %v4070
        %4155 = vmatpush.bf16.msra.mxu0 %v4069
        %4156 = vmatmul.bf16.gmra.mxu0 %v3851
        %v4157 = vpop.f32.mrf.mxu0
        %v4158 = vadd.f32 %v4145, %v4157
        %v4159 = vpop.f32.mrf.mxu0
        %4160 = vdwg.mxu0
        %4161 = vst [vmem:[%s378] sm:$0x1] %v4158
        %s4162 = sand.u32 %s269, 1
        %s4163 = scalar_lea.sflag [#allocation3], %s4162
        %s4164 = sand.u32 %s269, 1
        %s4165 = scalar_lea.vmem [#allocation2], %s4164
        // Predicated region
        $region65: #{dqn_forward.1} parent=63 // pred_check
          %p4166 = pneg %p279
        $region66: #{dqn_forward.1} parent=63 // pred_check_branch
          %4168 = sbr.rel (%p4166) target = $region68
        $region67: #{dqn_forward.1} parent=63 // pred_region
          %4170 = vsyncadd %s4163, 0
          %s4171 = scalar_lea.hbm %s11, %s25
          %s4173 = sshll.u32 %s4165, 4
          %s4174 = int_to_ptr.vmem [resolvable:$true] %s4173
          %s4175 = sshll.u32 %s4171, 4
          %s4176 = int_to_ptr.hbm [resolvable:$true] %s4175
          %4178 = dma.vmem_to_hbm [thread:$0]  %s4174, 16, %s4176, %s4163
        $region68: #{dqn_forward.1} parent=63 // pred_fallthru
          _
      $region64: #{dqn_forward.1} parent=5 // pred_fallthru
        _
      %p4179 = scmp.le.s32.totalorder 2, %s20
      // Predicated region
      $region69: #{dqn_forward.1} parent=5 // pred_check
        %p4180 = pneg %p4179
      $region70: #{dqn_forward.1} parent=5 // pred_check_branch
        %4182 = sbr.rel (%p4180) target = $region72
      $region71: #{dqn_forward.1} parent=5 // pred_region
        %s4183 = ssub.s32 %s20, 2
        // Predicated region
        $region73: #{dqn_forward.1} parent=71 // pred_check
          %p4184 = pneg %p285
        $region74: #{dqn_forward.1} parent=71 // pred_check_branch
          %4186 = sbr.rel (%p4184) target = $region76
        $region75: #{dqn_forward.1} parent=71 // pred_region
          %s4187 = sand.u32 %s270, 1
          %s4188 = scalar_lea.sflag [#allocation3], %s4187
          %s4189 = sand.u32 %s270, 1
          %s4190 = scalar_lea.vmem [#allocation2], %s4189
          %4192 = dma.done %s4188, 16
        $region76: #{dqn_forward.1} parent=71 // pred_fallthru
          _
      $region72: #{dqn_forward.1} parent=5 // pred_fallthru
        _
    $region6: #{dqn_forward.1} parent=1 // loop_footer
      %s24 = sadd.s32 1, %s20
    $region7: #{dqn_forward.1} parent=1 // loop_footer_branch
      %19 = sbr.rel target = $region3
    $region8: #{dqn_forward.1} parent=1 // loop_exit
      _
    %4193 = vsyncpa [#allocation3], 1
    %s4194 = scalar_lea.sflag [#allocation3], 1
    %4195 = vsyncpa %s4194, 1

</llo_original>
